<compile_context>
chip_gen: v5e
topology: v5e:2x2
jax: 0.10.0
libtpu: 0.0.40
codegen_flags: <defaults>
</compile_context>

<pallas_src>
import math
import jax
import jax.numpy as jnp
from jax import lax
from jax.experimental import pallas as pl
from jax.experimental.pallas import tpu as pltpu

# ----------------------------- small hyper-parameters -----------------------------
VOCAB_SIZE = 8
D_MODEL = 32
MAX_LEN = 256          # must be a multiple of 128 (AvgPool1d kernel=stride=128)
N_HEAD = 4
DIM_FEEDFORWARD = 64
NUM_ENCODER_LAYERS = 2
FC_DIM = 64
OUTPUT_DIM = 1
BN_EPS = 1e-3
LN_EPS = 1e-5

PAD = 8   # halo rows on each side of the padded sequence scratch (>= max conv halo of 4);
          # 8 keeps every scratch store sublane-aligned.


# ===================================================================================
# Kernel 1: embedding-output -> conv1/conv2 (im2col) -> residual -> AvgPool(128) ->
#           BatchNorm (eval, folded) -> PositionalEncoding.
#           Processes a chunk of B sequences per grid step.
# ===================================================================================
def conv_pool_kernel(x_ref, w1a_ref, b1a_ref, w1b_ref, b1b_ref,
                     w2a_ref, b2a_ref, w2b_ref, b2b_ref,
                     bn_scale_ref, bn_bias_ref, pe_ref,
                     out_ref, xpad_ref, cols6_ref, cols9_ref):
    B, L, D = x_ref.shape
    Lp = L // 128

    # zero the halo rows once per grid step (interior is overwritten per sequence)
    zero_halo = jnp.zeros((PAD, D), jnp.float32)
    xpad_ref[0:PAD, :] = zero_halo
    xpad_ref[PAD + L:PAD + L + PAD, :] = zero_halo

    xs = [x_ref[b] for b in range(B)]                      # (L, D) per sequence

    # im2col into VMEM scratch: tap j of the k=6 'same' conv reads x[l + j - 2],
    # tap j of the k=9 'same' conv reads x[l + j - 4] (PyTorch left pads 2 / 4).
    for b in range(B):
        xpad_ref[PAD:PAD + L, :] = xs[b]
        for j in range(6):
            cols6_ref[b * L:(b + 1) * L, j * D:(j + 1) * D] = \
                xpad_ref[PAD + j - 2:PAD + j - 2 + L, :]
        for j in range(9):
            cols9_ref[b * L:(b + 1) * L, j * D:(j + 1) * D] = \
                xpad_ref[PAD + j - 4:PAD + j - 4 + L, :]

    # branch 1: Conv1d(k=6,'same') -> ReLU -> Conv1d(k=1) -> ReLU   (one MXU matmul each)
    h1 = jnp.maximum(jnp.dot(cols6_ref[...], w1a_ref[...],
                             preferred_element_type=jnp.float32) + b1a_ref[...], 0.0)
    h1 = jnp.maximum(jnp.dot(h1, w1b_ref[...],
                             preferred_element_type=jnp.float32) + b1b_ref[...], 0.0)
    # branch 2: Conv1d(k=9,'same') -> ReLU -> Conv1d(k=1) -> ReLU
    h2 = jnp.maximum(jnp.dot(cols9_ref[...], w2a_ref[...],
                             preferred_element_type=jnp.float32) + b2a_ref[...], 0.0)
    h2 = jnp.maximum(jnp.dot(h2, w2b_ref[...],
                             preferred_element_type=jnp.float32) + b2b_ref[...], 0.0)
    s12 = h1 + h2                                          # (B*L, D), src1 + src2

    # AvgPool1d(128) -> folded eval BatchNorm -> PositionalEncoding (dropout disabled)
    bn_scale = bn_scale_ref[...]
    bn_bias = bn_bias_ref[...]
    pe = pe_ref[...]
    for b in range(B):
        for p_ in range(Lp):
            blk = (s12[(b * Lp + p_) * 128:(b * Lp + p_ + 1) * 128, :]
                   + xs[b][p_ * 128:(p_ + 1) * 128, :])          # src12 + src residual
            row = jnp.mean(blk, axis=0, keepdims=True)           # (1, D)
            out_ref[b, p_:p_ + 1, :] = row * bn_scale + bn_bias + pe[p_:p_ + 1, :]


def conv_pool_stage(x_emb, p, batch_block=None):
    N, L, D = x_emb.shape
    if batch_block is None:
        # v7x: keep a parallel grid of >=2 steps so both TensorCores get work;
        # v5e/v6e (single TC): the same choice keeps the number of grid steps at 2,
        # amortizing the ~0.35 us/step overhead by packing sequences into the block.
        batch_block = N // 2 if (N % 2 == 0 and N >= 2) else 1
    B = batch_block
    assert N % B == 0
    Lp = L // 128
    consts = [p['w1a'], p['b1a'], p['w1b'], p['b1b'],
              p['w2a'], p['b2a'], p['w2b'], p['b2b'],
              p['bn_scale'], p['bn_bias'], p['pe']]

    def const_spec(a):
        nd = a.ndim
        return pl.BlockSpec(a.shape, lambda n, _nd=nd: (0,) * _nd)

    return pl.pallas_call(
        conv_pool_kernel,
        out_shape=jax.ShapeDtypeStruct((N, Lp, D), jnp.float32),
        grid_spec=pltpu.PrefetchScalarGridSpec(
            num_scalar_prefetch=0,
            grid=(N // B,),
            in_specs=[pl.BlockSpec((B, L, D), lambda n: (n, 0, 0))]
                     + [const_spec(a) for a in consts],
            out_specs=pl.BlockSpec((B, Lp, D), lambda n: (n, 0, 0)),
            scratch_shapes=[pltpu.VMEM((L + 2 * PAD, D), jnp.float32),
                            pltpu.VMEM((B * L, 6 * D), jnp.float32),
                            pltpu.VMEM((B * L, 9 * D), jnp.float32)]),
        compiler_params=pltpu.CompilerParams(dimension_semantics=("parallel",)),
    )(x_emb, *consts)


# ===================================================================================
# Kernel 2: both CustomTransformerEncoderLayers (post-norm, ReLU FFN) + pooler +
#           fc_block head fused into a single launch over the whole (tiny) batch.
#           Emits per-layer batch-mean per-head attention probabilities.
# ===================================================================================
def _layernorm(x, g, b):
    mu = jnp.mean(x, axis=-1, keepdims=True)
    var = jnp.mean(jnp.square(x - mu), axis=-1, keepdims=True)
    return (x - mu) * lax.rsqrt(var + LN_EPS) * g + b


def encoder_head_kernel(x_ref,
                        wqkv_ref, bqkv_ref, wo_ref, bo_ref,
                        ln1g_ref, ln1b_ref, w1_ref, b1_ref, w2_ref, b2_ref,
                        ln2g_ref, ln2b_ref,
                        wp_ref, bp_ref, wf1_ref, bf1_ref,
                        wf2_ref, bf2_ref, wf3_ref, bf3_ref,
                        out_ref, attn_ref, tmp_ref):
    NL, H, S, _ = attn_ref.shape
    NS, D = x_ref.shape
    N = NS // S
    hd = D // H
    inv_n = 1.0 / N

    x2d = x_ref[...]                                           # (N*S, D), REG token prepended

    for l in range(NL):
        # fused Q/K/V projection for the whole batch slab; 1/sqrt(hd) folded into Wq at init
        qkv = (jnp.dot(x2d, wqkv_ref[l], preferred_element_type=jnp.float32)
               + bqkv_ref[l])                                  # (N*S, 3D)
        q = qkv[:, 0 * D:1 * D]
        k = qkv[:, 1 * D:2 * D]
        v = qkv[:, 2 * D:3 * D]

        probs_acc = [None] * H
        for n in range(N):
            r0 = n * S
            for h in range(H):
                c0 = h * hd
                qnh = q[r0:r0 + S, c0:c0 + hd]
                knh = k[r0:r0 + S, c0:c0 + hd]
                vnh = v[r0:r0 + S, c0:c0 + hd]
                sc = lax.dot_general(qnh, knh, (((1,), (1,)), ((), ())),
                                     preferred_element_type=jnp.float32)    # (S, S)
                sc = sc - jnp.max(sc, axis=-1, keepdims=True)
                e = jnp.exp(sc)
                pnh = e / jnp.sum(e, axis=-1, keepdims=True)
                probs_acc[h] = pnh if probs_acc[h] is None else probs_acc[h] + pnh
                # scatter this head's context into the (N*S, D) slab so the output
                # projection below is a single full-width matmul
                tmp_ref[r0:r0 + S, c0:c0 + hd] = jnp.dot(
                    pnh, vnh, preferred_element_type=jnp.float32)
        for h in range(H):
            attn_ref[l, h] = probs_acc[h] * inv_n              # batch-mean attention probs

        ctx = tmp_ref[...]                                     # (N*S, D)
        attn_out = (jnp.dot(ctx, wo_ref[l], preferred_element_type=jnp.float32)
                    + bo_ref[l])
        x2d = _layernorm(x2d + attn_out, ln1g_ref[l], ln1b_ref[l])          # norm1
        ff = jnp.maximum(jnp.dot(x2d, w1_ref[l], preferred_element_type=jnp.float32)
                         + b1_ref[l], 0.0)                                  # ReLU
        ff = jnp.dot(ff, w2_ref[l], preferred_element_type=jnp.float32) + b2_ref[l]
        x2d = _layernorm(x2d + ff, ln2g_ref[l], ln2b_ref[l])                # norm2

    # pooler (Linear+Tanh on the REG token) + fc_block regressor, batched over N
    for n in range(N):
        tmp_ref[n:n + 1, :] = x2d[n * S:n * S + 1, :]
    cls = tmp_ref[0:N, :]                                      # (N, D)
    pooled = jnp.tanh(jnp.dot(cls, wp_ref[...], preferred_element_type=jnp.float32)
                      + bp_ref[...])
    z = jnp.maximum(jnp.dot(pooled, wf1_ref[...], preferred_element_type=jnp.float32)
                    + bf1_ref[...], 0.0)
    z = jnp.dot(z, wf2_ref[...], preferred_element_type=jnp.float32) + bf2_ref[...]
    # TODO(synk): PyTorch nn.GELU() default is the exact erf GELU; tanh approximation used here.
    z = 0.5 * z * (1.0 + jnp.tanh(0.7978845608028654 * (z + 0.044715 * z * z * z)))
    out_ref[...] = jnp.dot(z, wf3_ref[...], preferred_element_type=jnp.float32) + bf3_ref[...]


def encoder_head_stage(x_flat, p, N, S):
    ins = [x_flat,
           p['wqkv'], p['bqkv'], p['wo'], p['bo'],
           p['ln1_g'], p['ln1_b'], p['w1'], p['b1'], p['w2'], p['b2'],
           p['ln2_g'], p['ln2_b'],
           p['wp'], p['bp'], p['wf1'], p['bf1'], p['wf2'], p['bf2'],
           p['wf3'], p['bf3']]

    def full_spec(a):
        nd = a.ndim
        return pl.BlockSpec(a.shape, lambda i, _nd=nd: (0,) * _nd)

    return pl.pallas_call(
        encoder_head_kernel,
        out_shape=(jax.ShapeDtypeStruct((N, OUTPUT_DIM), jnp.float32),
                   jax.ShapeDtypeStruct((NUM_ENCODER_LAYERS, N_HEAD, S, S), jnp.float32)),
        grid_spec=pltpu.PrefetchScalarGridSpec(
            num_scalar_prefetch=0,
            grid=(1,),
            in_specs=[full_spec(a) for a in ins],
            out_specs=(pl.BlockSpec((N, OUTPUT_DIM), lambda i: (0, 0)),
                       pl.BlockSpec((NUM_ENCODER_LAYERS, N_HEAD, S, S),
                                    lambda i: (0, 0, 0, 0))),
            scratch_shapes=[pltpu.VMEM((N * S, D_MODEL), jnp.float32)]),
    )(*ins)


# ===================================================================================
# Parameters (deterministic, synthetic) + forward
# ===================================================================================
def init_params(key):
    keys = iter(jax.random.split(key, 64))

    def nrm(shape, scale=0.05):
        return (scale * jax.random.normal(next(keys), shape)).astype(jnp.float32)

    p = {}
    p['emb'] = jax.random.uniform(next(keys), (VOCAB_SIZE, D_MODEL),
                                  minval=-0.05, maxval=0.05).astype(jnp.float32)
    p['reg_emb'] = jax.random.uniform(next(keys), (1, D_MODEL),
                                      minval=-0.05, maxval=0.05).astype(jnp.float32)
    # conv branches, im2col-packed: row j*D + c_in of w*a is tap j; biases zero
    p['w1a'] = nrm((6 * D_MODEL, D_MODEL)); p['b1a'] = jnp.zeros((1, D_MODEL), jnp.float32)
    p['w1b'] = nrm((D_MODEL, D_MODEL));     p['b1b'] = jnp.zeros((1, D_MODEL), jnp.float32)
    p['w2a'] = nrm((9 * D_MODEL, D_MODEL)); p['b2a'] = jnp.zeros((1, D_MODEL), jnp.float32)
    p['w2b'] = nrm((D_MODEL, D_MODEL));     p['b2b'] = jnp.zeros((1, D_MODEL), jnp.float32)
    # eval-mode BatchNorm1d with freshly initialized stats, folded to scale/bias
    gamma = jnp.ones((1, D_MODEL), jnp.float32); beta = jnp.zeros((1, D_MODEL), jnp.float32)
    rmean = jnp.zeros((1, D_MODEL), jnp.float32); rvar = jnp.ones((1, D_MODEL), jnp.float32)
    p['bn_scale'] = gamma / jnp.sqrt(rvar + BN_EPS)
    p['bn_bias'] = beta - rmean * p['bn_scale']
    # sinusoidal positional encoding of length MAX_LEN // 128
    Lp = MAX_LEN // 128
    position = jnp.arange(Lp, dtype=jnp.float32)[:, None]
    div_term = jnp.exp(jnp.arange(0, D_MODEL, 2, dtype=jnp.float32)
                       * (-math.log(10000.0) / D_MODEL))
    pe = jnp.zeros((Lp, D_MODEL), jnp.float32)
    pe = pe.at[:, 0::2].set(jnp.sin(position * div_term))
    pe = pe.at[:, 1::2].set(jnp.cos(position * div_term))
    p['pe'] = pe
    # encoder layers — Q/K/V fused into one (D, 3D) matrix per layer, scale folded into Wq,
    # all layers stacked along a leading layer axis so one pallas_call sees everything.
    hd = D_MODEL // N_HEAD
    scale = 1.0 / math.sqrt(hd)
    stacks = {k: [] for k in ('wqkv', 'bqkv', 'wo', 'bo', 'ln1_g', 'ln1_b',
                              'w1', 'b1', 'w2', 'b2', 'ln2_g', 'ln2_b')}
    for _ in range(NUM_ENCODER_LAYERS):
        wq = nrm((D_MODEL, D_MODEL)) * scale                  # 1/sqrt(hd) folded in
        wk = nrm((D_MODEL, D_MODEL))
        wv = nrm((D_MODEL, D_MODEL))
        stacks['wqkv'].append(jnp.concatenate([wq, wk, wv], axis=1))      # (D, 3D)
        stacks['bqkv'].append(jnp.zeros((1, 3 * D_MODEL), jnp.float32))
        stacks['wo'].append(nrm((D_MODEL, D_MODEL)))
        stacks['bo'].append(jnp.zeros((1, D_MODEL), jnp.float32))
        stacks['ln1_g'].append(jnp.ones((1, D_MODEL), jnp.float32))
        stacks['ln1_b'].append(jnp.zeros((1, D_MODEL), jnp.float32))
        stacks['w1'].append(nrm((D_MODEL, DIM_FEEDFORWARD)))
        stacks['b1'].append(jnp.zeros((1, DIM_FEEDFORWARD), jnp.float32))
        stacks['w2'].append(nrm((DIM_FEEDFORWARD, D_MODEL)))
        stacks['b2'].append(jnp.zeros((1, D_MODEL), jnp.float32))
        stacks['ln2_g'].append(jnp.ones((1, D_MODEL), jnp.float32))
        stacks['ln2_b'].append(jnp.zeros((1, D_MODEL), jnp.float32))
    for k, vlist in stacks.items():
        p[k] = jnp.stack(vlist, axis=0)
    # pooler + fc_block
    p['wp'] = nrm((D_MODEL, D_MODEL)); p['bp'] = jnp.zeros((1, D_MODEL), jnp.float32)
    p['wf1'] = nrm((D_MODEL, FC_DIM)); p['bf1'] = jnp.zeros((1, FC_DIM), jnp.float32)
    p['wf2'] = nrm((FC_DIM, FC_DIM));  p['bf2'] = jnp.zeros((1, FC_DIM), jnp.float32)
    p['wf3'] = nrm((FC_DIM, OUTPUT_DIM)); p['bf3'] = jnp.zeros((1, OUTPUT_DIM), jnp.float32)
    return p


def multimod_alberto_forward(params, src, met):
    # Embedding with MOD='met': embed(seq) + met[..., None] * embed(token 5)   (glue: gather)
    emb = params['emb'][src] + met[..., None] * params['emb'][5]          # (N, L, D)
    # conv branches + residual + avgpool + batchnorm + positional encoding (Pallas kernel 1)
    x = conv_pool_stage(emb.astype(jnp.float32), params)                  # (N, L/128, D)
    N, Lp, D = x.shape
    S = Lp + 1
    # Add_REG: prepend learnable register token and flatten to a (N*S, D) slab (glue, ~1 KB)
    reg = jnp.broadcast_to(params['reg_emb'][None, :, :], (N, 1, D))
    x_flat = jnp.concatenate([reg, x], axis=1).reshape(N * S, D)
    # fused transformer encoder stack + pooler + regressor (Pallas kernel 2, single launch)
    out, attn = encoder_head_stage(x_flat, params, N, S)
    all_attn = [attn[l] for l in range(NUM_ENCODER_LAYERS)]               # (H, S, S) batch-mean
    return jnp.squeeze(out), all_attn


if __name__ == "__main__":
    key = jax.random.PRNGKey(0)
    pkey, skey, mkey = jax.random.split(key, 3)
    params = init_params(pkey)

    N = 2
    src = jax.random.randint(skey, (N, MAX_LEN), 0, VOCAB_SIZE, dtype=jnp.int32)
    met = jax.random.uniform(mkey, (N, MAX_LEN), dtype=jnp.float32)

    out, attn_list = multimod_alberto_forward(params, src, met)
    out = jax.block_until_ready(out)
    for a in attn_list:
        jax.block_until_ready(a)

    assert out.shape == (N,)
    assert all(a.shape == (N_HEAD, MAX_LEN // 128 + 1, MAX_LEN // 128 + 1) for a in attn_list)
    print("KERNEL_OK")
</pallas_src>

<mosaic_0001>
module attributes {stable_mosaic.version = 11 : i64} {
  func.func @conv_pool_kernel(%arg0: i32, %arg1: memref<1x256x32xf32, #tpu.memory_space<vmem>>, %arg2: memref<192x32xf32, #tpu.memory_space<vmem>>, %arg3: memref<1x32xf32, #tpu.memory_space<vmem>>, %arg4: memref<32x32xf32, #tpu.memory_space<vmem>>, %arg5: memref<1x32xf32, #tpu.memory_space<vmem>>, %arg6: memref<288x32xf32, #tpu.memory_space<vmem>>, %arg7: memref<1x32xf32, #tpu.memory_space<vmem>>, %arg8: memref<32x32xf32, #tpu.memory_space<vmem>>, %arg9: memref<1x32xf32, #tpu.memory_space<vmem>>, %arg10: memref<1x32xf32, #tpu.memory_space<vmem>>, %arg11: memref<1x32xf32, #tpu.memory_space<vmem>>, %arg12: memref<2x32xf32, #tpu.memory_space<vmem>>, %arg13: memref<1x2x32xf32, #tpu.memory_space<vmem>>, %arg14: memref<272x32xf32, #tpu.memory_space<vmem>>, %arg15: memref<256x192xf32, #tpu.memory_space<vmem>>, %arg16: memref<256x288xf32, #tpu.memory_space<vmem>>) attributes {dimension_semantics = [#tpu.dimension_semantics<parallel>], iteration_bounds = array<i64: 2>, scalar_prefetch = 0 : i64, scratch_operands = 3 : i64, tpu.core_type = #tpu.core_type<tc>, window_params = [{transform_indices = @transform_0, window_bounds = array<i64: 1, 256, 32>}, {pipeline_mode = #tpu.pipeline_mode<synchronous>, transform_indices = @transform_1, window_bounds = array<i64: 192, 32>}, {pipeline_mode = #tpu.pipeline_mode<synchronous>, transform_indices = @transform_2, window_bounds = array<i64: 1, 32>}, {pipeline_mode = #tpu.pipeline_mode<synchronous>, transform_indices = @transform_3, window_bounds = array<i64: 32, 32>}, {pipeline_mode = #tpu.pipeline_mode<synchronous>, transform_indices = @transform_4, window_bounds = array<i64: 1, 32>}, {pipeline_mode = #tpu.pipeline_mode<synchronous>, transform_indices = @transform_5, window_bounds = array<i64: 288, 32>}, {pipeline_mode = #tpu.pipeline_mode<synchronous>, transform_indices = @transform_6, window_bounds = array<i64: 1, 32>}, {pipeline_mode = #tpu.pipeline_mode<synchronous>, transform_indices = @transform_7, window_bounds = array<i64: 32, 32>}, {pipeline_mode = #tpu.pipeline_mode<synchronous>, transform_indices = @transform_8, window_bounds = array<i64: 1, 32>}, {pipeline_mode = #tpu.pipeline_mode<synchronous>, transform_indices = @transform_9, window_bounds = array<i64: 1, 32>}, {pipeline_mode = #tpu.pipeline_mode<synchronous>, transform_indices = @transform_10, window_bounds = array<i64: 1, 32>}, {pipeline_mode = #tpu.pipeline_mode<synchronous>, transform_indices = @transform_11, window_bounds = array<i64: 2, 32>}, {transform_indices = @transform_12, window_bounds = array<i64: 1, 2, 32>}]} {
    %cst = arith.constant 0.000000e+00 : f32
    %0 = vector.broadcast %cst : f32 to vector<8x32xf32>
    %c0 = arith.constant 0 : index
    %c0_0 = arith.constant 0 : index
    %1 = vector.load %arg14[%c0, %c0_0] : memref<272x32xf32, #tpu.memory_space<vmem>>, vector<8x32xf32>
    tpu.vector_store %arg14[%c0, %c0_0], %0 {strides = array<i32>} : memref<272x32xf32, #tpu.memory_space<vmem>>, vector<8x32xf32>,
    %c264 = arith.constant 264 : index
    %c0_1 = arith.constant 0 : index
    %2 = vector.load %arg14[%c264, %c0_1] : memref<272x32xf32, #tpu.memory_space<vmem>>, vector<8x32xf32>
    tpu.vector_store %arg14[%c264, %c0_1], %0 {strides = array<i32>} : memref<272x32xf32, #tpu.memory_space<vmem>>, vector<8x32xf32>,
    %c0_2 = arith.constant 0 : index
    %c0_3 = arith.constant 0 : index
    %c0_4 = arith.constant 0 : index
    %3 = vector.load %arg1[%c0_2, %c0_3, %c0_4] : memref<1x256x32xf32, #tpu.memory_space<vmem>>, vector<1x256x32xf32>
    %4 = vector.shape_cast %3 : vector<1x256x32xf32> to vector<256x32xf32>
    %c8 = arith.constant 8 : index
    %c0_5 = arith.constant 0 : index
    %5 = vector.load %arg14[%c8, %c0_5] : memref<272x32xf32, #tpu.memory_space<vmem>>, vector<256x32xf32>
    tpu.vector_store %arg14[%c8, %c0_5], %4 {strides = array<i32>} : memref<272x32xf32, #tpu.memory_space<vmem>>, vector<256x32xf32>,
    %c6 = arith.constant 6 : index
    %c0_6 = arith.constant 0 : index
    %6 = vector.load %arg14[%c6, %c0_6] : memref<272x32xf32, #tpu.memory_space<vmem>>, vector<256x32xf32>
    %c0_7 = arith.constant 0 : index
    %c0_8 = arith.constant 0 : index
    %7 = vector.load %arg15[%c0_7, %c0_8] : memref<256x192xf32, #tpu.memory_space<vmem>>, vector<256x32xf32>
    tpu.vector_store %arg15[%c0_7, %c0_8], %6 {strides = array<i32>} : memref<256x192xf32, #tpu.memory_space<vmem>>, vector<256x32xf32>,
    %c7 = arith.constant 7 : index
    %c0_9 = arith.constant 0 : index
    %8 = vector.load %arg14[%c7, %c0_9] : memref<272x32xf32, #tpu.memory_space<vmem>>, vector<256x32xf32>
    %c0_10 = arith.constant 0 : index
    %c32 = arith.constant 32 : index
    %9 = vector.load %arg15[%c0_10, %c32] : memref<256x192xf32, #tpu.memory_space<vmem>>, vector<256x32xf32>
    tpu.vector_store %arg15[%c0_10, %c32], %8 {strides = array<i32>} : memref<256x192xf32, #tpu.memory_space<vmem>>, vector<256x32xf32>,
    %c8_11 = arith.constant 8 : index
    %c0_12 = arith.constant 0 : index
    %10 = vector.load %arg14[%c8_11, %c0_12] : memref<272x32xf32, #tpu.memory_space<vmem>>, vector<256x32xf32>
    %c0_13 = arith.constant 0 : index
    %c64 = arith.constant 64 : index
    %11 = vector.load %arg15[%c0_13, %c64] : memref<256x192xf32, #tpu.memory_space<vmem>>, vector<256x32xf32>
    tpu.vector_store %arg15[%c0_13, %c64], %10 {strides = array<i32>} : memref<256x192xf32, #tpu.memory_space<vmem>>, vector<256x32xf32>,
    %c9 = arith.constant 9 : index
    %c0_14 = arith.constant 0 : index
    %12 = vector.load %arg14[%c9, %c0_14] : memref<272x32xf32, #tpu.memory_space<vmem>>, vector<256x32xf32>
    %c0_15 = arith.constant 0 : index
    %c96 = arith.constant 96 : index
    %13 = vector.load %arg15[%c0_15, %c96] : memref<256x192xf32, #tpu.memory_space<vmem>>, vector<256x32xf32>
    tpu.vector_store %arg15[%c0_15, %c96], %12 {strides = array<i32>} : memref<256x192xf32, #tpu.memory_space<vmem>>, vector<256x32xf32>,
    %c10 = arith.constant 10 : index
    %c0_16 = arith.constant 0 : index
    %14 = vector.load %arg14[%c10, %c0_16] : memref<272x32xf32, #tpu.memory_space<vmem>>, vector<256x32xf32>
    %c0_17 = arith.constant 0 : index
    %c128 = arith.constant 128 : index
    %15 = vector.load %arg15[%c0_17, %c128] : memref<256x192xf32, #tpu.memory_space<vmem>>, vector<256x32xf32>
    tpu.vector_store %arg15[%c0_17, %c128], %14 {strides = array<i32>} : memref<256x192xf32, #tpu.memory_space<vmem>>, vector<256x32xf32>,
    %c11 = arith.constant 11 : index
    %c0_18 = arith.constant 0 : index
    %16 = vector.load %arg14[%c11, %c0_18] : memref<272x32xf32, #tpu.memory_space<vmem>>, vector<256x32xf32>
    %c0_19 = arith.constant 0 : index
    %c160 = arith.constant 160 : index
    %17 = vector.load %arg15[%c0_19, %c160] : memref<256x192xf32, #tpu.memory_space<vmem>>, vector<256x32xf32>
    tpu.vector_store %arg15[%c0_19, %c160], %16 {strides = array<i32>} : memref<256x192xf32, #tpu.memory_space<vmem>>, vector<256x32xf32>,
    %c4 = arith.constant 4 : index
    %c0_20 = arith.constant 0 : index
    %18 = vector.load %arg14[%c4, %c0_20] : memref<272x32xf32, #tpu.memory_space<vmem>>, vector<256x32xf32>
    %c0_21 = arith.constant 0 : index
    %c0_22 = arith.constant 0 : index
    %19 = vector.load %arg16[%c0_21, %c0_22] : memref<256x288xf32, #tpu.memory_space<vmem>>, vector<256x32xf32>
    tpu.vector_store %arg16[%c0_21, %c0_22], %18 {strides = array<i32>} : memref<256x288xf32, #tpu.memory_space<vmem>>, vector<256x32xf32>,
    %c5 = arith.constant 5 : index
    %c0_23 = arith.constant 0 : index
    %20 = vector.load %arg14[%c5, %c0_23] : memref<272x32xf32, #tpu.memory_space<vmem>>, vector<256x32xf32>
    %c0_24 = arith.constant 0 : index
    %c32_25 = arith.constant 32 : index
    %21 = vector.load %arg16[%c0_24, %c32_25] : memref<256x288xf32, #tpu.memory_space<vmem>>, vector<256x32xf32>
    tpu.vector_store %arg16[%c0_24, %c32_25], %20 {strides = array<i32>} : memref<256x288xf32, #tpu.memory_space<vmem>>, vector<256x32xf32>,
    %c6_26 = arith.constant 6 : index
    %c0_27 = arith.constant 0 : index
    %22 = vector.load %arg14[%c6_26, %c0_27] : memref<272x32xf32, #tpu.memory_space<vmem>>, vector<256x32xf32>
    %c0_28 = arith.constant 0 : index
    %c64_29 = arith.constant 64 : index
    %23 = vector.load %arg16[%c0_28, %c64_29] : memref<256x288xf32, #tpu.memory_space<vmem>>, vector<256x32xf32>
    tpu.vector_store %arg16[%c0_28, %c64_29], %22 {strides = array<i32>} : memref<256x288xf32, #tpu.memory_space<vmem>>, vector<256x32xf32>,
    %c7_30 = arith.constant 7 : index
    %c0_31 = arith.constant 0 : index
    %24 = vector.load %arg14[%c7_30, %c0_31] : memref<272x32xf32, #tpu.memory_space<vmem>>, vector<256x32xf32>
    %c0_32 = arith.constant 0 : index
    %c96_33 = arith.constant 96 : index
    %25 = vector.load %arg16[%c0_32, %c96_33] : memref<256x288xf32, #tpu.memory_space<vmem>>, vector<256x32xf32>
    tpu.vector_store %arg16[%c0_32, %c96_33], %24 {strides = array<i32>} : memref<256x288xf32, #tpu.memory_space<vmem>>, vector<256x32xf32>,
    %c8_34 = arith.constant 8 : index
    %c0_35 = arith.constant 0 : index
    %26 = vector.load %arg14[%c8_34, %c0_35] : memref<272x32xf32, #tpu.memory_space<vmem>>, vector<256x32xf32>
    %c0_36 = arith.constant 0 : index
    %c128_37 = arith.constant 128 : index
    %27 = vector.load %arg16[%c0_36, %c128_37] : memref<256x288xf32, #tpu.memory_space<vmem>>, vector<256x32xf32>
    tpu.vector_store %arg16[%c0_36, %c128_37], %26 {strides = array<i32>} : memref<256x288xf32, #tpu.memory_space<vmem>>, vector<256x32xf32>,
    %c9_38 = arith.constant 9 : index
    %c0_39 = arith.constant 0 : index
    %28 = vector.load %arg14[%c9_38, %c0_39] : memref<272x32xf32, #tpu.memory_space<vmem>>, vector<256x32xf32>
    %c0_40 = arith.constant 0 : index
    %c160_41 = arith.constant 160 : index
    %29 = vector.load %arg16[%c0_40, %c160_41] : memref<256x288xf32, #tpu.memory_space<vmem>>, vector<256x32xf32>
    tpu.vector_store %arg16[%c0_40, %c160_41], %28 {strides = array<i32>} : memref<256x288xf32, #tpu.memory_space<vmem>>, vector<256x32xf32>,
    %c10_42 = arith.constant 10 : index
    %c0_43 = arith.constant 0 : index
    %30 = vector.load %arg14[%c10_42, %c0_43] : memref<272x32xf32, #tpu.memory_space<vmem>>, vector<256x32xf32>
    %c0_44 = arith.constant 0 : index
    %c192 = arith.constant 192 : index
    %31 = vector.load %arg16[%c0_44, %c192] : memref<256x288xf32, #tpu.memory_space<vmem>>, vector<256x32xf32>
    tpu.vector_store %arg16[%c0_44, %c192], %30 {strides = array<i32>} : memref<256x288xf32, #tpu.memory_space<vmem>>, vector<256x32xf32>,
    %c11_45 = arith.constant 11 : index
    %c0_46 = arith.constant 0 : index
    %32 = vector.load %arg14[%c11_45, %c0_46] : memref<272x32xf32, #tpu.memory_space<vmem>>, vector<256x32xf32>
    %c0_47 = arith.constant 0 : index
    %c224 = arith.constant 224 : index
    %33 = vector.load %arg16[%c0_47, %c224] : memref<256x288xf32, #tpu.memory_space<vmem>>, vector<256x32xf32>
    tpu.vector_store %arg16[%c0_47, %c224], %32 {strides = array<i32>} : memref<256x288xf32, #tpu.memory_space<vmem>>, vector<256x32xf32>,
    %c12 = arith.constant 12 : index
    %c0_48 = arith.constant 0 : index
    %34 = vector.load %arg14[%c12, %c0_48] : memref<272x32xf32, #tpu.memory_space<vmem>>, vector<256x32xf32>
    %c0_49 = arith.constant 0 : index
    %c256 = arith.constant 256 : index
    %35 = vector.load %arg16[%c0_49, %c256] : memref<256x288xf32, #tpu.memory_space<vmem>>, vector<256x32xf32>
    tpu.vector_store %arg16[%c0_49, %c256], %34 {strides = array<i32>} : memref<256x288xf32, #tpu.memory_space<vmem>>, vector<256x32xf32>,
    %c0_50 = arith.constant 0 : index
    %c0_51 = arith.constant 0 : index
    %36 = vector.load %arg15[%c0_50, %c0_51] : memref<256x192xf32, #tpu.memory_space<vmem>>, vector<256x192xf32>
    %c0_52 = arith.constant 0 : index
    %c0_53 = arith.constant 0 : index
    %37 = vector.load %arg2[%c0_52, %c0_53] : memref<192x32xf32, #tpu.memory_space<vmem>>, vector<192x32xf32>
    %cst_54 = arith.constant dense<0.000000e+00> : vector<256x32xf32>
    %38 = tpu.matmul %36, %37, %cst_54 {dimension_numbers = #tpu.dot_dimension_numbers<[1], [0], [0], [1], [0, 0, 1, 1], [], []>} : vector<256x192xf32>, vector<192x32xf32>, vector<256x32xf32> -> vector<256x32xf32>
    %c0_55 = arith.constant 0 : index
    %c0_56 = arith.constant 0 : index
    %39 = vector.load %arg3[%c0_55, %c0_56] : memref<1x32xf32, #tpu.memory_space<vmem>>, vector<1x32xf32>
    %40 = vector.broadcast %39 : vector<1x32xf32> to vector<256x32xf32>
    %41 = arith.addf %38, %40 : vector<256x32xf32>
    %cst_57 = arith.constant 0.000000e+00 : f32
    %42 = vector.broadcast %cst_57 : f32 to vector<256x32xf32>
    %43 = arith.maximumf %41, %42 : vector<256x32xf32>
    %c0_58 = arith.constant 0 : index
    %c0_59 = arith.constant 0 : index
    %44 = vector.load %arg4[%c0_58, %c0_59] : memref<32x32xf32, #tpu.memory_space<vmem>>, vector<32x32xf32>
    %cst_60 = arith.constant dense<0.000000e+00> : vector<256x32xf32>
    %45 = tpu.matmul %43, %44, %cst_60 {dimension_numbers = #tpu.dot_dimension_numbers<[1], [0], [0], [1], [0, 0, 1, 1], [], []>} : vector<256x32xf32>, vector<32x32xf32>, vector<256x32xf32> -> vector<256x32xf32>
    %c0_61 = arith.constant 0 : index
    %c0_62 = arith.constant 0 : index
    %46 = vector.load %arg5[%c0_61, %c0_62] : memref<1x32xf32, #tpu.memory_space<vmem>>, vector<1x32xf32>
    %47 = vector.broadcast %46 : vector<1x32xf32> to vector<256x32xf32>
    %48 = arith.addf %45, %47 : vector<256x32xf32>
    %cst_63 = arith.constant 0.000000e+00 : f32
    %49 = vector.broadcast %cst_63 : f32 to vector<256x32xf32>
    %50 = arith.maximumf %48, %49 : vector<256x32xf32>
    %c0_64 = arith.constant 0 : index
    %c0_65 = arith.constant 0 : index
    %51 = vector.load %arg16[%c0_64, %c0_65] : memref<256x288xf32, #tpu.memory_space<vmem>>, vector<256x288xf32>
    %c0_66 = arith.constant 0 : index
    %c0_67 = arith.constant 0 : index
    %52 = vector.load %arg6[%c0_66, %c0_67] : memref<288x32xf32, #tpu.memory_space<vmem>>, vector<288x32xf32>
    %cst_68 = arith.constant dense<0.000000e+00> : vector<256x32xf32>
    %53 = tpu.matmul %51, %52, %cst_68 {dimension_numbers = #tpu.dot_dimension_numbers<[1], [0], [0], [1], [0, 0, 1, 1], [], []>} : vector<256x288xf32>, vector<288x32xf32>, vector<256x32xf32> -> vector<256x32xf32>
    %c0_69 = arith.constant 0 : index
    %c0_70 = arith.constant 0 : index
    %54 = vector.load %arg7[%c0_69, %c0_70] : memref<1x32xf32, #tpu.memory_space<vmem>>, vector<1x32xf32>
    %55 = vector.broadcast %54 : vector<1x32xf32> to vector<256x32xf32>
    %56 = arith.addf %53, %55 : vector<256x32xf32>
    %cst_71 = arith.constant 0.000000e+00 : f32
    %57 = vector.broadcast %cst_71 : f32 to vector<256x32xf32>
    %58 = arith.maximumf %56, %57 : vector<256x32xf32>
    %c0_72 = arith.constant 0 : index
    %c0_73 = arith.constant 0 : index
    %59 = vector.load %arg8[%c0_72, %c0_73] : memref<32x32xf32, #tpu.memory_space<vmem>>, vector<32x32xf32>
    %cst_74 = arith.constant dense<0.000000e+00> : vector<256x32xf32>
    %60 = tpu.matmul %58, %59, %cst_74 {dimension_numbers = #tpu.dot_dimension_numbers<[1], [0], [0], [1], [0, 0, 1, 1], [], []>} : vector<256x32xf32>, vector<32x32xf32>, vector<256x32xf32> -> vector<256x32xf32>
    %c0_75 = arith.constant 0 : index
    %c0_76 = arith.constant 0 : index
    %61 = vector.load %arg9[%c0_75, %c0_76] : memref<1x32xf32, #tpu.memory_space<vmem>>, vector<1x32xf32>
    %62 = vector.broadcast %61 : vector<1x32xf32> to vector<256x32xf32>
    %63 = arith.addf %60, %62 : vector<256x32xf32>
    %cst_77 = arith.constant 0.000000e+00 : f32
    %64 = vector.broadcast %cst_77 : f32 to vector<256x32xf32>
    %65 = arith.maximumf %63, %64 : vector<256x32xf32>
    %66 = arith.addf %50, %65 : vector<256x32xf32>
    %c0_78 = arith.constant 0 : index
    %c0_79 = arith.constant 0 : index
    %67 = vector.load %arg10[%c0_78, %c0_79] : memref<1x32xf32, #tpu.memory_space<vmem>>, vector<1x32xf32>
    %c0_80 = arith.constant 0 : index
    %c0_81 = arith.constant 0 : index
    %68 = vector.load %arg11[%c0_80, %c0_81] : memref<1x32xf32, #tpu.memory_space<vmem>>, vector<1x32xf32>
    %c0_82 = arith.constant 0 : index
    %c0_83 = arith.constant 0 : index
    %69 = vector.load %arg12[%c0_82, %c0_83] : memref<2x32xf32, #tpu.memory_space<vmem>>, vector<2x32xf32>
    %70 = vector.extract_strided_slice %66 {offsets = [0, 0], sizes = [128, 32], strides = [1, 1]} : vector<256x32xf32> to vector<128x32xf32>
    %71 = vector.extract_strided_slice %4 {offsets = [0, 0], sizes = [128, 32], strides = [1, 1]} : vector<256x32xf32> to vector<128x32xf32>
    %72 = arith.addf %70, %71 : vector<128x32xf32>
    %cst_84 = arith.constant dense<0.000000e+00> : vector<32xf32>
    %73 = vector.multi_reduction <add>, %72, %cst_84 [0] : vector<128x32xf32> to vector<32xf32>
    %74 = vector.shape_cast %73 : vector<32xf32> to vector<1x32xf32>
    %cst_85 = arith.constant 1.280000e+02 : f32
    %75 = vector.broadcast %cst_85 : f32 to vector<1x32xf32>
    %76 = arith.divf %74, %75 : vector<1x32xf32>
    %77 = arith.mulf %76, %67 : vector<1x32xf32>
    %78 = arith.addf %77, %68 : vector<1x32xf32>
    %79 = vector.extract_strided_slice %69 {offsets = [0, 0], sizes = [1, 32], strides = [1, 1]} : vector<2x32xf32> to vector<1x32xf32>
    %80 = arith.addf %78, %79 : vector<1x32xf32>
    %c0_86 = arith.constant 0 : index
    %c0_87 = arith.constant 0 : index
    %c0_88 = arith.constant 0 : index
    %81 = vector.load %arg13[%c0_86, %c0_87, %c0_88] : memref<1x2x32xf32, #tpu.memory_space<vmem>>, vector<1x1x32xf32>
    %82 = vector.shape_cast %81 : vector<1x1x32xf32> to vector<1x32xf32>
    %83 = vector.shape_cast %80 : vector<1x32xf32> to vector<1x1x32xf32>
    tpu.vector_store %arg13[%c0_86, %c0_87, %c0_88], %83 {strides = array<i32>} : memref<1x2x32xf32, #tpu.memory_space<vmem>>, vector<1x1x32xf32>,
    %84 = vector.extract_strided_slice %66 {offsets = [128, 0], sizes = [128, 32], strides = [1, 1]} : vector<256x32xf32> to vector<128x32xf32>
    %85 = vector.extract_strided_slice %4 {offsets = [128, 0], sizes = [128, 32], strides = [1, 1]} : vector<256x32xf32> to vector<128x32xf32>
    %86 = arith.addf %84, %85 : vector<128x32xf32>
    %cst_89 = arith.constant dense<0.000000e+00> : vector<32xf32>
    %87 = vector.multi_reduction <add>, %86, %cst_89 [0] : vector<128x32xf32> to vector<32xf32>
    %88 = vector.shape_cast %87 : vector<32xf32> to vector<1x32xf32>
    %cst_90 = arith.constant 1.280000e+02 : f32
    %89 = vector.broadcast %cst_90 : f32 to vector<1x32xf32>
    %90 = arith.divf %88, %89 : vector<1x32xf32>
    %91 = arith.mulf %90, %67 : vector<1x32xf32>
    %92 = arith.addf %91, %68 : vector<1x32xf32>
    %93 = vector.extract_strided_slice %69 {offsets = [1, 0], sizes = [1, 32], strides = [1, 1]} : vector<2x32xf32> to vector<1x32xf32>
    %94 = arith.addf %92, %93 : vector<1x32xf32>
    %c0_91 = arith.constant 0 : index
    %c1 = arith.constant 1 : index
    %c0_92 = arith.constant 0 : index
    %95 = vector.load %arg13[%c0_91, %c1, %c0_92] : memref<1x2x32xf32, #tpu.memory_space<vmem>>, vector<1x1x32xf32>
    %96 = vector.shape_cast %95 : vector<1x1x32xf32> to vector<1x32xf32>
    %97 = vector.shape_cast %94 : vector<1x32xf32> to vector<1x1x32xf32>
    tpu.vector_store %arg13[%c0_91, %c1, %c0_92], %97 {strides = array<i32>} : memref<1x2x32xf32, #tpu.memory_space<vmem>>, vector<1x1x32xf32>,
    return
  }
  func.func @transform_0(%arg0: i32) -> (i32, i32, i32) {
    %c0_i32 = arith.constant 0 : i32
    %c0_i32_0 = arith.constant 0 : i32
    %c0_i32_1 = arith.constant 0 : i32
    return %arg0, %c0_i32, %c0_i32_0 : i32, i32, i32
  }
  func.func @transform_1(%arg0: i32) -> (i32, i32) {
    %c0_i32 = arith.constant 0 : i32
    %c0_i32_0 = arith.constant 0 : i32
    %c0_i32_1 = arith.constant 0 : i32
    return %c0_i32, %c0_i32_0 : i32, i32
  }
  func.func @transform_2(%arg0: i32) -> (i32, i32) {
    %c0_i32 = arith.constant 0 : i32
    %c0_i32_0 = arith.constant 0 : i32
    %c0_i32_1 = arith.constant 0 : i32
    return %c0_i32, %c0_i32_0 : i32, i32
  }
  func.func @transform_3(%arg0: i32) -> (i32, i32) {
    %c0_i32 = arith.constant 0 : i32
    %c0_i32_0 = arith.constant 0 : i32
    %c0_i32_1 = arith.constant 0 : i32
    return %c0_i32, %c0_i32_0 : i32, i32
  }
  func.func @transform_4(%arg0: i32) -> (i32, i32) {
    %c0_i32 = arith.constant 0 : i32
    %c0_i32_0 = arith.constant 0 : i32
    %c0_i32_1 = arith.constant 0 : i32
    return %c0_i32, %c0_i32_0 : i32, i32
  }
  func.func @transform_5(%arg0: i32) -> (i32, i32) {
    %c0_i32 = arith.constant 0 : i32
    %c0_i32_0 = arith.constant 0 : i32
    %c0_i32_1 = arith.constant 0 : i32
    return %c0_i32, %c0_i32_0 : i32, i32
  }
  func.func @transform_6(%arg0: i32) -> (i32, i32) {
    %c0_i32 = arith.constant 0 : i32
    %c0_i32_0 = arith.constant 0 : i32
    %c0_i32_1 = arith.constant 0 : i32
    return %c0_i32, %c0_i32_0 : i32, i32
  }
  func.func @transform_7(%arg0: i32) -> (i32, i32) {
    %c0_i32 = arith.constant 0 : i32
    %c0_i32_0 = arith.constant 0 : i32
    %c0_i32_1 = arith.constant 0 : i32
    return %c0_i32, %c0_i32_0 : i32, i32
  }
  func.func @transform_8(%arg0: i32) -> (i32, i32) {
    %c0_i32 = arith.constant 0 : i32
    %c0_i32_0 = arith.constant 0 : i32
    %c0_i32_1 = arith.constant 0 : i32
    return %c0_i32, %c0_i32_0 : i32, i32
  }
  func.func @transform_9(%arg0: i32) -> (i32, i32) {
    %c0_i32 = arith.constant 0 : i32
    %c0_i32_0 = arith.constant 0 : i32
    %c0_i32_1 = arith.constant 0 : i32
    return %c0_i32, %c0_i32_0 : i32, i32
  }
  func.func @transform_10(%arg0: i32) -> (i32, i32) {
    %c0_i32 = arith.constant 0 : i32
    %c0_i32_0 = arith.constant 0 : i32
    %c0_i32_1 = arith.constant 0 : i32
    return %c0_i32, %c0_i32_0 : i32, i32
  }
  func.func @transform_11(%arg0: i32) -> (i32, i32) {
    %c0_i32 = arith.constant 0 : i32
    %c0_i32_0 = arith.constant 0 : i32
    %c0_i32_1 = arith.constant 0 : i32
    return %c0_i32, %c0_i32_0 : i32, i32
  }
  func.func @transform_12(%arg0: i32) -> (i32, i32, i32) {
    %c0_i32 = arith.constant 0 : i32
    %c0_i32_0 = arith.constant 0 : i32
    %c0_i32_1 = arith.constant 0 : i32
    return %arg0, %c0_i32, %c0_i32_0 : i32, i32, i32
  }
}

</mosaic_0001>

<llo_original>
// kernel: tpu_custom_call.1
$region0: #{tpu_custom_call.1}
  #allocation0 [shape = 'u32[]', space=smem, size = 0x4, offset = 0x4, fixed_abs, tag = 'smem constant byte address 0x4 - core index']
  #allocation1 [shape = 'u32[72,128]{1,0:T(1,128)}', space=vmem, size = 0x9000, scoped, tag = 'internal scratch']
  #allocation2 [shape = 'f32[272,32]{1,0:T(8,128)}', space=vmem, size = 0x22000, scoped, tag = 'scratch operand']
  #allocation3 [shape = 'f32[256,192]{1,0:T(8,128)}', space=vmem, size = 0x40000, scoped, tag = 'scratch operand']
  #allocation4 [shape = 'f32[256,288]{1,0:T(8,128)}', space=vmem, size = 0x60000, scoped, tag = 'scratch operand']
  %s0 = inlined_call_operand.vmem [shape: f32[2,256,32], index: 0, kind: input, shape index: {}]
  %s1 = inlined_call_operand.vmem [shape: f32[192,32], index: 1, kind: input, shape index: {}]
  %s2 = inlined_call_operand.vmem [shape: f32[1,32], index: 2, kind: input, shape index: {}]
  %s3 = inlined_call_operand.vmem [shape: f32[32,32], index: 3, kind: input, shape index: {}]
  %s4 = inlined_call_operand.vmem [shape: f32[1,32], index: 4, kind: input, shape index: {}]
  %s5 = inlined_call_operand.vmem [shape: f32[288,32], index: 5, kind: input, shape index: {}]
  %s6 = inlined_call_operand.vmem [shape: f32[1,32], index: 6, kind: input, shape index: {}]
  %s7 = inlined_call_operand.vmem [shape: f32[32,32], index: 7, kind: input, shape index: {}]
  %s8 = inlined_call_operand.vmem [shape: f32[1,32], index: 8, kind: input, shape index: {}]
  %s9 = inlined_call_operand.vmem [shape: f32[1,32], index: 9, kind: input, shape index: {}]
  %s10 = inlined_call_operand.vmem [shape: f32[1,32], index: 10, kind: input, shape index: {}]
  %s11 = inlined_call_operand.vmem [shape: f32[2,32], index: 11, kind: input, shape index: {}]
  %s12 = inlined_call_operand.hbm [shape: f32[2,2,32], index: 12, kind: output, shape index: {}]
  %s13 = sld [smem:[#allocation0]]
  $region81: #{tpu_custom_call.1} parent=0
    _
  %s15 = ssub.s32 1, %s13
  %s16 = scalar_select 0, %s15, %s13
  $region1: #{tpu_custom_call.1} parent=0
    #allocation5 [shape = 'u8[2048]{0}', space=vmem, size = 0x800, scoped, tag = 'output window, operand 0']
    #allocation6 [shape = 's32[2]{0}', space=sflag, size = 0x8, scoped, tag = 'scoped memory for tpu_custom_call.1']
    %17 = vsyncpa [#allocation6], 0
    %s18 = scalar_lea.sflag [#allocation6], 1
    %19 = vsyncpa %s18, 0
    loop: start=0, step=1, limit=4
    $region2: #{tpu_custom_call.1} parent=1 // loop_pre_header
      _
    $region3: #{tpu_custom_call.1} parent=1 // loop_header
      %s21 = sphi 0, %s25
      %p22 = scmp.ge.s32.totalorder %s21, 4
      %s31 = sphi 0, %s33
      %s34 = sphi 0, %s31
      %s35 = sphi 0, %s34
      %s51 = sphi 0, %s35
      %s55 = sphi 0, %s55
      %s57 = sphi 0, %s55
      %s58 = sphi 0, %s57
      %s72 = sphi 0, %s58
      %s76 = sphi 0, %s76
      %s78 = sphi 0, %s76
      %s79 = sphi 0, %s78
      %s93 = sphi 0, %s79
      %s97 = sphi 0, %s97
      %s99 = sphi 0, %s97
      %s100 = sphi 0, %s99
      %s114 = sphi 0, %s100
      %s118 = sphi 0, %s118
      %s120 = sphi 0, %s118
      %s121 = sphi 0, %s120
      %s135 = sphi 0, %s121
      %s139 = sphi 0, %s139
      %s141 = sphi 0, %s139
      %s142 = sphi 0, %s141
      %s156 = sphi 0, %s142
      %s160 = sphi 0, %s160
      %s162 = sphi 0, %s160
      %s163 = sphi 0, %s162
      %s177 = sphi 0, %s163
      %s181 = sphi 0, %s181
      %s183 = sphi 0, %s181
      %s184 = sphi 0, %s183
      %s198 = sphi 0, %s184
      %s202 = sphi 0, %s202
      %s204 = sphi 0, %s202
      %s205 = sphi 0, %s204
      %s219 = sphi 0, %s205
      %s223 = sphi 0, %s223
      %s225 = sphi 0, %s223
      %s226 = sphi 0, %s225
      %s240 = sphi 0, %s226
      %s244 = sphi 0, %s244
      %s246 = sphi 0, %s244
      %s247 = sphi 0, %s246
      %s261 = sphi 0, %s247
      %s265 = sphi 0, %s265
      %s267 = sphi 0, %s265
      %s268 = sphi 0, %s267
      %s282 = sphi 0, %s268
      %s288 = sphi 0, %s290
      %s291 = sphi 0, %s288
      %s292 = sphi 0, %s291
      %s308 = sphi 0, %s292
    $region4: #{tpu_custom_call.1} parent=1 // loop_header_branch
      %24 = sbr.rel (%p22) target = $region8
    $region5: #{tpu_custom_call.1} parent=1 // loop_body
      %s26 = ssub.s32 %s21, 1
      %s27 = ssub.s32 %s21, 2
      %s28 = sadd.s32 %s21, 1
      %s29 = ssub.s32 %s21, %s28
      %p30 = scmp.eq.s32.totalorder %s29, 0
      %s32 = sadd.s32 %s31, 1
      %s33 = scalar_select %p30, %s31, %s32
      %p36 = pneg %p30
      %p37 = scmp.eq.s32.totalorder %s21, 1
      %p38 = por %p36, %p37
      %p39 = scmp.ne.s32.totalorder %s31, %s34
      %p40 = scmp.eq.s32.totalorder %s21, 0
      %p41 = por %p39, %p40
      %p42 = scmp.ne.s32.totalorder %s31, %s34
      %p43 = scmp.eq.s32.totalorder %s26, 1
      %p44 = por %p42, %p43
      %p45 = scmp.ne.s32.totalorder %s34, %s35
      %p46 = scmp.eq.s32.totalorder %s26, 0
      %p47 = por %p45, %p46
      %p48 = scmp.ne.s32.totalorder %s34, %s35
      %p49 = scmp.eq.s32.totalorder %s27, 1
      %p50 = por %p48, %p49
      %p52 = scmp.ne.s32.totalorder %s35, %s51
      %p53 = scmp.eq.s32.totalorder %s27, 0
      %p54 = por %p52, %p53
      %s56 = sadd.s32 %s55, 1
      %p59 = scmp.eq.s32.totalorder %s21, 1
      %p60 = scmp.ne.s32.totalorder %s55, %s57
      %p61 = scmp.eq.s32.totalorder %s21, 0
      %p62 = por %p60, %p61
      %p63 = scmp.ne.s32.totalorder %s55, %s57
      %p64 = scmp.eq.s32.totalorder %s26, 1
      %p65 = por %p63, %p64
      %p66 = scmp.ne.s32.totalorder %s57, %s58
      %p67 = scmp.eq.s32.totalorder %s26, 0
      %p68 = por %p66, %p67
      %p69 = scmp.ne.s32.totalorder %s57, %s58
      %p70 = scmp.eq.s32.totalorder %s27, 1
      %p71 = por %p69, %p70
      %p73 = scmp.ne.s32.totalorder %s58, %s72
      %p74 = scmp.eq.s32.totalorder %s27, 0
      %p75 = por %p73, %p74
      %s77 = sadd.s32 %s76, 1
      %p80 = scmp.eq.s32.totalorder %s21, 1
      %p81 = scmp.ne.s32.totalorder %s76, %s78
      %p82 = scmp.eq.s32.totalorder %s21, 0
      %p83 = por %p81, %p82
      %p84 = scmp.ne.s32.totalorder %s76, %s78
      %p85 = scmp.eq.s32.totalorder %s26, 1
      %p86 = por %p84, %p85
      %p87 = scmp.ne.s32.totalorder %s78, %s79
      %p88 = scmp.eq.s32.totalorder %s26, 0
      %p89 = por %p87, %p88
      %p90 = scmp.ne.s32.totalorder %s78, %s79
      %p91 = scmp.eq.s32.totalorder %s27, 1
      %p92 = por %p90, %p91
      %p94 = scmp.ne.s32.totalorder %s79, %s93
      %p95 = scmp.eq.s32.totalorder %s27, 0
      %p96 = por %p94, %p95
      %s98 = sadd.s32 %s97, 1
      %p101 = scmp.eq.s32.totalorder %s21, 1
      %p102 = scmp.ne.s32.totalorder %s97, %s99
      %p103 = scmp.eq.s32.totalorder %s21, 0
      %p104 = por %p102, %p103
      %p105 = scmp.ne.s32.totalorder %s97, %s99
      %p106 = scmp.eq.s32.totalorder %s26, 1
      %p107 = por %p105, %p106
      %p108 = scmp.ne.s32.totalorder %s99, %s100
      %p109 = scmp.eq.s32.totalorder %s26, 0
      %p110 = por %p108, %p109
      %p111 = scmp.ne.s32.totalorder %s99, %s100
      %p112 = scmp.eq.s32.totalorder %s27, 1
      %p113 = por %p111, %p112
      %p115 = scmp.ne.s32.totalorder %s100, %s114
      %p116 = scmp.eq.s32.totalorder %s27, 0
      %p117 = por %p115, %p116
      %s119 = sadd.s32 %s118, 1
      %p122 = scmp.eq.s32.totalorder %s21, 1
      %p123 = scmp.ne.s32.totalorder %s118, %s120
      %p124 = scmp.eq.s32.totalorder %s21, 0
      %p125 = por %p123, %p124
      %p126 = scmp.ne.s32.totalorder %s118, %s120
      %p127 = scmp.eq.s32.totalorder %s26, 1
      %p128 = por %p126, %p127
      %p129 = scmp.ne.s32.totalorder %s120, %s121
      %p130 = scmp.eq.s32.totalorder %s26, 0
      %p131 = por %p129, %p130
      %p132 = scmp.ne.s32.totalorder %s120, %s121
      %p133 = scmp.eq.s32.totalorder %s27, 1
      %p134 = por %p132, %p133
      %p136 = scmp.ne.s32.totalorder %s121, %s135
      %p137 = scmp.eq.s32.totalorder %s27, 0
      %p138 = por %p136, %p137
      %s140 = sadd.s32 %s139, 1
      %p143 = scmp.eq.s32.totalorder %s21, 1
      %p144 = scmp.ne.s32.totalorder %s139, %s141
      %p145 = scmp.eq.s32.totalorder %s21, 0
      %p146 = por %p144, %p145
      %p147 = scmp.ne.s32.totalorder %s139, %s141
      %p148 = scmp.eq.s32.totalorder %s26, 1
      %p149 = por %p147, %p148
      %p150 = scmp.ne.s32.totalorder %s141, %s142
      %p151 = scmp.eq.s32.totalorder %s26, 0
      %p152 = por %p150, %p151
      %p153 = scmp.ne.s32.totalorder %s141, %s142
      %p154 = scmp.eq.s32.totalorder %s27, 1
      %p155 = por %p153, %p154
      %p157 = scmp.ne.s32.totalorder %s142, %s156
      %p158 = scmp.eq.s32.totalorder %s27, 0
      %p159 = por %p157, %p158
      %s161 = sadd.s32 %s160, 1
      %p164 = scmp.eq.s32.totalorder %s21, 1
      %p165 = scmp.ne.s32.totalorder %s160, %s162
      %p166 = scmp.eq.s32.totalorder %s21, 0
      %p167 = por %p165, %p166
      %p168 = scmp.ne.s32.totalorder %s160, %s162
      %p169 = scmp.eq.s32.totalorder %s26, 1
      %p170 = por %p168, %p169
      %p171 = scmp.ne.s32.totalorder %s162, %s163
      %p172 = scmp.eq.s32.totalorder %s26, 0
      %p173 = por %p171, %p172
      %p174 = scmp.ne.s32.totalorder %s162, %s163
      %p175 = scmp.eq.s32.totalorder %s27, 1
      %p176 = por %p174, %p175
      %p178 = scmp.ne.s32.totalorder %s163, %s177
      %p179 = scmp.eq.s32.totalorder %s27, 0
      %p180 = por %p178, %p179
      %s182 = sadd.s32 %s181, 1
      %p185 = scmp.eq.s32.totalorder %s21, 1
      %p186 = scmp.ne.s32.totalorder %s181, %s183
      %p187 = scmp.eq.s32.totalorder %s21, 0
      %p188 = por %p186, %p187
      %p189 = scmp.ne.s32.totalorder %s181, %s183
      %p190 = scmp.eq.s32.totalorder %s26, 1
      %p191 = por %p189, %p190
      %p192 = scmp.ne.s32.totalorder %s183, %s184
      %p193 = scmp.eq.s32.totalorder %s26, 0
      %p194 = por %p192, %p193
      %p195 = scmp.ne.s32.totalorder %s183, %s184
      %p196 = scmp.eq.s32.totalorder %s27, 1
      %p197 = por %p195, %p196
      %p199 = scmp.ne.s32.totalorder %s184, %s198
      %p200 = scmp.eq.s32.totalorder %s27, 0
      %p201 = por %p199, %p200
      %s203 = sadd.s32 %s202, 1
      %p206 = scmp.eq.s32.totalorder %s21, 1
      %p207 = scmp.ne.s32.totalorder %s202, %s204
      %p208 = scmp.eq.s32.totalorder %s21, 0
      %p209 = por %p207, %p208
      %p210 = scmp.ne.s32.totalorder %s202, %s204
      %p211 = scmp.eq.s32.totalorder %s26, 1
      %p212 = por %p210, %p211
      %p213 = scmp.ne.s32.totalorder %s204, %s205
      %p214 = scmp.eq.s32.totalorder %s26, 0
      %p215 = por %p213, %p214
      %p216 = scmp.ne.s32.totalorder %s204, %s205
      %p217 = scmp.eq.s32.totalorder %s27, 1
      %p218 = por %p216, %p217
      %p220 = scmp.ne.s32.totalorder %s205, %s219
      %p221 = scmp.eq.s32.totalorder %s27, 0
      %p222 = por %p220, %p221
      %s224 = sadd.s32 %s223, 1
      %p227 = scmp.eq.s32.totalorder %s21, 1
      %p228 = scmp.ne.s32.totalorder %s223, %s225
      %p229 = scmp.eq.s32.totalorder %s21, 0
      %p230 = por %p228, %p229
      %p231 = scmp.ne.s32.totalorder %s223, %s225
      %p232 = scmp.eq.s32.totalorder %s26, 1
      %p233 = por %p231, %p232
      %p234 = scmp.ne.s32.totalorder %s225, %s226
      %p235 = scmp.eq.s32.totalorder %s26, 0
      %p236 = por %p234, %p235
      %p237 = scmp.ne.s32.totalorder %s225, %s226
      %p238 = scmp.eq.s32.totalorder %s27, 1
      %p239 = por %p237, %p238
      %p241 = scmp.ne.s32.totalorder %s226, %s240
      %p242 = scmp.eq.s32.totalorder %s27, 0
      %p243 = por %p241, %p242
      %s245 = sadd.s32 %s244, 1
      %p248 = scmp.eq.s32.totalorder %s21, 1
      %p249 = scmp.ne.s32.totalorder %s244, %s246
      %p250 = scmp.eq.s32.totalorder %s21, 0
      %p251 = por %p249, %p250
      %p252 = scmp.ne.s32.totalorder %s244, %s246
      %p253 = scmp.eq.s32.totalorder %s26, 1
      %p254 = por %p252, %p253
      %p255 = scmp.ne.s32.totalorder %s246, %s247
      %p256 = scmp.eq.s32.totalorder %s26, 0
      %p257 = por %p255, %p256
      %p258 = scmp.ne.s32.totalorder %s246, %s247
      %p259 = scmp.eq.s32.totalorder %s27, 1
      %p260 = por %p258, %p259
      %p262 = scmp.ne.s32.totalorder %s247, %s261
      %p263 = scmp.eq.s32.totalorder %s27, 0
      %p264 = por %p262, %p263
      %s266 = sadd.s32 %s265, 1
      %p269 = scmp.eq.s32.totalorder %s21, 1
      %p270 = scmp.ne.s32.totalorder %s265, %s267
      %p271 = scmp.eq.s32.totalorder %s21, 0
      %p272 = por %p270, %p271
      %p273 = scmp.ne.s32.totalorder %s265, %s267
      %p274 = scmp.eq.s32.totalorder %s26, 1
      %p275 = por %p273, %p274
      %p276 = scmp.ne.s32.totalorder %s267, %s268
      %p277 = scmp.eq.s32.totalorder %s26, 0
      %p278 = por %p276, %p277
      %p279 = scmp.ne.s32.totalorder %s267, %s268
      %p280 = scmp.eq.s32.totalorder %s27, 1
      %p281 = por %p279, %p280
      %p283 = scmp.ne.s32.totalorder %s268, %s282
      %p284 = scmp.eq.s32.totalorder %s27, 0
      %p285 = por %p283, %p284
      %s286 = ssub.s32 %s21, %s28
      %p287 = scmp.eq.s32.totalorder %s286, 0
      %s289 = sadd.s32 %s288, 1
      %s290 = scalar_select %p287, %s288, %s289
      %p293 = pneg %p287
      %p294 = scmp.eq.s32.totalorder %s21, 1
      %p295 = por %p293, %p294
      %p296 = scmp.ne.s32.totalorder %s288, %s291
      %p297 = scmp.eq.s32.totalorder %s21, 0
      %p298 = por %p296, %p297
      %p299 = scmp.ne.s32.totalorder %s288, %s291
      %p300 = scmp.eq.s32.totalorder %s26, 1
      %p301 = por %p299, %p300
      %p302 = scmp.ne.s32.totalorder %s291, %s292
      %p303 = scmp.eq.s32.totalorder %s26, 0
      %p304 = por %p302, %p303
      %p305 = scmp.ne.s32.totalorder %s291, %s292
      %p306 = scmp.eq.s32.totalorder %s27, 1
      %p307 = por %p305, %p306
      %p309 = scmp.ne.s32.totalorder %s292, %s308
      %p310 = scmp.eq.s32.totalorder %s27, 0
      %p311 = por %p309, %p310
      %p312 = scmp.le.s32.totalorder 1, %s21
      %p313 = scmp.lt.s32.totalorder %s21, 3
      %p314 = pnand %p312, %p313
      %p315 = pneg %p314
      // Predicated region
      $region9: #{tpu_custom_call.1} parent=5 // pred_check
        _
      $region10: #{tpu_custom_call.1} parent=5 // pred_check_branch
        %317 = sbr.rel (%p314) target = $region12
      $region11: #{tpu_custom_call.1} parent=5 // pred_region
        %s318 = ssub.s32 %s21, 1
        // Predicated region
        $region13: #{tpu_custom_call.1} parent=11 // pred_check
          %p319 = pneg %p68
        $region14: #{tpu_custom_call.1} parent=11 // pred_check_branch
          %321 = sbr.rel (%p319) target = $region16
        $region15: #{tpu_custom_call.1} parent=11 // pred_region
          _
        $region16: #{tpu_custom_call.1} parent=11 // pred_fallthru
          _
        // Predicated region
        $region17: #{tpu_custom_call.1} parent=11 // pred_check
          %p322 = pneg %p89
        $region18: #{tpu_custom_call.1} parent=11 // pred_check_branch
          %324 = sbr.rel (%p322) target = $region20
        $region19: #{tpu_custom_call.1} parent=11 // pred_region
          _
        $region20: #{tpu_custom_call.1} parent=11 // pred_fallthru
          _
        // Predicated region
        $region21: #{tpu_custom_call.1} parent=11 // pred_check
          %p325 = pneg %p110
        $region22: #{tpu_custom_call.1} parent=11 // pred_check_branch
          %327 = sbr.rel (%p325) target = $region24
        $region23: #{tpu_custom_call.1} parent=11 // pred_region
          _
        $region24: #{tpu_custom_call.1} parent=11 // pred_fallthru
          _
        // Predicated region
        $region25: #{tpu_custom_call.1} parent=11 // pred_check
          %p328 = pneg %p131
        $region26: #{tpu_custom_call.1} parent=11 // pred_check_branch
          %330 = sbr.rel (%p328) target = $region28
        $region27: #{tpu_custom_call.1} parent=11 // pred_region
          _
        $region28: #{tpu_custom_call.1} parent=11 // pred_fallthru
          _
        // Predicated region
        $region29: #{tpu_custom_call.1} parent=11 // pred_check
          %p331 = pneg %p152
        $region30: #{tpu_custom_call.1} parent=11 // pred_check_branch
          %333 = sbr.rel (%p331) target = $region32
        $region31: #{tpu_custom_call.1} parent=11 // pred_region
          _
        $region32: #{tpu_custom_call.1} parent=11 // pred_fallthru
          _
        // Predicated region
        $region33: #{tpu_custom_call.1} parent=11 // pred_check
          %p334 = pneg %p173
        $region34: #{tpu_custom_call.1} parent=11 // pred_check_branch
          %336 = sbr.rel (%p334) target = $region36
        $region35: #{tpu_custom_call.1} parent=11 // pred_region
          _
        $region36: #{tpu_custom_call.1} parent=11 // pred_fallthru
          _
        // Predicated region
        $region37: #{tpu_custom_call.1} parent=11 // pred_check
          %p337 = pneg %p194
        $region38: #{tpu_custom_call.1} parent=11 // pred_check_branch
          %339 = sbr.rel (%p337) target = $region40
        $region39: #{tpu_custom_call.1} parent=11 // pred_region
          _
        $region40: #{tpu_custom_call.1} parent=11 // pred_fallthru
          _
        // Predicated region
        $region41: #{tpu_custom_call.1} parent=11 // pred_check
          %p340 = pneg %p215
        $region42: #{tpu_custom_call.1} parent=11 // pred_check_branch
          %342 = sbr.rel (%p340) target = $region44
        $region43: #{tpu_custom_call.1} parent=11 // pred_region
          _
        $region44: #{tpu_custom_call.1} parent=11 // pred_fallthru
          _
        // Predicated region
        $region45: #{tpu_custom_call.1} parent=11 // pred_check
          %p343 = pneg %p236
        $region46: #{tpu_custom_call.1} parent=11 // pred_check_branch
          %345 = sbr.rel (%p343) target = $region48
        $region47: #{tpu_custom_call.1} parent=11 // pred_region
          _
        $region48: #{tpu_custom_call.1} parent=11 // pred_fallthru
          _
        // Predicated region
        $region49: #{tpu_custom_call.1} parent=11 // pred_check
          %p346 = pneg %p257
        $region50: #{tpu_custom_call.1} parent=11 // pred_check_branch
          %348 = sbr.rel (%p346) target = $region52
        $region51: #{tpu_custom_call.1} parent=11 // pred_region
          _
        $region52: #{tpu_custom_call.1} parent=11 // pred_fallthru
          _
        // Predicated region
        $region53: #{tpu_custom_call.1} parent=11 // pred_check
          %p349 = pneg %p278
        $region54: #{tpu_custom_call.1} parent=11 // pred_check_branch
          %351 = sbr.rel (%p349) target = $region56
        $region55: #{tpu_custom_call.1} parent=11 // pred_region
          _
        $region56: #{tpu_custom_call.1} parent=11 // pred_fallthru
          _
      $region12: #{tpu_custom_call.1} parent=5 // pred_fallthru
        _
      %p352 = scmp.lt.s32.totalorder %s21, 2
      // Predicated region
      $region57: #{tpu_custom_call.1} parent=5 // pred_check
        %p353 = pneg %p352
      $region58: #{tpu_custom_call.1} parent=5 // pred_check_branch
        %355 = sbr.rel (%p353) target = $region60
      $region59: #{tpu_custom_call.1} parent=5 // pred_region
        // Predicated region
        $region61: #{tpu_custom_call.1} parent=59 // pred_check
          %p356 = pneg %p41
        $region62: #{tpu_custom_call.1} parent=59 // pred_check_branch
          %358 = sbr.rel (%p356) target = $region64
        $region63: #{tpu_custom_call.1} parent=59 // pred_region
          %p359 = scmp.lt.s32.totalorder %s21, 1
          %s360 = scalar_select %p359, %s21, 1
          %s361 = smul.addr %s360, 32
          %s362 = smul.addr %s361, 8
          %s363 = scalar_lea.vmem %s0, %s362
        $region64: #{tpu_custom_call.1} parent=59 // pred_fallthru
          _
      $region60: #{tpu_custom_call.1} parent=5 // pred_fallthru
        _
      %p364 = scmp.le.s32.totalorder 1, %s21
      %p365 = scmp.lt.s32.totalorder %s21, 3
      %p366 = pnand %p364, %p365
      %p367 = pneg %p366
      // Predicated region
      $region65: #{tpu_custom_call.1} parent=5 // pred_check
        _
      $region66: #{tpu_custom_call.1} parent=5 // pred_check_branch
        %369 = sbr.rel (%p366) target = $region68
      $region67: #{tpu_custom_call.1} parent=5 // pred_region
        %s370 = ssub.s32 %s21, 1
        %p371 = scmp.lt.s32.totalorder %s26, 1
        %s372 = scalar_select %p371, %s26, 1
        %s373 = smul.addr %s372, 32
        %s374 = smul.addr %s373, 8
        %s375 = scalar_lea.vmem %s0, %s374
        %p376 = pneg %p47
        %p377 = pneg %p44
        %p378 = pneg %p68
        %p379 = pneg %p65
        %p380 = pneg %p89
        %p381 = pneg %p86
        %p382 = pneg %p110
        %p383 = pneg %p107
        %p384 = pneg %p131
        %p385 = pneg %p128
        %p386 = pneg %p152
        %p387 = pneg %p149
        %p388 = pneg %p173
        %p389 = pneg %p170
        %p390 = pneg %p194
        %p391 = pneg %p191
        %p392 = pneg %p215
        %p393 = pneg %p212
        %p394 = pneg %p236
        %p395 = pneg %p233
        %p396 = pneg %p257
        %p397 = pneg %p254
        %p398 = pneg %p278
        %p399 = pneg %p275
        %p400 = pneg %p304
        %p401 = pneg %p301
        %s402 = sand.u32 %s291, 1
        %s403 = scalar_lea.sflag [#allocation6], %s402
        %s404 = sand.u32 %s291, 1
        %s405 = smul.addr %s404, 2
        %s406 = scalar_lea.vmem [#allocation5], %s405
        %p407 = scmp.lt.s32.totalorder %s26, 1
        %s408 = scalar_select %p407, %s26, 1
        %s409 = smul.addr %s408, 32
        %s410 = smul.addr %s409, 8
        %s411 = scalar_lea.vmem %s0, %s410
        %vm412 = vcmask 261120
        %413 = vst.msk [vmem:[#allocation2] sm:$0xff] %vm412, 0.0
        %414 = vst.msk [vmem:[#allocation2 + $0x108] sm:$0xff] %vm412, 0.0
        %v415 = vld [vmem:[%s411] sm:$0xff]
        %v416 = vld [vmem:[%s411 + $0x8] sm:$0xff]
        %v417 = vld [vmem:[%s411 + $0x10] sm:$0xff]
        %v418 = vld [vmem:[%s411 + $0x18] sm:$0xff]
        %v419 = vld [vmem:[%s411 + $0x20] sm:$0xff]
        %v420 = vld [vmem:[%s411 + $0x28] sm:$0xff]
        %v421 = vld [vmem:[%s411 + $0x30] sm:$0xff]
        %v422 = vld [vmem:[%s411 + $0x38] sm:$0xff]
        %v423 = vld [vmem:[%s411 + $0x40] sm:$0xff]
        %v424 = vld [vmem:[%s411 + $0x48] sm:$0xff]
        %v425 = vld [vmem:[%s411 + $0x50] sm:$0xff]
        %v426 = vld [vmem:[%s411 + $0x58] sm:$0xff]
        %v427 = vld [vmem:[%s411 + $0x60] sm:$0xff]
        %v428 = vld [vmem:[%s411 + $0x68] sm:$0xff]
        %v429 = vld [vmem:[%s411 + $0x70] sm:$0xff]
        %v430 = vld [vmem:[%s411 + $0x78] sm:$0xff]
        %v431 = vld [vmem:[%s411 + $0x80] sm:$0xff]
        %v432 = vld [vmem:[%s411 + $0x88] sm:$0xff]
        %v433 = vld [vmem:[%s411 + $0x90] sm:$0xff]
        %v434 = vld [vmem:[%s411 + $0x98] sm:$0xff]
        %v435 = vld [vmem:[%s411 + $0xa0] sm:$0xff]
        %v436 = vld [vmem:[%s411 + $0xa8] sm:$0xff]
        %v437 = vld [vmem:[%s411 + $0xb0] sm:$0xff]
        %v438 = vld [vmem:[%s411 + $0xb8] sm:$0xff]
        %v439 = vld [vmem:[%s411 + $0xc0] sm:$0xff]
        %v440 = vld [vmem:[%s411 + $0xc8] sm:$0xff]
        %v441 = vld [vmem:[%s411 + $0xd0] sm:$0xff]
        %v442 = vld [vmem:[%s411 + $0xd8] sm:$0xff]
        %v443 = vld [vmem:[%s411 + $0xe0] sm:$0xff]
        %v444 = vld [vmem:[%s411 + $0xe8] sm:$0xff]
        %v445 = vld [vmem:[%s411 + $0xf0] sm:$0xff]
        %v446 = vld [vmem:[%s411 + $0xf8] sm:$0xff]
        %447 = vst.msk [vmem:[#allocation2 + $0x8] sm:$0xff] %vm412, %v415
        %448 = vst.msk [vmem:[#allocation2 + $0x10] sm:$0xff] %vm412, %v416
        %449 = vst.msk [vmem:[#allocation2 + $0x18] sm:$0xff] %vm412, %v417
        %450 = vst.msk [vmem:[#allocation2 + $0x20] sm:$0xff] %vm412, %v418
        %451 = vst.msk [vmem:[#allocation2 + $0x28] sm:$0xff] %vm412, %v419
        %452 = vst.msk [vmem:[#allocation2 + $0x30] sm:$0xff] %vm412, %v420
        %453 = vst.msk [vmem:[#allocation2 + $0x38] sm:$0xff] %vm412, %v421
        %454 = vst.msk [vmem:[#allocation2 + $0x40] sm:$0xff] %vm412, %v422
        %455 = vst.msk [vmem:[#allocation2 + $0x48] sm:$0xff] %vm412, %v423
        %456 = vst.msk [vmem:[#allocation2 + $0x50] sm:$0xff] %vm412, %v424
        %457 = vst.msk [vmem:[#allocation2 + $0x58] sm:$0xff] %vm412, %v425
        %458 = vst.msk [vmem:[#allocation2 + $0x60] sm:$0xff] %vm412, %v426
        %459 = vst.msk [vmem:[#allocation2 + $0x68] sm:$0xff] %vm412, %v427
        %460 = vst.msk [vmem:[#allocation2 + $0x70] sm:$0xff] %vm412, %v428
        %461 = vst.msk [vmem:[#allocation2 + $0x78] sm:$0xff] %vm412, %v429
        %462 = vst.msk [vmem:[#allocation2 + $0x80] sm:$0xff] %vm412, %v430
        %463 = vst.msk [vmem:[#allocation2 + $0x88] sm:$0xff] %vm412, %v431
        %464 = vst.msk [vmem:[#allocation2 + $0x90] sm:$0xff] %vm412, %v432
        %465 = vst.msk [vmem:[#allocation2 + $0x98] sm:$0xff] %vm412, %v433
        %466 = vst.msk [vmem:[#allocation2 + $0xa0] sm:$0xff] %vm412, %v434
        %467 = vst.msk [vmem:[#allocation2 + $0xa8] sm:$0xff] %vm412, %v435
        %468 = vst.msk [vmem:[#allocation2 + $0xb0] sm:$0xff] %vm412, %v436
        %469 = vst.msk [vmem:[#allocation2 + $0xb8] sm:$0xff] %vm412, %v437
        %470 = vst.msk [vmem:[#allocation2 + $0xc0] sm:$0xff] %vm412, %v438
        %471 = vst.msk [vmem:[#allocation2 + $0xc8] sm:$0xff] %vm412, %v439
        %472 = vst.msk [vmem:[#allocation2 + $0xd0] sm:$0xff] %vm412, %v440
        %473 = vst.msk [vmem:[#allocation2 + $0xd8] sm:$0xff] %vm412, %v441
        %474 = vst.msk [vmem:[#allocation2 + $0xe0] sm:$0xff] %vm412, %v442
        %475 = vst.msk [vmem:[#allocation2 + $0xe8] sm:$0xff] %vm412, %v443
        %476 = vst.msk [vmem:[#allocation2 + $0xf0] sm:$0xff] %vm412, %v444
        %477 = vst.msk [vmem:[#allocation2 + $0xf8] sm:$0xff] %vm412, %v445
        %478 = vst.msk [vmem:[#allocation2 + $0x100] sm:$0xff] %vm412, %v446
        %v479 = vld [vmem:[#allocation2 + $0x6] sm:$0xff]
        %v480 = vld [vmem:[#allocation2 + $0xe] sm:$0xff]
        %v481 = vld [vmem:[#allocation2 + $0x16] sm:$0xff]
        %v482 = vld [vmem:[#allocation2 + $0x1e] sm:$0xff]
        %v483 = vld [vmem:[#allocation2 + $0x26] sm:$0xff]
        %v484 = vld [vmem:[#allocation2 + $0x2e] sm:$0xff]
        %v485 = vld [vmem:[#allocation2 + $0x36] sm:$0xff]
        %v486 = vld [vmem:[#allocation2 + $0x3e] sm:$0xff]
        %v487 = vld [vmem:[#allocation2 + $0x46] sm:$0xff]
        %v488 = vld [vmem:[#allocation2 + $0x4e] sm:$0xff]
        %v489 = vld [vmem:[#allocation2 + $0x56] sm:$0xff]
        %v490 = vld [vmem:[#allocation2 + $0x5e] sm:$0xff]
        %v491 = vld [vmem:[#allocation2 + $0x66] sm:$0xff]
        %v492 = vld [vmem:[#allocation2 + $0x6e] sm:$0xff]
        %v493 = vld [vmem:[#allocation2 + $0x76] sm:$0xff]
        %v494 = vld [vmem:[#allocation2 + $0x7e] sm:$0xff]
        %v495 = vld [vmem:[#allocation2 + $0x86] sm:$0xff]
        %v496 = vld [vmem:[#allocation2 + $0x8e] sm:$0xff]
        %v497 = vld [vmem:[#allocation2 + $0x96] sm:$0xff]
        %v498 = vld [vmem:[#allocation2 + $0x9e] sm:$0xff]
        %v499 = vld [vmem:[#allocation2 + $0xa6] sm:$0xff]
        %v500 = vld [vmem:[#allocation2 + $0xae] sm:$0xff]
        %v501 = vld [vmem:[#allocation2 + $0xb6] sm:$0xff]
        %v502 = vld [vmem:[#allocation2 + $0xbe] sm:$0xff]
        %v503 = vld [vmem:[#allocation2 + $0xc6] sm:$0xff]
        %v504 = vld [vmem:[#allocation2 + $0xce] sm:$0xff]
        %v505 = vld [vmem:[#allocation2 + $0xd6] sm:$0xff]
        %v506 = vld [vmem:[#allocation2 + $0xde] sm:$0xff]
        %v507 = vld [vmem:[#allocation2 + $0xe6] sm:$0xff]
        %v508 = vld [vmem:[#allocation2 + $0xee] sm:$0xff]
        %v509 = vld [vmem:[#allocation2 + $0xf6] sm:$0xff]
        %v510 = vld [vmem:[#allocation2 + $0xfe] sm:$0xff]
        %511 = vst.msk [vmem:[#allocation3] sm:$0xff] %vm412, %v479
        %512 = vst.msk [vmem:[#allocation3 + $0x10] sm:$0xff] %vm412, %v480
        %513 = vst.msk [vmem:[#allocation3 + $0x20] sm:$0xff] %vm412, %v481
        %514 = vst.msk [vmem:[#allocation3 + $0x30] sm:$0xff] %vm412, %v482
        %515 = vst.msk [vmem:[#allocation3 + $0x40] sm:$0xff] %vm412, %v483
        %516 = vst.msk [vmem:[#allocation3 + $0x50] sm:$0xff] %vm412, %v484
        %517 = vst.msk [vmem:[#allocation3 + $0x60] sm:$0xff] %vm412, %v485
        %518 = vst.msk [vmem:[#allocation3 + $0x70] sm:$0xff] %vm412, %v486
        %519 = vst.msk [vmem:[#allocation3 + $0x80] sm:$0xff] %vm412, %v487
        %520 = vst.msk [vmem:[#allocation3 + $0x90] sm:$0xff] %vm412, %v488
        %521 = vst.msk [vmem:[#allocation3 + $0xa0] sm:$0xff] %vm412, %v489
        %522 = vst.msk [vmem:[#allocation3 + $0xb0] sm:$0xff] %vm412, %v490
        %523 = vst.msk [vmem:[#allocation3 + $0xc0] sm:$0xff] %vm412, %v491
        %524 = vst.msk [vmem:[#allocation3 + $0xd0] sm:$0xff] %vm412, %v492
        %525 = vst.msk [vmem:[#allocation3 + $0xe0] sm:$0xff] %vm412, %v493
        %526 = vst.msk [vmem:[#allocation3 + $0xf0] sm:$0xff] %vm412, %v494
        %527 = vst.msk [vmem:[#allocation3 + $0x100] sm:$0xff] %vm412, %v495
        %528 = vst.msk [vmem:[#allocation3 + $0x110] sm:$0xff] %vm412, %v496
        %529 = vst.msk [vmem:[#allocation3 + $0x120] sm:$0xff] %vm412, %v497
        %530 = vst.msk [vmem:[#allocation3 + $0x130] sm:$0xff] %vm412, %v498
        %531 = vst.msk [vmem:[#allocation3 + $0x140] sm:$0xff] %vm412, %v499
        %532 = vst.msk [vmem:[#allocation3 + $0x150] sm:$0xff] %vm412, %v500
        %533 = vst.msk [vmem:[#allocation3 + $0x160] sm:$0xff] %vm412, %v501
        %534 = vst.msk [vmem:[#allocation3 + $0x170] sm:$0xff] %vm412, %v502
        %535 = vst.msk [vmem:[#allocation3 + $0x180] sm:$0xff] %vm412, %v503
        %536 = vst.msk [vmem:[#allocation3 + $0x190] sm:$0xff] %vm412, %v504
        %537 = vst.msk [vmem:[#allocation3 + $0x1a0] sm:$0xff] %vm412, %v505
        %538 = vst.msk [vmem:[#allocation3 + $0x1b0] sm:$0xff] %vm412, %v506
        %539 = vst.msk [vmem:[#allocation3 + $0x1c0] sm:$0xff] %vm412, %v507
        %540 = vst.msk [vmem:[#allocation3 + $0x1d0] sm:$0xff] %vm412, %v508
        %541 = vst.msk [vmem:[#allocation3 + $0x1e0] sm:$0xff] %vm412, %v509
        %542 = vst.msk [vmem:[#allocation3 + $0x1f0] sm:$0xff] %vm412, %v510
        %v543 = vld [vmem:[#allocation2 + $0x7] sm:$0xff]
        %v544 = vld [vmem:[#allocation2 + $0xf] sm:$0xff]
        %v545 = vld [vmem:[#allocation2 + $0x17] sm:$0xff]
        %v546 = vld [vmem:[#allocation2 + $0x1f] sm:$0xff]
        %v547 = vld [vmem:[#allocation2 + $0x27] sm:$0xff]
        %v548 = vld [vmem:[#allocation2 + $0x2f] sm:$0xff]
        %v549 = vld [vmem:[#allocation2 + $0x37] sm:$0xff]
        %v550 = vld [vmem:[#allocation2 + $0x3f] sm:$0xff]
        %v551 = vld [vmem:[#allocation2 + $0x47] sm:$0xff]
        %v552 = vld [vmem:[#allocation2 + $0x4f] sm:$0xff]
        %v553 = vld [vmem:[#allocation2 + $0x57] sm:$0xff]
        %v554 = vld [vmem:[#allocation2 + $0x5f] sm:$0xff]
        %v555 = vld [vmem:[#allocation2 + $0x67] sm:$0xff]
        %v556 = vld [vmem:[#allocation2 + $0x6f] sm:$0xff]
        %v557 = vld [vmem:[#allocation2 + $0x77] sm:$0xff]
        %v558 = vld [vmem:[#allocation2 + $0x7f] sm:$0xff]
        %v559 = vld [vmem:[#allocation2 + $0x87] sm:$0xff]
        %v560 = vld [vmem:[#allocation2 + $0x8f] sm:$0xff]
        %v561 = vld [vmem:[#allocation2 + $0x97] sm:$0xff]
        %v562 = vld [vmem:[#allocation2 + $0x9f] sm:$0xff]
        %v563 = vld [vmem:[#allocation2 + $0xa7] sm:$0xff]
        %v564 = vld [vmem:[#allocation2 + $0xaf] sm:$0xff]
        %v565 = vld [vmem:[#allocation2 + $0xb7] sm:$0xff]
        %v566 = vld [vmem:[#allocation2 + $0xbf] sm:$0xff]
        %v567 = vld [vmem:[#allocation2 + $0xc7] sm:$0xff]
        %v568 = vld [vmem:[#allocation2 + $0xcf] sm:$0xff]
        %v569 = vld [vmem:[#allocation2 + $0xd7] sm:$0xff]
        %v570 = vld [vmem:[#allocation2 + $0xdf] sm:$0xff]
        %v571 = vld [vmem:[#allocation2 + $0xe7] sm:$0xff]
        %v572 = vld [vmem:[#allocation2 + $0xef] sm:$0xff]
        %v573 = vld [vmem:[#allocation2 + $0xf7] sm:$0xff]
        %v574 = vld [vmem:[#allocation2 + $0xff] sm:$0xff]
        %607 = vrot.lane.b32.xlu0 %v543, 32
        %v608 = vpop.permute.xlu0 %607
        %609 = vrot.lane.b32.xlu0 %v544, 32
        %v610 = vpop.permute.xlu0 %609
        %611 = vrot.lane.b32.xlu0 %v545, 32
        %v612 = vpop.permute.xlu0 %611
        %613 = vrot.lane.b32.xlu0 %v546, 32
        %v614 = vpop.permute.xlu0 %613
        %615 = vrot.lane.b32.xlu0 %v547, 32
        %v616 = vpop.permute.xlu0 %615
        %617 = vrot.lane.b32.xlu0 %v548, 32
        %v618 = vpop.permute.xlu0 %617
        %619 = vrot.lane.b32.xlu0 %v549, 32
        %v620 = vpop.permute.xlu0 %619
        %621 = vrot.lane.b32.xlu0 %v550, 32
        %v622 = vpop.permute.xlu0 %621
        %623 = vrot.lane.b32.xlu0 %v551, 32
        %v624 = vpop.permute.xlu0 %623
        %625 = vrot.lane.b32.xlu0 %v552, 32
        %v626 = vpop.permute.xlu0 %625
        %627 = vrot.lane.b32.xlu0 %v553, 32
        %v628 = vpop.permute.xlu0 %627
        %629 = vrot.lane.b32.xlu0 %v554, 32
        %v630 = vpop.permute.xlu0 %629
        %631 = vrot.lane.b32.xlu0 %v555, 32
        %v632 = vpop.permute.xlu0 %631
        %633 = vrot.lane.b32.xlu0 %v556, 32
        %v634 = vpop.permute.xlu0 %633
        %635 = vrot.lane.b32.xlu0 %v557, 32
        %v636 = vpop.permute.xlu0 %635
        %637 = vrot.lane.b32.xlu0 %v558, 32
        %v638 = vpop.permute.xlu0 %637
        %639 = vrot.lane.b32.xlu0 %v559, 32
        %v640 = vpop.permute.xlu0 %639
        %641 = vrot.lane.b32.xlu0 %v560, 32
        %v642 = vpop.permute.xlu0 %641
        %643 = vrot.lane.b32.xlu0 %v561, 32
        %v644 = vpop.permute.xlu0 %643
        %645 = vrot.lane.b32.xlu0 %v562, 32
        %v646 = vpop.permute.xlu0 %645
        %647 = vrot.lane.b32.xlu0 %v563, 32
        %v648 = vpop.permute.xlu0 %647
        %649 = vrot.lane.b32.xlu0 %v564, 32
        %v650 = vpop.permute.xlu0 %649
        %651 = vrot.lane.b32.xlu0 %v565, 32
        %v652 = vpop.permute.xlu0 %651
        %653 = vrot.lane.b32.xlu0 %v566, 32
        %v654 = vpop.permute.xlu0 %653
        %655 = vrot.lane.b32.xlu0 %v567, 32
        %v656 = vpop.permute.xlu0 %655
        %657 = vrot.lane.b32.xlu0 %v568, 32
        %v658 = vpop.permute.xlu0 %657
        %659 = vrot.lane.b32.xlu0 %v569, 32
        %v660 = vpop.permute.xlu0 %659
        %661 = vrot.lane.b32.xlu0 %v570, 32
        %v662 = vpop.permute.xlu0 %661
        %663 = vrot.lane.b32.xlu0 %v571, 32
        %v664 = vpop.permute.xlu0 %663
        %665 = vrot.lane.b32.xlu0 %v572, 32
        %v666 = vpop.permute.xlu0 %665
        %667 = vrot.lane.b32.xlu0 %v573, 32
        %v668 = vpop.permute.xlu0 %667
        %669 = vrot.lane.b32.xlu0 %v574, 32
        %v670 = vpop.permute.xlu0 %669
        %vm703 = vcmask 523520
        %704 = vst.msk [vmem:[#allocation3] sm:$0xff] %vm703, %v608
        %705 = vst.msk [vmem:[#allocation3 + $0x10] sm:$0xff] %vm703, %v610
        %706 = vst.msk [vmem:[#allocation3 + $0x20] sm:$0xff] %vm703, %v612
        %707 = vst.msk [vmem:[#allocation3 + $0x30] sm:$0xff] %vm703, %v614
        %708 = vst.msk [vmem:[#allocation3 + $0x40] sm:$0xff] %vm703, %v616
        %709 = vst.msk [vmem:[#allocation3 + $0x50] sm:$0xff] %vm703, %v618
        %710 = vst.msk [vmem:[#allocation3 + $0x60] sm:$0xff] %vm703, %v620
        %711 = vst.msk [vmem:[#allocation3 + $0x70] sm:$0xff] %vm703, %v622
        %712 = vst.msk [vmem:[#allocation3 + $0x80] sm:$0xff] %vm703, %v624
        %713 = vst.msk [vmem:[#allocation3 + $0x90] sm:$0xff] %vm703, %v626
        %714 = vst.msk [vmem:[#allocation3 + $0xa0] sm:$0xff] %vm703, %v628
        %715 = vst.msk [vmem:[#allocation3 + $0xb0] sm:$0xff] %vm703, %v630
        %716 = vst.msk [vmem:[#allocation3 + $0xc0] sm:$0xff] %vm703, %v632
        %717 = vst.msk [vmem:[#allocation3 + $0xd0] sm:$0xff] %vm703, %v634
        %718 = vst.msk [vmem:[#allocation3 + $0xe0] sm:$0xff] %vm703, %v636
        %719 = vst.msk [vmem:[#allocation3 + $0xf0] sm:$0xff] %vm703, %v638
        %720 = vst.msk [vmem:[#allocation3 + $0x100] sm:$0xff] %vm703, %v640
        %721 = vst.msk [vmem:[#allocation3 + $0x110] sm:$0xff] %vm703, %v642
        %722 = vst.msk [vmem:[#allocation3 + $0x120] sm:$0xff] %vm703, %v644
        %723 = vst.msk [vmem:[#allocation3 + $0x130] sm:$0xff] %vm703, %v646
        %724 = vst.msk [vmem:[#allocation3 + $0x140] sm:$0xff] %vm703, %v648
        %725 = vst.msk [vmem:[#allocation3 + $0x150] sm:$0xff] %vm703, %v650
        %726 = vst.msk [vmem:[#allocation3 + $0x160] sm:$0xff] %vm703, %v652
        %727 = vst.msk [vmem:[#allocation3 + $0x170] sm:$0xff] %vm703, %v654
        %728 = vst.msk [vmem:[#allocation3 + $0x180] sm:$0xff] %vm703, %v656
        %729 = vst.msk [vmem:[#allocation3 + $0x190] sm:$0xff] %vm703, %v658
        %730 = vst.msk [vmem:[#allocation3 + $0x1a0] sm:$0xff] %vm703, %v660
        %731 = vst.msk [vmem:[#allocation3 + $0x1b0] sm:$0xff] %vm703, %v662
        %732 = vst.msk [vmem:[#allocation3 + $0x1c0] sm:$0xff] %vm703, %v664
        %733 = vst.msk [vmem:[#allocation3 + $0x1d0] sm:$0xff] %vm703, %v666
        %734 = vst.msk [vmem:[#allocation3 + $0x1e0] sm:$0xff] %vm703, %v668
        %735 = vst.msk [vmem:[#allocation3 + $0x1f0] sm:$0xff] %vm703, %v670
        %v736 = vld [vmem:[#allocation2 + $0x8] sm:$0xff]
        %v737 = vld [vmem:[#allocation2 + $0x10] sm:$0xff]
        %v738 = vld [vmem:[#allocation2 + $0x18] sm:$0xff]
        %v739 = vld [vmem:[#allocation2 + $0x20] sm:$0xff]
        %v740 = vld [vmem:[#allocation2 + $0x28] sm:$0xff]
        %v741 = vld [vmem:[#allocation2 + $0x30] sm:$0xff]
        %v742 = vld [vmem:[#allocation2 + $0x38] sm:$0xff]
        %v743 = vld [vmem:[#allocation2 + $0x40] sm:$0xff]
        %v744 = vld [vmem:[#allocation2 + $0x48] sm:$0xff]
        %v745 = vld [vmem:[#allocation2 + $0x50] sm:$0xff]
        %v746 = vld [vmem:[#allocation2 + $0x58] sm:$0xff]
        %v747 = vld [vmem:[#allocation2 + $0x60] sm:$0xff]
        %v748 = vld [vmem:[#allocation2 + $0x68] sm:$0xff]
        %v749 = vld [vmem:[#allocation2 + $0x70] sm:$0xff]
        %v750 = vld [vmem:[#allocation2 + $0x78] sm:$0xff]
        %v751 = vld [vmem:[#allocation2 + $0x80] sm:$0xff]
        %v752 = vld [vmem:[#allocation2 + $0x88] sm:$0xff]
        %v753 = vld [vmem:[#allocation2 + $0x90] sm:$0xff]
        %v754 = vld [vmem:[#allocation2 + $0x98] sm:$0xff]
        %v755 = vld [vmem:[#allocation2 + $0xa0] sm:$0xff]
        %v756 = vld [vmem:[#allocation2 + $0xa8] sm:$0xff]
        %v757 = vld [vmem:[#allocation2 + $0xb0] sm:$0xff]
        %v758 = vld [vmem:[#allocation2 + $0xb8] sm:$0xff]
        %v759 = vld [vmem:[#allocation2 + $0xc0] sm:$0xff]
        %v760 = vld [vmem:[#allocation2 + $0xc8] sm:$0xff]
        %v761 = vld [vmem:[#allocation2 + $0xd0] sm:$0xff]
        %v762 = vld [vmem:[#allocation2 + $0xd8] sm:$0xff]
        %v763 = vld [vmem:[#allocation2 + $0xe0] sm:$0xff]
        %v764 = vld [vmem:[#allocation2 + $0xe8] sm:$0xff]
        %v765 = vld [vmem:[#allocation2 + $0xf0] sm:$0xff]
        %v766 = vld [vmem:[#allocation2 + $0xf8] sm:$0xff]
        %v767 = vld [vmem:[#allocation2 + $0x100] sm:$0xff]
        %800 = vrot.lane.b32.xlu0 %v736, 64
        %v801 = vpop.permute.xlu0 %800
        %802 = vrot.lane.b32.xlu0 %v737, 64
        %v803 = vpop.permute.xlu0 %802
        %804 = vrot.lane.b32.xlu0 %v738, 64
        %v805 = vpop.permute.xlu0 %804
        %806 = vrot.lane.b32.xlu0 %v739, 64
        %v807 = vpop.permute.xlu0 %806
        %808 = vrot.lane.b32.xlu0 %v740, 64
        %v809 = vpop.permute.xlu0 %808
        %810 = vrot.lane.b32.xlu0 %v741, 64
        %v811 = vpop.permute.xlu0 %810
        %812 = vrot.lane.b32.xlu0 %v742, 64
        %v813 = vpop.permute.xlu0 %812
        %814 = vrot.lane.b32.xlu0 %v743, 64
        %v815 = vpop.permute.xlu0 %814
        %816 = vrot.lane.b32.xlu0 %v744, 64
        %v817 = vpop.permute.xlu0 %816
        %818 = vrot.lane.b32.xlu0 %v745, 64
        %v819 = vpop.permute.xlu0 %818
        %820 = vrot.lane.b32.xlu0 %v746, 64
        %v821 = vpop.permute.xlu0 %820
        %822 = vrot.lane.b32.xlu0 %v747, 64
        %v823 = vpop.permute.xlu0 %822
        %824 = vrot.lane.b32.xlu0 %v748, 64
        %v825 = vpop.permute.xlu0 %824
        %826 = vrot.lane.b32.xlu0 %v749, 64
        %v827 = vpop.permute.xlu0 %826
        %828 = vrot.lane.b32.xlu0 %v750, 64
        %v829 = vpop.permute.xlu0 %828
        %830 = vrot.lane.b32.xlu0 %v751, 64
        %v831 = vpop.permute.xlu0 %830
        %832 = vrot.lane.b32.xlu0 %v752, 64
        %v833 = vpop.permute.xlu0 %832
        %834 = vrot.lane.b32.xlu0 %v753, 64
        %v835 = vpop.permute.xlu0 %834
        %836 = vrot.lane.b32.xlu0 %v754, 64
        %v837 = vpop.permute.xlu0 %836
        %838 = vrot.lane.b32.xlu0 %v755, 64
        %v839 = vpop.permute.xlu0 %838
        %840 = vrot.lane.b32.xlu0 %v756, 64
        %v841 = vpop.permute.xlu0 %840
        %842 = vrot.lane.b32.xlu0 %v757, 64
        %v843 = vpop.permute.xlu0 %842
        %844 = vrot.lane.b32.xlu0 %v758, 64
        %v845 = vpop.permute.xlu0 %844
        %846 = vrot.lane.b32.xlu0 %v759, 64
        %v847 = vpop.permute.xlu0 %846
        %848 = vrot.lane.b32.xlu0 %v760, 64
        %v849 = vpop.permute.xlu0 %848
        %850 = vrot.lane.b32.xlu0 %v761, 64
        %v851 = vpop.permute.xlu0 %850
        %852 = vrot.lane.b32.xlu0 %v762, 64
        %v853 = vpop.permute.xlu0 %852
        %854 = vrot.lane.b32.xlu0 %v763, 64
        %v855 = vpop.permute.xlu0 %854
        %856 = vrot.lane.b32.xlu0 %v764, 64
        %v857 = vpop.permute.xlu0 %856
        %858 = vrot.lane.b32.xlu0 %v765, 64
        %v859 = vpop.permute.xlu0 %858
        %860 = vrot.lane.b32.xlu0 %v766, 64
        %v861 = vpop.permute.xlu0 %860
        %862 = vrot.lane.b32.xlu0 %v767, 64
        %v863 = vpop.permute.xlu0 %862
        %vm896 = vcmask 785920
        %897 = vst.msk [vmem:[#allocation3] sm:$0xff] %vm896, %v801
        %898 = vst.msk [vmem:[#allocation3 + $0x10] sm:$0xff] %vm896, %v803
        %899 = vst.msk [vmem:[#allocation3 + $0x20] sm:$0xff] %vm896, %v805
        %900 = vst.msk [vmem:[#allocation3 + $0x30] sm:$0xff] %vm896, %v807
        %901 = vst.msk [vmem:[#allocation3 + $0x40] sm:$0xff] %vm896, %v809
        %902 = vst.msk [vmem:[#allocation3 + $0x50] sm:$0xff] %vm896, %v811
        %903 = vst.msk [vmem:[#allocation3 + $0x60] sm:$0xff] %vm896, %v813
        %904 = vst.msk [vmem:[#allocation3 + $0x70] sm:$0xff] %vm896, %v815
        %905 = vst.msk [vmem:[#allocation3 + $0x80] sm:$0xff] %vm896, %v817
        %906 = vst.msk [vmem:[#allocation3 + $0x90] sm:$0xff] %vm896, %v819
        %907 = vst.msk [vmem:[#allocation3 + $0xa0] sm:$0xff] %vm896, %v821
        %908 = vst.msk [vmem:[#allocation3 + $0xb0] sm:$0xff] %vm896, %v823
        %909 = vst.msk [vmem:[#allocation3 + $0xc0] sm:$0xff] %vm896, %v825
        %910 = vst.msk [vmem:[#allocation3 + $0xd0] sm:$0xff] %vm896, %v827
        %911 = vst.msk [vmem:[#allocation3 + $0xe0] sm:$0xff] %vm896, %v829
        %912 = vst.msk [vmem:[#allocation3 + $0xf0] sm:$0xff] %vm896, %v831
        %913 = vst.msk [vmem:[#allocation3 + $0x100] sm:$0xff] %vm896, %v833
        %914 = vst.msk [vmem:[#allocation3 + $0x110] sm:$0xff] %vm896, %v835
        %915 = vst.msk [vmem:[#allocation3 + $0x120] sm:$0xff] %vm896, %v837
        %916 = vst.msk [vmem:[#allocation3 + $0x130] sm:$0xff] %vm896, %v839
        %917 = vst.msk [vmem:[#allocation3 + $0x140] sm:$0xff] %vm896, %v841
        %918 = vst.msk [vmem:[#allocation3 + $0x150] sm:$0xff] %vm896, %v843
        %919 = vst.msk [vmem:[#allocation3 + $0x160] sm:$0xff] %vm896, %v845
        %920 = vst.msk [vmem:[#allocation3 + $0x170] sm:$0xff] %vm896, %v847
        %921 = vst.msk [vmem:[#allocation3 + $0x180] sm:$0xff] %vm896, %v849
        %922 = vst.msk [vmem:[#allocation3 + $0x190] sm:$0xff] %vm896, %v851
        %923 = vst.msk [vmem:[#allocation3 + $0x1a0] sm:$0xff] %vm896, %v853
        %924 = vst.msk [vmem:[#allocation3 + $0x1b0] sm:$0xff] %vm896, %v855
        %925 = vst.msk [vmem:[#allocation3 + $0x1c0] sm:$0xff] %vm896, %v857
        %926 = vst.msk [vmem:[#allocation3 + $0x1d0] sm:$0xff] %vm896, %v859
        %927 = vst.msk [vmem:[#allocation3 + $0x1e0] sm:$0xff] %vm896, %v861
        %928 = vst.msk [vmem:[#allocation3 + $0x1f0] sm:$0xff] %vm896, %v863
        %v929 = vld [vmem:[#allocation2 + $0x9] sm:$0xff]
        %v930 = vld [vmem:[#allocation2 + $0x11] sm:$0xff]
        %v931 = vld [vmem:[#allocation2 + $0x19] sm:$0xff]
        %v932 = vld [vmem:[#allocation2 + $0x21] sm:$0xff]
        %v933 = vld [vmem:[#allocation2 + $0x29] sm:$0xff]
        %v934 = vld [vmem:[#allocation2 + $0x31] sm:$0xff]
        %v935 = vld [vmem:[#allocation2 + $0x39] sm:$0xff]
        %v936 = vld [vmem:[#allocation2 + $0x41] sm:$0xff]
        %v937 = vld [vmem:[#allocation2 + $0x49] sm:$0xff]
        %v938 = vld [vmem:[#allocation2 + $0x51] sm:$0xff]
        %v939 = vld [vmem:[#allocation2 + $0x59] sm:$0xff]
        %v940 = vld [vmem:[#allocation2 + $0x61] sm:$0xff]
        %v941 = vld [vmem:[#allocation2 + $0x69] sm:$0xff]
        %v942 = vld [vmem:[#allocation2 + $0x71] sm:$0xff]
        %v943 = vld [vmem:[#allocation2 + $0x79] sm:$0xff]
        %v944 = vld [vmem:[#allocation2 + $0x81] sm:$0xff]
        %v945 = vld [vmem:[#allocation2 + $0x89] sm:$0xff]
        %v946 = vld [vmem:[#allocation2 + $0x91] sm:$0xff]
        %v947 = vld [vmem:[#allocation2 + $0x99] sm:$0xff]
        %v948 = vld [vmem:[#allocation2 + $0xa1] sm:$0xff]
        %v949 = vld [vmem:[#allocation2 + $0xa9] sm:$0xff]
        %v950 = vld [vmem:[#allocation2 + $0xb1] sm:$0xff]
        %v951 = vld [vmem:[#allocation2 + $0xb9] sm:$0xff]
        %v952 = vld [vmem:[#allocation2 + $0xc1] sm:$0xff]
        %v953 = vld [vmem:[#allocation2 + $0xc9] sm:$0xff]
        %v954 = vld [vmem:[#allocation2 + $0xd1] sm:$0xff]
        %v955 = vld [vmem:[#allocation2 + $0xd9] sm:$0xff]
        %v956 = vld [vmem:[#allocation2 + $0xe1] sm:$0xff]
        %v957 = vld [vmem:[#allocation2 + $0xe9] sm:$0xff]
        %v958 = vld [vmem:[#allocation2 + $0xf1] sm:$0xff]
        %v959 = vld [vmem:[#allocation2 + $0xf9] sm:$0xff]
        %v960 = vld [vmem:[#allocation2 + $0x101] sm:$0xff]
        %993 = vrot.lane.b32.xlu0 %v929, 96
        %v994 = vpop.permute.xlu0 %993
        %995 = vrot.lane.b32.xlu0 %v930, 96
        %v996 = vpop.permute.xlu0 %995
        %997 = vrot.lane.b32.xlu0 %v931, 96
        %v998 = vpop.permute.xlu0 %997
        %999 = vrot.lane.b32.xlu0 %v932, 96
        %v1000 = vpop.permute.xlu0 %999
        %1001 = vrot.lane.b32.xlu0 %v933, 96
        %v1002 = vpop.permute.xlu0 %1001
        %1003 = vrot.lane.b32.xlu0 %v934, 96
        %v1004 = vpop.permute.xlu0 %1003
        %1005 = vrot.lane.b32.xlu0 %v935, 96
        %v1006 = vpop.permute.xlu0 %1005
        %1007 = vrot.lane.b32.xlu0 %v936, 96
        %v1008 = vpop.permute.xlu0 %1007
        %1009 = vrot.lane.b32.xlu0 %v937, 96
        %v1010 = vpop.permute.xlu0 %1009
        %1011 = vrot.lane.b32.xlu0 %v938, 96
        %v1012 = vpop.permute.xlu0 %1011
        %1013 = vrot.lane.b32.xlu0 %v939, 96
        %v1014 = vpop.permute.xlu0 %1013
        %1015 = vrot.lane.b32.xlu0 %v940, 96
        %v1016 = vpop.permute.xlu0 %1015
        %1017 = vrot.lane.b32.xlu0 %v941, 96
        %v1018 = vpop.permute.xlu0 %1017
        %1019 = vrot.lane.b32.xlu0 %v942, 96
        %v1020 = vpop.permute.xlu0 %1019
        %1021 = vrot.lane.b32.xlu0 %v943, 96
        %v1022 = vpop.permute.xlu0 %1021
        %1023 = vrot.lane.b32.xlu0 %v944, 96
        %v1024 = vpop.permute.xlu0 %1023
        %1025 = vrot.lane.b32.xlu0 %v945, 96
        %v1026 = vpop.permute.xlu0 %1025
        %1027 = vrot.lane.b32.xlu0 %v946, 96
        %v1028 = vpop.permute.xlu0 %1027
        %1029 = vrot.lane.b32.xlu0 %v947, 96
        %v1030 = vpop.permute.xlu0 %1029
        %1031 = vrot.lane.b32.xlu0 %v948, 96
        %v1032 = vpop.permute.xlu0 %1031
        %1033 = vrot.lane.b32.xlu0 %v949, 96
        %v1034 = vpop.permute.xlu0 %1033
        %1035 = vrot.lane.b32.xlu0 %v950, 96
        %v1036 = vpop.permute.xlu0 %1035
        %1037 = vrot.lane.b32.xlu0 %v951, 96
        %v1038 = vpop.permute.xlu0 %1037
        %1039 = vrot.lane.b32.xlu0 %v952, 96
        %v1040 = vpop.permute.xlu0 %1039
        %1041 = vrot.lane.b32.xlu0 %v953, 96
        %v1042 = vpop.permute.xlu0 %1041
        %1043 = vrot.lane.b32.xlu0 %v954, 96
        %v1044 = vpop.permute.xlu0 %1043
        %1045 = vrot.lane.b32.xlu0 %v955, 96
        %v1046 = vpop.permute.xlu0 %1045
        %1047 = vrot.lane.b32.xlu0 %v956, 96
        %v1048 = vpop.permute.xlu0 %1047
        %1049 = vrot.lane.b32.xlu0 %v957, 96
        %v1050 = vpop.permute.xlu0 %1049
        %1051 = vrot.lane.b32.xlu0 %v958, 96
        %v1052 = vpop.permute.xlu0 %1051
        %1053 = vrot.lane.b32.xlu0 %v959, 96
        %v1054 = vpop.permute.xlu0 %1053
        %1055 = vrot.lane.b32.xlu0 %v960, 96
        %v1056 = vpop.permute.xlu0 %1055
        %vm1089 = vcmask 1048320
        %1090 = vst.msk [vmem:[#allocation3] sm:$0xff] %vm1089, %v994
        %1091 = vst.msk [vmem:[#allocation3 + $0x10] sm:$0xff] %vm1089, %v996
        %1092 = vst.msk [vmem:[#allocation3 + $0x20] sm:$0xff] %vm1089, %v998
        %1093 = vst.msk [vmem:[#allocation3 + $0x30] sm:$0xff] %vm1089, %v1000
        %1094 = vst.msk [vmem:[#allocation3 + $0x40] sm:$0xff] %vm1089, %v1002
        %1095 = vst.msk [vmem:[#allocation3 + $0x50] sm:$0xff] %vm1089, %v1004
        %1096 = vst.msk [vmem:[#allocation3 + $0x60] sm:$0xff] %vm1089, %v1006
        %1097 = vst.msk [vmem:[#allocation3 + $0x70] sm:$0xff] %vm1089, %v1008
        %1098 = vst.msk [vmem:[#allocation3 + $0x80] sm:$0xff] %vm1089, %v1010
        %1099 = vst.msk [vmem:[#allocation3 + $0x90] sm:$0xff] %vm1089, %v1012
        %1100 = vst.msk [vmem:[#allocation3 + $0xa0] sm:$0xff] %vm1089, %v1014
        %1101 = vst.msk [vmem:[#allocation3 + $0xb0] sm:$0xff] %vm1089, %v1016
        %1102 = vst.msk [vmem:[#allocation3 + $0xc0] sm:$0xff] %vm1089, %v1018
        %1103 = vst.msk [vmem:[#allocation3 + $0xd0] sm:$0xff] %vm1089, %v1020
        %1104 = vst.msk [vmem:[#allocation3 + $0xe0] sm:$0xff] %vm1089, %v1022
        %1105 = vst.msk [vmem:[#allocation3 + $0xf0] sm:$0xff] %vm1089, %v1024
        %1106 = vst.msk [vmem:[#allocation3 + $0x100] sm:$0xff] %vm1089, %v1026
        %1107 = vst.msk [vmem:[#allocation3 + $0x110] sm:$0xff] %vm1089, %v1028
        %1108 = vst.msk [vmem:[#allocation3 + $0x120] sm:$0xff] %vm1089, %v1030
        %1109 = vst.msk [vmem:[#allocation3 + $0x130] sm:$0xff] %vm1089, %v1032
        %1110 = vst.msk [vmem:[#allocation3 + $0x140] sm:$0xff] %vm1089, %v1034
        %1111 = vst.msk [vmem:[#allocation3 + $0x150] sm:$0xff] %vm1089, %v1036
        %1112 = vst.msk [vmem:[#allocation3 + $0x160] sm:$0xff] %vm1089, %v1038
        %1113 = vst.msk [vmem:[#allocation3 + $0x170] sm:$0xff] %vm1089, %v1040
        %1114 = vst.msk [vmem:[#allocation3 + $0x180] sm:$0xff] %vm1089, %v1042
        %1115 = vst.msk [vmem:[#allocation3 + $0x190] sm:$0xff] %vm1089, %v1044
        %1116 = vst.msk [vmem:[#allocation3 + $0x1a0] sm:$0xff] %vm1089, %v1046
        %1117 = vst.msk [vmem:[#allocation3 + $0x1b0] sm:$0xff] %vm1089, %v1048
        %1118 = vst.msk [vmem:[#allocation3 + $0x1c0] sm:$0xff] %vm1089, %v1050
        %1119 = vst.msk [vmem:[#allocation3 + $0x1d0] sm:$0xff] %vm1089, %v1052
        %1120 = vst.msk [vmem:[#allocation3 + $0x1e0] sm:$0xff] %vm1089, %v1054
        %1121 = vst.msk [vmem:[#allocation3 + $0x1f0] sm:$0xff] %vm1089, %v1056
        %v1122 = vld [vmem:[#allocation2 + $0xa] sm:$0xff]
        %v1123 = vld [vmem:[#allocation2 + $0x12] sm:$0xff]
        %v1124 = vld [vmem:[#allocation2 + $0x1a] sm:$0xff]
        %v1125 = vld [vmem:[#allocation2 + $0x22] sm:$0xff]
        %v1126 = vld [vmem:[#allocation2 + $0x2a] sm:$0xff]
        %v1127 = vld [vmem:[#allocation2 + $0x32] sm:$0xff]
        %v1128 = vld [vmem:[#allocation2 + $0x3a] sm:$0xff]
        %v1129 = vld [vmem:[#allocation2 + $0x42] sm:$0xff]
        %v1130 = vld [vmem:[#allocation2 + $0x4a] sm:$0xff]
        %v1131 = vld [vmem:[#allocation2 + $0x52] sm:$0xff]
        %v1132 = vld [vmem:[#allocation2 + $0x5a] sm:$0xff]
        %v1133 = vld [vmem:[#allocation2 + $0x62] sm:$0xff]
        %v1134 = vld [vmem:[#allocation2 + $0x6a] sm:$0xff]
        %v1135 = vld [vmem:[#allocation2 + $0x72] sm:$0xff]
        %v1136 = vld [vmem:[#allocation2 + $0x7a] sm:$0xff]
        %v1137 = vld [vmem:[#allocation2 + $0x82] sm:$0xff]
        %v1138 = vld [vmem:[#allocation2 + $0x8a] sm:$0xff]
        %v1139 = vld [vmem:[#allocation2 + $0x92] sm:$0xff]
        %v1140 = vld [vmem:[#allocation2 + $0x9a] sm:$0xff]
        %v1141 = vld [vmem:[#allocation2 + $0xa2] sm:$0xff]
        %v1142 = vld [vmem:[#allocation2 + $0xaa] sm:$0xff]
        %v1143 = vld [vmem:[#allocation2 + $0xb2] sm:$0xff]
        %v1144 = vld [vmem:[#allocation2 + $0xba] sm:$0xff]
        %v1145 = vld [vmem:[#allocation2 + $0xc2] sm:$0xff]
        %v1146 = vld [vmem:[#allocation2 + $0xca] sm:$0xff]
        %v1147 = vld [vmem:[#allocation2 + $0xd2] sm:$0xff]
        %v1148 = vld [vmem:[#allocation2 + $0xda] sm:$0xff]
        %v1149 = vld [vmem:[#allocation2 + $0xe2] sm:$0xff]
        %v1150 = vld [vmem:[#allocation2 + $0xea] sm:$0xff]
        %v1151 = vld [vmem:[#allocation2 + $0xf2] sm:$0xff]
        %v1152 = vld [vmem:[#allocation2 + $0xfa] sm:$0xff]
        %v1153 = vld [vmem:[#allocation2 + $0x102] sm:$0xff]
        %1154 = vst.msk [vmem:[#allocation3 + $0x8] sm:$0xff] %vm412, %v1122
        %1155 = vst.msk [vmem:[#allocation3 + $0x18] sm:$0xff] %vm412, %v1123
        %1156 = vst.msk [vmem:[#allocation3 + $0x28] sm:$0xff] %vm412, %v1124
        %1157 = vst.msk [vmem:[#allocation3 + $0x38] sm:$0xff] %vm412, %v1125
        %1158 = vst.msk [vmem:[#allocation3 + $0x48] sm:$0xff] %vm412, %v1126
        %1159 = vst.msk [vmem:[#allocation3 + $0x58] sm:$0xff] %vm412, %v1127
        %1160 = vst.msk [vmem:[#allocation3 + $0x68] sm:$0xff] %vm412, %v1128
        %1161 = vst.msk [vmem:[#allocation3 + $0x78] sm:$0xff] %vm412, %v1129
        %1162 = vst.msk [vmem:[#allocation3 + $0x88] sm:$0xff] %vm412, %v1130
        %1163 = vst.msk [vmem:[#allocation3 + $0x98] sm:$0xff] %vm412, %v1131
        %1164 = vst.msk [vmem:[#allocation3 + $0xa8] sm:$0xff] %vm412, %v1132
        %1165 = vst.msk [vmem:[#allocation3 + $0xb8] sm:$0xff] %vm412, %v1133
        %1166 = vst.msk [vmem:[#allocation3 + $0xc8] sm:$0xff] %vm412, %v1134
        %1167 = vst.msk [vmem:[#allocation3 + $0xd8] sm:$0xff] %vm412, %v1135
        %1168 = vst.msk [vmem:[#allocation3 + $0xe8] sm:$0xff] %vm412, %v1136
        %1169 = vst.msk [vmem:[#allocation3 + $0xf8] sm:$0xff] %vm412, %v1137
        %1170 = vst.msk [vmem:[#allocation3 + $0x108] sm:$0xff] %vm412, %v1138
        %1171 = vst.msk [vmem:[#allocation3 + $0x118] sm:$0xff] %vm412, %v1139
        %1172 = vst.msk [vmem:[#allocation3 + $0x128] sm:$0xff] %vm412, %v1140
        %1173 = vst.msk [vmem:[#allocation3 + $0x138] sm:$0xff] %vm412, %v1141
        %1174 = vst.msk [vmem:[#allocation3 + $0x148] sm:$0xff] %vm412, %v1142
        %1175 = vst.msk [vmem:[#allocation3 + $0x158] sm:$0xff] %vm412, %v1143
        %1176 = vst.msk [vmem:[#allocation3 + $0x168] sm:$0xff] %vm412, %v1144
        %1177 = vst.msk [vmem:[#allocation3 + $0x178] sm:$0xff] %vm412, %v1145
        %1178 = vst.msk [vmem:[#allocation3 + $0x188] sm:$0xff] %vm412, %v1146
        %1179 = vst.msk [vmem:[#allocation3 + $0x198] sm:$0xff] %vm412, %v1147
        %1180 = vst.msk [vmem:[#allocation3 + $0x1a8] sm:$0xff] %vm412, %v1148
        %1181 = vst.msk [vmem:[#allocation3 + $0x1b8] sm:$0xff] %vm412, %v1149
        %1182 = vst.msk [vmem:[#allocation3 + $0x1c8] sm:$0xff] %vm412, %v1150
        %1183 = vst.msk [vmem:[#allocation3 + $0x1d8] sm:$0xff] %vm412, %v1151
        %1184 = vst.msk [vmem:[#allocation3 + $0x1e8] sm:$0xff] %vm412, %v1152
        %1185 = vst.msk [vmem:[#allocation3 + $0x1f8] sm:$0xff] %vm412, %v1153
        %v1186 = vld [vmem:[#allocation2 + $0xb] sm:$0xff]
        %v1187 = vld [vmem:[#allocation2 + $0x13] sm:$0xff]
        %v1188 = vld [vmem:[#allocation2 + $0x1b] sm:$0xff]
        %v1189 = vld [vmem:[#allocation2 + $0x23] sm:$0xff]
        %v1190 = vld [vmem:[#allocation2 + $0x2b] sm:$0xff]
        %v1191 = vld [vmem:[#allocation2 + $0x33] sm:$0xff]
        %v1192 = vld [vmem:[#allocation2 + $0x3b] sm:$0xff]
        %v1193 = vld [vmem:[#allocation2 + $0x43] sm:$0xff]
        %v1194 = vld [vmem:[#allocation2 + $0x4b] sm:$0xff]
        %v1195 = vld [vmem:[#allocation2 + $0x53] sm:$0xff]
        %v1196 = vld [vmem:[#allocation2 + $0x5b] sm:$0xff]
        %v1197 = vld [vmem:[#allocation2 + $0x63] sm:$0xff]
        %v1198 = vld [vmem:[#allocation2 + $0x6b] sm:$0xff]
        %v1199 = vld [vmem:[#allocation2 + $0x73] sm:$0xff]
        %v1200 = vld [vmem:[#allocation2 + $0x7b] sm:$0xff]
        %v1201 = vld [vmem:[#allocation2 + $0x83] sm:$0xff]
        %v1202 = vld [vmem:[#allocation2 + $0x8b] sm:$0xff]
        %v1203 = vld [vmem:[#allocation2 + $0x93] sm:$0xff]
        %v1204 = vld [vmem:[#allocation2 + $0x9b] sm:$0xff]
        %v1205 = vld [vmem:[#allocation2 + $0xa3] sm:$0xff]
        %v1206 = vld [vmem:[#allocation2 + $0xab] sm:$0xff]
        %v1207 = vld [vmem:[#allocation2 + $0xb3] sm:$0xff]
        %v1208 = vld [vmem:[#allocation2 + $0xbb] sm:$0xff]
        %v1209 = vld [vmem:[#allocation2 + $0xc3] sm:$0xff]
        %v1210 = vld [vmem:[#allocation2 + $0xcb] sm:$0xff]
        %v1211 = vld [vmem:[#allocation2 + $0xd3] sm:$0xff]
        %v1212 = vld [vmem:[#allocation2 + $0xdb] sm:$0xff]
        %v1213 = vld [vmem:[#allocation2 + $0xe3] sm:$0xff]
        %v1214 = vld [vmem:[#allocation2 + $0xeb] sm:$0xff]
        %v1215 = vld [vmem:[#allocation2 + $0xf3] sm:$0xff]
        %v1216 = vld [vmem:[#allocation2 + $0xfb] sm:$0xff]
        %v1217 = vld [vmem:[#allocation2 + $0x103] sm:$0xff]
        %1250 = vrot.lane.b32.xlu0 %v1186, 32
        %v1251 = vpop.permute.xlu0 %1250
        %1252 = vrot.lane.b32.xlu0 %v1187, 32
        %v1253 = vpop.permute.xlu0 %1252
        %1254 = vrot.lane.b32.xlu0 %v1188, 32
        %v1255 = vpop.permute.xlu0 %1254
        %1256 = vrot.lane.b32.xlu0 %v1189, 32
        %v1257 = vpop.permute.xlu0 %1256
        %1258 = vrot.lane.b32.xlu0 %v1190, 32
        %v1259 = vpop.permute.xlu0 %1258
        %1260 = vrot.lane.b32.xlu0 %v1191, 32
        %v1261 = vpop.permute.xlu0 %1260
        %1262 = vrot.lane.b32.xlu0 %v1192, 32
        %v1263 = vpop.permute.xlu0 %1262
        %1264 = vrot.lane.b32.xlu0 %v1193, 32
        %v1265 = vpop.permute.xlu0 %1264
        %1266 = vrot.lane.b32.xlu0 %v1194, 32
        %v1267 = vpop.permute.xlu0 %1266
        %1268 = vrot.lane.b32.xlu0 %v1195, 32
        %v1269 = vpop.permute.xlu0 %1268
        %1270 = vrot.lane.b32.xlu0 %v1196, 32
        %v1271 = vpop.permute.xlu0 %1270
        %1272 = vrot.lane.b32.xlu0 %v1197, 32
        %v1273 = vpop.permute.xlu0 %1272
        %1274 = vrot.lane.b32.xlu0 %v1198, 32
        %v1275 = vpop.permute.xlu0 %1274
        %1276 = vrot.lane.b32.xlu0 %v1199, 32
        %v1277 = vpop.permute.xlu0 %1276
        %1278 = vrot.lane.b32.xlu0 %v1200, 32
        %v1279 = vpop.permute.xlu0 %1278
        %1280 = vrot.lane.b32.xlu0 %v1201, 32
        %v1281 = vpop.permute.xlu0 %1280
        %1282 = vrot.lane.b32.xlu0 %v1202, 32
        %v1283 = vpop.permute.xlu0 %1282
        %1284 = vrot.lane.b32.xlu0 %v1203, 32
        %v1285 = vpop.permute.xlu0 %1284
        %1286 = vrot.lane.b32.xlu0 %v1204, 32
        %v1287 = vpop.permute.xlu0 %1286
        %1288 = vrot.lane.b32.xlu0 %v1205, 32
        %v1289 = vpop.permute.xlu0 %1288
        %1290 = vrot.lane.b32.xlu0 %v1206, 32
        %v1291 = vpop.permute.xlu0 %1290
        %1292 = vrot.lane.b32.xlu0 %v1207, 32
        %v1293 = vpop.permute.xlu0 %1292
        %1294 = vrot.lane.b32.xlu0 %v1208, 32
        %v1295 = vpop.permute.xlu0 %1294
        %1296 = vrot.lane.b32.xlu0 %v1209, 32
        %v1297 = vpop.permute.xlu0 %1296
        %1298 = vrot.lane.b32.xlu0 %v1210, 32
        %v1299 = vpop.permute.xlu0 %1298
        %1300 = vrot.lane.b32.xlu0 %v1211, 32
        %v1301 = vpop.permute.xlu0 %1300
        %1302 = vrot.lane.b32.xlu0 %v1212, 32
        %v1303 = vpop.permute.xlu0 %1302
        %1304 = vrot.lane.b32.xlu0 %v1213, 32
        %v1305 = vpop.permute.xlu0 %1304
        %1306 = vrot.lane.b32.xlu0 %v1214, 32
        %v1307 = vpop.permute.xlu0 %1306
        %1308 = vrot.lane.b32.xlu0 %v1215, 32
        %v1309 = vpop.permute.xlu0 %1308
        %1310 = vrot.lane.b32.xlu0 %v1216, 32
        %v1311 = vpop.permute.xlu0 %1310
        %1312 = vrot.lane.b32.xlu0 %v1217, 32
        %v1313 = vpop.permute.xlu0 %1312
        %1346 = vst.msk [vmem:[#allocation3 + $0x8] sm:$0xff] %vm703, %v1251
        %1347 = vst.msk [vmem:[#allocation3 + $0x18] sm:$0xff] %vm703, %v1253
        %1348 = vst.msk [vmem:[#allocation3 + $0x28] sm:$0xff] %vm703, %v1255
        %1349 = vst.msk [vmem:[#allocation3 + $0x38] sm:$0xff] %vm703, %v1257
        %1350 = vst.msk [vmem:[#allocation3 + $0x48] sm:$0xff] %vm703, %v1259
        %1351 = vst.msk [vmem:[#allocation3 + $0x58] sm:$0xff] %vm703, %v1261
        %1352 = vst.msk [vmem:[#allocation3 + $0x68] sm:$0xff] %vm703, %v1263
        %1353 = vst.msk [vmem:[#allocation3 + $0x78] sm:$0xff] %vm703, %v1265
        %1354 = vst.msk [vmem:[#allocation3 + $0x88] sm:$0xff] %vm703, %v1267
        %1355 = vst.msk [vmem:[#allocation3 + $0x98] sm:$0xff] %vm703, %v1269
        %1356 = vst.msk [vmem:[#allocation3 + $0xa8] sm:$0xff] %vm703, %v1271
        %1357 = vst.msk [vmem:[#allocation3 + $0xb8] sm:$0xff] %vm703, %v1273
        %1358 = vst.msk [vmem:[#allocation3 + $0xc8] sm:$0xff] %vm703, %v1275
        %1359 = vst.msk [vmem:[#allocation3 + $0xd8] sm:$0xff] %vm703, %v1277
        %1360 = vst.msk [vmem:[#allocation3 + $0xe8] sm:$0xff] %vm703, %v1279
        %1361 = vst.msk [vmem:[#allocation3 + $0xf8] sm:$0xff] %vm703, %v1281
        %1362 = vst.msk [vmem:[#allocation3 + $0x108] sm:$0xff] %vm703, %v1283
        %1363 = vst.msk [vmem:[#allocation3 + $0x118] sm:$0xff] %vm703, %v1285
        %1364 = vst.msk [vmem:[#allocation3 + $0x128] sm:$0xff] %vm703, %v1287
        %1365 = vst.msk [vmem:[#allocation3 + $0x138] sm:$0xff] %vm703, %v1289
        %1366 = vst.msk [vmem:[#allocation3 + $0x148] sm:$0xff] %vm703, %v1291
        %1367 = vst.msk [vmem:[#allocation3 + $0x158] sm:$0xff] %vm703, %v1293
        %1368 = vst.msk [vmem:[#allocation3 + $0x168] sm:$0xff] %vm703, %v1295
        %1369 = vst.msk [vmem:[#allocation3 + $0x178] sm:$0xff] %vm703, %v1297
        %1370 = vst.msk [vmem:[#allocation3 + $0x188] sm:$0xff] %vm703, %v1299
        %1371 = vst.msk [vmem:[#allocation3 + $0x198] sm:$0xff] %vm703, %v1301
        %1372 = vst.msk [vmem:[#allocation3 + $0x1a8] sm:$0xff] %vm703, %v1303
        %1373 = vst.msk [vmem:[#allocation3 + $0x1b8] sm:$0xff] %vm703, %v1305
        %1374 = vst.msk [vmem:[#allocation3 + $0x1c8] sm:$0xff] %vm703, %v1307
        %1375 = vst.msk [vmem:[#allocation3 + $0x1d8] sm:$0xff] %vm703, %v1309
        %1376 = vst.msk [vmem:[#allocation3 + $0x1e8] sm:$0xff] %vm703, %v1311
        %1377 = vst.msk [vmem:[#allocation3 + $0x1f8] sm:$0xff] %vm703, %v1313
        %v1378 = vld [vmem:[#allocation2 + $0x4] sm:$0xff]
        %v1379 = vld [vmem:[#allocation2 + $0xc] sm:$0xff]
        %v1380 = vld [vmem:[#allocation2 + $0x14] sm:$0xff]
        %v1381 = vld [vmem:[#allocation2 + $0x1c] sm:$0xff]
        %v1382 = vld [vmem:[#allocation2 + $0x24] sm:$0xff]
        %v1383 = vld [vmem:[#allocation2 + $0x2c] sm:$0xff]
        %v1384 = vld [vmem:[#allocation2 + $0x34] sm:$0xff]
        %v1385 = vld [vmem:[#allocation2 + $0x3c] sm:$0xff]
        %v1386 = vld [vmem:[#allocation2 + $0x44] sm:$0xff]
        %v1387 = vld [vmem:[#allocation2 + $0x4c] sm:$0xff]
        %v1388 = vld [vmem:[#allocation2 + $0x54] sm:$0xff]
        %v1389 = vld [vmem:[#allocation2 + $0x5c] sm:$0xff]
        %v1390 = vld [vmem:[#allocation2 + $0x64] sm:$0xff]
        %v1391 = vld [vmem:[#allocation2 + $0x6c] sm:$0xff]
        %v1392 = vld [vmem:[#allocation2 + $0x74] sm:$0xff]
        %v1393 = vld [vmem:[#allocation2 + $0x7c] sm:$0xff]
        %v1394 = vld [vmem:[#allocation2 + $0x84] sm:$0xff]
        %v1395 = vld [vmem:[#allocation2 + $0x8c] sm:$0xff]
        %v1396 = vld [vmem:[#allocation2 + $0x94] sm:$0xff]
        %v1397 = vld [vmem:[#allocation2 + $0x9c] sm:$0xff]
        %v1398 = vld [vmem:[#allocation2 + $0xa4] sm:$0xff]
        %v1399 = vld [vmem:[#allocation2 + $0xac] sm:$0xff]
        %v1400 = vld [vmem:[#allocation2 + $0xb4] sm:$0xff]
        %v1401 = vld [vmem:[#allocation2 + $0xbc] sm:$0xff]
        %v1402 = vld [vmem:[#allocation2 + $0xc4] sm:$0xff]
        %v1403 = vld [vmem:[#allocation2 + $0xcc] sm:$0xff]
        %v1404 = vld [vmem:[#allocation2 + $0xd4] sm:$0xff]
        %v1405 = vld [vmem:[#allocation2 + $0xdc] sm:$0xff]
        %v1406 = vld [vmem:[#allocation2 + $0xe4] sm:$0xff]
        %v1407 = vld [vmem:[#allocation2 + $0xec] sm:$0xff]
        %v1408 = vld [vmem:[#allocation2 + $0xf4] sm:$0xff]
        %v1409 = vld [vmem:[#allocation2 + $0xfc] sm:$0xff]
        %1410 = vst.msk [vmem:[#allocation4] sm:$0xff] %vm412, %v1378
        %1411 = vst.msk [vmem:[#allocation4 + $0x18] sm:$0xff] %vm412, %v1379
        %1412 = vst.msk [vmem:[#allocation4 + $0x30] sm:$0xff] %vm412, %v1380
        %1413 = vst.msk [vmem:[#allocation4 + $0x48] sm:$0xff] %vm412, %v1381
        %1414 = vst.msk [vmem:[#allocation4 + $0x60] sm:$0xff] %vm412, %v1382
        %1415 = vst.msk [vmem:[#allocation4 + $0x78] sm:$0xff] %vm412, %v1383
        %1416 = vst.msk [vmem:[#allocation4 + $0x90] sm:$0xff] %vm412, %v1384
        %1417 = vst.msk [vmem:[#allocation4 + $0xa8] sm:$0xff] %vm412, %v1385
        %1418 = vst.msk [vmem:[#allocation4 + $0xc0] sm:$0xff] %vm412, %v1386
        %1419 = vst.msk [vmem:[#allocation4 + $0xd8] sm:$0xff] %vm412, %v1387
        %1420 = vst.msk [vmem:[#allocation4 + $0xf0] sm:$0xff] %vm412, %v1388
        %1421 = vst.msk [vmem:[#allocation4 + $0x108] sm:$0xff] %vm412, %v1389
        %1422 = vst.msk [vmem:[#allocation4 + $0x120] sm:$0xff] %vm412, %v1390
        %1423 = vst.msk [vmem:[#allocation4 + $0x138] sm:$0xff] %vm412, %v1391
        %1424 = vst.msk [vmem:[#allocation4 + $0x150] sm:$0xff] %vm412, %v1392
        %1425 = vst.msk [vmem:[#allocation4 + $0x168] sm:$0xff] %vm412, %v1393
        %1426 = vst.msk [vmem:[#allocation4 + $0x180] sm:$0xff] %vm412, %v1394
        %1427 = vst.msk [vmem:[#allocation4 + $0x198] sm:$0xff] %vm412, %v1395
        %1428 = vst.msk [vmem:[#allocation4 + $0x1b0] sm:$0xff] %vm412, %v1396
        %1429 = vst.msk [vmem:[#allocation4 + $0x1c8] sm:$0xff] %vm412, %v1397
        %1430 = vst.msk [vmem:[#allocation4 + $0x1e0] sm:$0xff] %vm412, %v1398
        %1431 = vst.msk [vmem:[#allocation4 + $0x1f8] sm:$0xff] %vm412, %v1399
        %1432 = vst.msk [vmem:[#allocation4 + $0x210] sm:$0xff] %vm412, %v1400
        %1433 = vst.msk [vmem:[#allocation4 + $0x228] sm:$0xff] %vm412, %v1401
        %1434 = vst.msk [vmem:[#allocation4 + $0x240] sm:$0xff] %vm412, %v1402
        %1435 = vst.msk [vmem:[#allocation4 + $0x258] sm:$0xff] %vm412, %v1403
        %1436 = vst.msk [vmem:[#allocation4 + $0x270] sm:$0xff] %vm412, %v1404
        %1437 = vst.msk [vmem:[#allocation4 + $0x288] sm:$0xff] %vm412, %v1405
        %1438 = vst.msk [vmem:[#allocation4 + $0x2a0] sm:$0xff] %vm412, %v1406
        %1439 = vst.msk [vmem:[#allocation4 + $0x2b8] sm:$0xff] %vm412, %v1407
        %1440 = vst.msk [vmem:[#allocation4 + $0x2d0] sm:$0xff] %vm412, %v1408
        %1441 = vst.msk [vmem:[#allocation4 + $0x2e8] sm:$0xff] %vm412, %v1409
        %v1442 = vld [vmem:[#allocation2 + $0x5] sm:$0xff]
        %v1443 = vld [vmem:[#allocation2 + $0xd] sm:$0xff]
        %v1444 = vld [vmem:[#allocation2 + $0x15] sm:$0xff]
        %v1445 = vld [vmem:[#allocation2 + $0x1d] sm:$0xff]
        %v1446 = vld [vmem:[#allocation2 + $0x25] sm:$0xff]
        %v1447 = vld [vmem:[#allocation2 + $0x2d] sm:$0xff]
        %v1448 = vld [vmem:[#allocation2 + $0x35] sm:$0xff]
        %v1449 = vld [vmem:[#allocation2 + $0x3d] sm:$0xff]
        %v1450 = vld [vmem:[#allocation2 + $0x45] sm:$0xff]
        %v1451 = vld [vmem:[#allocation2 + $0x4d] sm:$0xff]
        %v1452 = vld [vmem:[#allocation2 + $0x55] sm:$0xff]
        %v1453 = vld [vmem:[#allocation2 + $0x5d] sm:$0xff]
        %v1454 = vld [vmem:[#allocation2 + $0x65] sm:$0xff]
        %v1455 = vld [vmem:[#allocation2 + $0x6d] sm:$0xff]
        %v1456 = vld [vmem:[#allocation2 + $0x75] sm:$0xff]
        %v1457 = vld [vmem:[#allocation2 + $0x7d] sm:$0xff]
        %v1458 = vld [vmem:[#allocation2 + $0x85] sm:$0xff]
        %v1459 = vld [vmem:[#allocation2 + $0x8d] sm:$0xff]
        %v1460 = vld [vmem:[#allocation2 + $0x95] sm:$0xff]
        %v1461 = vld [vmem:[#allocation2 + $0x9d] sm:$0xff]
        %v1462 = vld [vmem:[#allocation2 + $0xa5] sm:$0xff]
        %v1463 = vld [vmem:[#allocation2 + $0xad] sm:$0xff]
        %v1464 = vld [vmem:[#allocation2 + $0xb5] sm:$0xff]
        %v1465 = vld [vmem:[#allocation2 + $0xbd] sm:$0xff]
        %v1466 = vld [vmem:[#allocation2 + $0xc5] sm:$0xff]
        %v1467 = vld [vmem:[#allocation2 + $0xcd] sm:$0xff]
        %v1468 = vld [vmem:[#allocation2 + $0xd5] sm:$0xff]
        %v1469 = vld [vmem:[#allocation2 + $0xdd] sm:$0xff]
        %v1470 = vld [vmem:[#allocation2 + $0xe5] sm:$0xff]
        %v1471 = vld [vmem:[#allocation2 + $0xed] sm:$0xff]
        %v1472 = vld [vmem:[#allocation2 + $0xf5] sm:$0xff]
        %v1473 = vld [vmem:[#allocation2 + $0xfd] sm:$0xff]
        %1506 = vrot.lane.b32.xlu0 %v1442, 32
        %v1507 = vpop.permute.xlu0 %1506
        %1508 = vrot.lane.b32.xlu0 %v1443, 32
        %v1509 = vpop.permute.xlu0 %1508
        %1510 = vrot.lane.b32.xlu0 %v1444, 32
        %v1511 = vpop.permute.xlu0 %1510
        %1512 = vrot.lane.b32.xlu0 %v1445, 32
        %v1513 = vpop.permute.xlu0 %1512
        %1514 = vrot.lane.b32.xlu0 %v1446, 32
        %v1515 = vpop.permute.xlu0 %1514
        %1516 = vrot.lane.b32.xlu0 %v1447, 32
        %v1517 = vpop.permute.xlu0 %1516
        %1518 = vrot.lane.b32.xlu0 %v1448, 32
        %v1519 = vpop.permute.xlu0 %1518
        %1520 = vrot.lane.b32.xlu0 %v1449, 32
        %v1521 = vpop.permute.xlu0 %1520
        %1522 = vrot.lane.b32.xlu0 %v1450, 32
        %v1523 = vpop.permute.xlu0 %1522
        %1524 = vrot.lane.b32.xlu0 %v1451, 32
        %v1525 = vpop.permute.xlu0 %1524
        %1526 = vrot.lane.b32.xlu0 %v1452, 32
        %v1527 = vpop.permute.xlu0 %1526
        %1528 = vrot.lane.b32.xlu0 %v1453, 32
        %v1529 = vpop.permute.xlu0 %1528
        %1530 = vrot.lane.b32.xlu0 %v1454, 32
        %v1531 = vpop.permute.xlu0 %1530
        %1532 = vrot.lane.b32.xlu0 %v1455, 32
        %v1533 = vpop.permute.xlu0 %1532
        %1534 = vrot.lane.b32.xlu0 %v1456, 32
        %v1535 = vpop.permute.xlu0 %1534
        %1536 = vrot.lane.b32.xlu0 %v1457, 32
        %v1537 = vpop.permute.xlu0 %1536
        %1538 = vrot.lane.b32.xlu0 %v1458, 32
        %v1539 = vpop.permute.xlu0 %1538
        %1540 = vrot.lane.b32.xlu0 %v1459, 32
        %v1541 = vpop.permute.xlu0 %1540
        %1542 = vrot.lane.b32.xlu0 %v1460, 32
        %v1543 = vpop.permute.xlu0 %1542
        %1544 = vrot.lane.b32.xlu0 %v1461, 32
        %v1545 = vpop.permute.xlu0 %1544
        %1546 = vrot.lane.b32.xlu0 %v1462, 32
        %v1547 = vpop.permute.xlu0 %1546
        %1548 = vrot.lane.b32.xlu0 %v1463, 32
        %v1549 = vpop.permute.xlu0 %1548
        %1550 = vrot.lane.b32.xlu0 %v1464, 32
        %v1551 = vpop.permute.xlu0 %1550
        %1552 = vrot.lane.b32.xlu0 %v1465, 32
        %v1553 = vpop.permute.xlu0 %1552
        %1554 = vrot.lane.b32.xlu0 %v1466, 32
        %v1555 = vpop.permute.xlu0 %1554
        %1556 = vrot.lane.b32.xlu0 %v1467, 32
        %v1557 = vpop.permute.xlu0 %1556
        %1558 = vrot.lane.b32.xlu0 %v1468, 32
        %v1559 = vpop.permute.xlu0 %1558
        %1560 = vrot.lane.b32.xlu0 %v1469, 32
        %v1561 = vpop.permute.xlu0 %1560
        %1562 = vrot.lane.b32.xlu0 %v1470, 32
        %v1563 = vpop.permute.xlu0 %1562
        %1564 = vrot.lane.b32.xlu0 %v1471, 32
        %v1565 = vpop.permute.xlu0 %1564
        %1566 = vrot.lane.b32.xlu0 %v1472, 32
        %v1567 = vpop.permute.xlu0 %1566
        %1568 = vrot.lane.b32.xlu0 %v1473, 32
        %v1569 = vpop.permute.xlu0 %1568
        %1602 = vst.msk [vmem:[#allocation4] sm:$0xff] %vm703, %v1507
        %1603 = vst.msk [vmem:[#allocation4 + $0x18] sm:$0xff] %vm703, %v1509
        %1604 = vst.msk [vmem:[#allocation4 + $0x30] sm:$0xff] %vm703, %v1511
        %1605 = vst.msk [vmem:[#allocation4 + $0x48] sm:$0xff] %vm703, %v1513
        %1606 = vst.msk [vmem:[#allocation4 + $0x60] sm:$0xff] %vm703, %v1515
        %1607 = vst.msk [vmem:[#allocation4 + $0x78] sm:$0xff] %vm703, %v1517
        %1608 = vst.msk [vmem:[#allocation4 + $0x90] sm:$0xff] %vm703, %v1519
        %1609 = vst.msk [vmem:[#allocation4 + $0xa8] sm:$0xff] %vm703, %v1521
        %1610 = vst.msk [vmem:[#allocation4 + $0xc0] sm:$0xff] %vm703, %v1523
        %1611 = vst.msk [vmem:[#allocation4 + $0xd8] sm:$0xff] %vm703, %v1525
        %1612 = vst.msk [vmem:[#allocation4 + $0xf0] sm:$0xff] %vm703, %v1527
        %1613 = vst.msk [vmem:[#allocation4 + $0x108] sm:$0xff] %vm703, %v1529
        %1614 = vst.msk [vmem:[#allocation4 + $0x120] sm:$0xff] %vm703, %v1531
        %1615 = vst.msk [vmem:[#allocation4 + $0x138] sm:$0xff] %vm703, %v1533
        %1616 = vst.msk [vmem:[#allocation4 + $0x150] sm:$0xff] %vm703, %v1535
        %1617 = vst.msk [vmem:[#allocation4 + $0x168] sm:$0xff] %vm703, %v1537
        %1618 = vst.msk [vmem:[#allocation4 + $0x180] sm:$0xff] %vm703, %v1539
        %1619 = vst.msk [vmem:[#allocation4 + $0x198] sm:$0xff] %vm703, %v1541
        %1620 = vst.msk [vmem:[#allocation4 + $0x1b0] sm:$0xff] %vm703, %v1543
        %1621 = vst.msk [vmem:[#allocation4 + $0x1c8] sm:$0xff] %vm703, %v1545
        %1622 = vst.msk [vmem:[#allocation4 + $0x1e0] sm:$0xff] %vm703, %v1547
        %1623 = vst.msk [vmem:[#allocation4 + $0x1f8] sm:$0xff] %vm703, %v1549
        %1624 = vst.msk [vmem:[#allocation4 + $0x210] sm:$0xff] %vm703, %v1551
        %1625 = vst.msk [vmem:[#allocation4 + $0x228] sm:$0xff] %vm703, %v1553
        %1626 = vst.msk [vmem:[#allocation4 + $0x240] sm:$0xff] %vm703, %v1555
        %1627 = vst.msk [vmem:[#allocation4 + $0x258] sm:$0xff] %vm703, %v1557
        %1628 = vst.msk [vmem:[#allocation4 + $0x270] sm:$0xff] %vm703, %v1559
        %1629 = vst.msk [vmem:[#allocation4 + $0x288] sm:$0xff] %vm703, %v1561
        %1630 = vst.msk [vmem:[#allocation4 + $0x2a0] sm:$0xff] %vm703, %v1563
        %1631 = vst.msk [vmem:[#allocation4 + $0x2b8] sm:$0xff] %vm703, %v1565
        %1632 = vst.msk [vmem:[#allocation4 + $0x2d0] sm:$0xff] %vm703, %v1567
        %1633 = vst.msk [vmem:[#allocation4 + $0x2e8] sm:$0xff] %vm703, %v1569
        %v1634 = vld [vmem:[#allocation2 + $0x6] sm:$0xff]
        %v1635 = vld [vmem:[#allocation2 + $0xe] sm:$0xff]
        %v1636 = vld [vmem:[#allocation2 + $0x16] sm:$0xff]
        %v1637 = vld [vmem:[#allocation2 + $0x1e] sm:$0xff]
        %v1638 = vld [vmem:[#allocation2 + $0x26] sm:$0xff]
        %v1639 = vld [vmem:[#allocation2 + $0x2e] sm:$0xff]
        %v1640 = vld [vmem:[#allocation2 + $0x36] sm:$0xff]
        %v1641 = vld [vmem:[#allocation2 + $0x3e] sm:$0xff]
        %v1642 = vld [vmem:[#allocation2 + $0x46] sm:$0xff]
        %v1643 = vld [vmem:[#allocation2 + $0x4e] sm:$0xff]
        %v1644 = vld [vmem:[#allocation2 + $0x56] sm:$0xff]
        %v1645 = vld [vmem:[#allocation2 + $0x5e] sm:$0xff]
        %v1646 = vld [vmem:[#allocation2 + $0x66] sm:$0xff]
        %v1647 = vld [vmem:[#allocation2 + $0x6e] sm:$0xff]
        %v1648 = vld [vmem:[#allocation2 + $0x76] sm:$0xff]
        %v1649 = vld [vmem:[#allocation2 + $0x7e] sm:$0xff]
        %v1650 = vld [vmem:[#allocation2 + $0x86] sm:$0xff]
        %v1651 = vld [vmem:[#allocation2 + $0x8e] sm:$0xff]
        %v1652 = vld [vmem:[#allocation2 + $0x96] sm:$0xff]
        %v1653 = vld [vmem:[#allocation2 + $0x9e] sm:$0xff]
        %v1654 = vld [vmem:[#allocation2 + $0xa6] sm:$0xff]
        %v1655 = vld [vmem:[#allocation2 + $0xae] sm:$0xff]
        %v1656 = vld [vmem:[#allocation2 + $0xb6] sm:$0xff]
        %v1657 = vld [vmem:[#allocation2 + $0xbe] sm:$0xff]
        %v1658 = vld [vmem:[#allocation2 + $0xc6] sm:$0xff]
        %v1659 = vld [vmem:[#allocation2 + $0xce] sm:$0xff]
        %v1660 = vld [vmem:[#allocation2 + $0xd6] sm:$0xff]
        %v1661 = vld [vmem:[#allocation2 + $0xde] sm:$0xff]
        %v1662 = vld [vmem:[#allocation2 + $0xe6] sm:$0xff]
        %v1663 = vld [vmem:[#allocation2 + $0xee] sm:$0xff]
        %v1664 = vld [vmem:[#allocation2 + $0xf6] sm:$0xff]
        %v1665 = vld [vmem:[#allocation2 + $0xfe] sm:$0xff]
        %1698 = vrot.lane.b32.xlu0 %v1634, 64
        %v1699 = vpop.permute.xlu0 %1698
        %1700 = vrot.lane.b32.xlu0 %v1635, 64
        %v1701 = vpop.permute.xlu0 %1700
        %1702 = vrot.lane.b32.xlu0 %v1636, 64
        %v1703 = vpop.permute.xlu0 %1702
        %1704 = vrot.lane.b32.xlu0 %v1637, 64
        %v1705 = vpop.permute.xlu0 %1704
        %1706 = vrot.lane.b32.xlu0 %v1638, 64
        %v1707 = vpop.permute.xlu0 %1706
        %1708 = vrot.lane.b32.xlu0 %v1639, 64
        %v1709 = vpop.permute.xlu0 %1708
        %1710 = vrot.lane.b32.xlu0 %v1640, 64
        %v1711 = vpop.permute.xlu0 %1710
        %1712 = vrot.lane.b32.xlu0 %v1641, 64
        %v1713 = vpop.permute.xlu0 %1712
        %1714 = vrot.lane.b32.xlu0 %v1642, 64
        %v1715 = vpop.permute.xlu0 %1714
        %1716 = vrot.lane.b32.xlu0 %v1643, 64
        %v1717 = vpop.permute.xlu0 %1716
        %1718 = vrot.lane.b32.xlu0 %v1644, 64
        %v1719 = vpop.permute.xlu0 %1718
        %1720 = vrot.lane.b32.xlu0 %v1645, 64
        %v1721 = vpop.permute.xlu0 %1720
        %1722 = vrot.lane.b32.xlu0 %v1646, 64
        %v1723 = vpop.permute.xlu0 %1722
        %1724 = vrot.lane.b32.xlu0 %v1647, 64
        %v1725 = vpop.permute.xlu0 %1724
        %1726 = vrot.lane.b32.xlu0 %v1648, 64
        %v1727 = vpop.permute.xlu0 %1726
        %1728 = vrot.lane.b32.xlu0 %v1649, 64
        %v1729 = vpop.permute.xlu0 %1728
        %1730 = vrot.lane.b32.xlu0 %v1650, 64
        %v1731 = vpop.permute.xlu0 %1730
        %1732 = vrot.lane.b32.xlu0 %v1651, 64
        %v1733 = vpop.permute.xlu0 %1732
        %1734 = vrot.lane.b32.xlu0 %v1652, 64
        %v1735 = vpop.permute.xlu0 %1734
        %1736 = vrot.lane.b32.xlu0 %v1653, 64
        %v1737 = vpop.permute.xlu0 %1736
        %1738 = vrot.lane.b32.xlu0 %v1654, 64
        %v1739 = vpop.permute.xlu0 %1738
        %1740 = vrot.lane.b32.xlu0 %v1655, 64
        %v1741 = vpop.permute.xlu0 %1740
        %1742 = vrot.lane.b32.xlu0 %v1656, 64
        %v1743 = vpop.permute.xlu0 %1742
        %1744 = vrot.lane.b32.xlu0 %v1657, 64
        %v1745 = vpop.permute.xlu0 %1744
        %1746 = vrot.lane.b32.xlu0 %v1658, 64
        %v1747 = vpop.permute.xlu0 %1746
        %1748 = vrot.lane.b32.xlu0 %v1659, 64
        %v1749 = vpop.permute.xlu0 %1748
        %1750 = vrot.lane.b32.xlu0 %v1660, 64
        %v1751 = vpop.permute.xlu0 %1750
        %1752 = vrot.lane.b32.xlu0 %v1661, 64
        %v1753 = vpop.permute.xlu0 %1752
        %1754 = vrot.lane.b32.xlu0 %v1662, 64
        %v1755 = vpop.permute.xlu0 %1754
        %1756 = vrot.lane.b32.xlu0 %v1663, 64
        %v1757 = vpop.permute.xlu0 %1756
        %1758 = vrot.lane.b32.xlu0 %v1664, 64
        %v1759 = vpop.permute.xlu0 %1758
        %1760 = vrot.lane.b32.xlu0 %v1665, 64
        %v1761 = vpop.permute.xlu0 %1760
        %1794 = vst.msk [vmem:[#allocation4] sm:$0xff] %vm896, %v1699
        %1795 = vst.msk [vmem:[#allocation4 + $0x18] sm:$0xff] %vm896, %v1701
        %1796 = vst.msk [vmem:[#allocation4 + $0x30] sm:$0xff] %vm896, %v1703
        %1797 = vst.msk [vmem:[#allocation4 + $0x48] sm:$0xff] %vm896, %v1705
        %1798 = vst.msk [vmem:[#allocation4 + $0x60] sm:$0xff] %vm896, %v1707
        %1799 = vst.msk [vmem:[#allocation4 + $0x78] sm:$0xff] %vm896, %v1709
        %1800 = vst.msk [vmem:[#allocation4 + $0x90] sm:$0xff] %vm896, %v1711
        %1801 = vst.msk [vmem:[#allocation4 + $0xa8] sm:$0xff] %vm896, %v1713
        %1802 = vst.msk [vmem:[#allocation4 + $0xc0] sm:$0xff] %vm896, %v1715
        %1803 = vst.msk [vmem:[#allocation4 + $0xd8] sm:$0xff] %vm896, %v1717
        %1804 = vst.msk [vmem:[#allocation4 + $0xf0] sm:$0xff] %vm896, %v1719
        %1805 = vst.msk [vmem:[#allocation4 + $0x108] sm:$0xff] %vm896, %v1721
        %1806 = vst.msk [vmem:[#allocation4 + $0x120] sm:$0xff] %vm896, %v1723
        %1807 = vst.msk [vmem:[#allocation4 + $0x138] sm:$0xff] %vm896, %v1725
        %1808 = vst.msk [vmem:[#allocation4 + $0x150] sm:$0xff] %vm896, %v1727
        %1809 = vst.msk [vmem:[#allocation4 + $0x168] sm:$0xff] %vm896, %v1729
        %1810 = vst.msk [vmem:[#allocation4 + $0x180] sm:$0xff] %vm896, %v1731
        %1811 = vst.msk [vmem:[#allocation4 + $0x198] sm:$0xff] %vm896, %v1733
        %1812 = vst.msk [vmem:[#allocation4 + $0x1b0] sm:$0xff] %vm896, %v1735
        %1813 = vst.msk [vmem:[#allocation4 + $0x1c8] sm:$0xff] %vm896, %v1737
        %1814 = vst.msk [vmem:[#allocation4 + $0x1e0] sm:$0xff] %vm896, %v1739
        %1815 = vst.msk [vmem:[#allocation4 + $0x1f8] sm:$0xff] %vm896, %v1741
        %1816 = vst.msk [vmem:[#allocation4 + $0x210] sm:$0xff] %vm896, %v1743
        %1817 = vst.msk [vmem:[#allocation4 + $0x228] sm:$0xff] %vm896, %v1745
        %1818 = vst.msk [vmem:[#allocation4 + $0x240] sm:$0xff] %vm896, %v1747
        %1819 = vst.msk [vmem:[#allocation4 + $0x258] sm:$0xff] %vm896, %v1749
        %1820 = vst.msk [vmem:[#allocation4 + $0x270] sm:$0xff] %vm896, %v1751
        %1821 = vst.msk [vmem:[#allocation4 + $0x288] sm:$0xff] %vm896, %v1753
        %1822 = vst.msk [vmem:[#allocation4 + $0x2a0] sm:$0xff] %vm896, %v1755
        %1823 = vst.msk [vmem:[#allocation4 + $0x2b8] sm:$0xff] %vm896, %v1757
        %1824 = vst.msk [vmem:[#allocation4 + $0x2d0] sm:$0xff] %vm896, %v1759
        %1825 = vst.msk [vmem:[#allocation4 + $0x2e8] sm:$0xff] %vm896, %v1761
        %v1826 = vld [vmem:[#allocation2 + $0x7] sm:$0xff]
        %v1827 = vld [vmem:[#allocation2 + $0xf] sm:$0xff]
        %v1828 = vld [vmem:[#allocation2 + $0x17] sm:$0xff]
        %v1829 = vld [vmem:[#allocation2 + $0x1f] sm:$0xff]
        %v1830 = vld [vmem:[#allocation2 + $0x27] sm:$0xff]
        %v1831 = vld [vmem:[#allocation2 + $0x2f] sm:$0xff]
        %v1832 = vld [vmem:[#allocation2 + $0x37] sm:$0xff]
        %v1833 = vld [vmem:[#allocation2 + $0x3f] sm:$0xff]
        %v1834 = vld [vmem:[#allocation2 + $0x47] sm:$0xff]
        %v1835 = vld [vmem:[#allocation2 + $0x4f] sm:$0xff]
        %v1836 = vld [vmem:[#allocation2 + $0x57] sm:$0xff]
        %v1837 = vld [vmem:[#allocation2 + $0x5f] sm:$0xff]
        %v1838 = vld [vmem:[#allocation2 + $0x67] sm:$0xff]
        %v1839 = vld [vmem:[#allocation2 + $0x6f] sm:$0xff]
        %v1840 = vld [vmem:[#allocation2 + $0x77] sm:$0xff]
        %v1841 = vld [vmem:[#allocation2 + $0x7f] sm:$0xff]
        %v1842 = vld [vmem:[#allocation2 + $0x87] sm:$0xff]
        %v1843 = vld [vmem:[#allocation2 + $0x8f] sm:$0xff]
        %v1844 = vld [vmem:[#allocation2 + $0x97] sm:$0xff]
        %v1845 = vld [vmem:[#allocation2 + $0x9f] sm:$0xff]
        %v1846 = vld [vmem:[#allocation2 + $0xa7] sm:$0xff]
        %v1847 = vld [vmem:[#allocation2 + $0xaf] sm:$0xff]
        %v1848 = vld [vmem:[#allocation2 + $0xb7] sm:$0xff]
        %v1849 = vld [vmem:[#allocation2 + $0xbf] sm:$0xff]
        %v1850 = vld [vmem:[#allocation2 + $0xc7] sm:$0xff]
        %v1851 = vld [vmem:[#allocation2 + $0xcf] sm:$0xff]
        %v1852 = vld [vmem:[#allocation2 + $0xd7] sm:$0xff]
        %v1853 = vld [vmem:[#allocation2 + $0xdf] sm:$0xff]
        %v1854 = vld [vmem:[#allocation2 + $0xe7] sm:$0xff]
        %v1855 = vld [vmem:[#allocation2 + $0xef] sm:$0xff]
        %v1856 = vld [vmem:[#allocation2 + $0xf7] sm:$0xff]
        %v1857 = vld [vmem:[#allocation2 + $0xff] sm:$0xff]
        %1890 = vrot.lane.b32.xlu0 %v1826, 96
        %v1891 = vpop.permute.xlu0 %1890
        %1892 = vrot.lane.b32.xlu0 %v1827, 96
        %v1893 = vpop.permute.xlu0 %1892
        %1894 = vrot.lane.b32.xlu0 %v1828, 96
        %v1895 = vpop.permute.xlu0 %1894
        %1896 = vrot.lane.b32.xlu0 %v1829, 96
        %v1897 = vpop.permute.xlu0 %1896
        %1898 = vrot.lane.b32.xlu0 %v1830, 96
        %v1899 = vpop.permute.xlu0 %1898
        %1900 = vrot.lane.b32.xlu0 %v1831, 96
        %v1901 = vpop.permute.xlu0 %1900
        %1902 = vrot.lane.b32.xlu0 %v1832, 96
        %v1903 = vpop.permute.xlu0 %1902
        %1904 = vrot.lane.b32.xlu0 %v1833, 96
        %v1905 = vpop.permute.xlu0 %1904
        %1906 = vrot.lane.b32.xlu0 %v1834, 96
        %v1907 = vpop.permute.xlu0 %1906
        %1908 = vrot.lane.b32.xlu0 %v1835, 96
        %v1909 = vpop.permute.xlu0 %1908
        %1910 = vrot.lane.b32.xlu0 %v1836, 96
        %v1911 = vpop.permute.xlu0 %1910
        %1912 = vrot.lane.b32.xlu0 %v1837, 96
        %v1913 = vpop.permute.xlu0 %1912
        %1914 = vrot.lane.b32.xlu0 %v1838, 96
        %v1915 = vpop.permute.xlu0 %1914
        %1916 = vrot.lane.b32.xlu0 %v1839, 96
        %v1917 = vpop.permute.xlu0 %1916
        %1918 = vrot.lane.b32.xlu0 %v1840, 96
        %v1919 = vpop.permute.xlu0 %1918
        %1920 = vrot.lane.b32.xlu0 %v1841, 96
        %v1921 = vpop.permute.xlu0 %1920
        %1922 = vrot.lane.b32.xlu0 %v1842, 96
        %v1923 = vpop.permute.xlu0 %1922
        %1924 = vrot.lane.b32.xlu0 %v1843, 96
        %v1925 = vpop.permute.xlu0 %1924
        %1926 = vrot.lane.b32.xlu0 %v1844, 96
        %v1927 = vpop.permute.xlu0 %1926
        %1928 = vrot.lane.b32.xlu0 %v1845, 96
        %v1929 = vpop.permute.xlu0 %1928
        %1930 = vrot.lane.b32.xlu0 %v1846, 96
        %v1931 = vpop.permute.xlu0 %1930
        %1932 = vrot.lane.b32.xlu0 %v1847, 96
        %v1933 = vpop.permute.xlu0 %1932
        %1934 = vrot.lane.b32.xlu0 %v1848, 96
        %v1935 = vpop.permute.xlu0 %1934
        %1936 = vrot.lane.b32.xlu0 %v1849, 96
        %v1937 = vpop.permute.xlu0 %1936
        %1938 = vrot.lane.b32.xlu0 %v1850, 96
        %v1939 = vpop.permute.xlu0 %1938
        %1940 = vrot.lane.b32.xlu0 %v1851, 96
        %v1941 = vpop.permute.xlu0 %1940
        %1942 = vrot.lane.b32.xlu0 %v1852, 96
        %v1943 = vpop.permute.xlu0 %1942
        %1944 = vrot.lane.b32.xlu0 %v1853, 96
        %v1945 = vpop.permute.xlu0 %1944
        %1946 = vrot.lane.b32.xlu0 %v1854, 96
        %v1947 = vpop.permute.xlu0 %1946
        %1948 = vrot.lane.b32.xlu0 %v1855, 96
        %v1949 = vpop.permute.xlu0 %1948
        %1950 = vrot.lane.b32.xlu0 %v1856, 96
        %v1951 = vpop.permute.xlu0 %1950
        %1952 = vrot.lane.b32.xlu0 %v1857, 96
        %v1953 = vpop.permute.xlu0 %1952
        %1986 = vst.msk [vmem:[#allocation4] sm:$0xff] %vm1089, %v1891
        %1987 = vst.msk [vmem:[#allocation4 + $0x18] sm:$0xff] %vm1089, %v1893
        %1988 = vst.msk [vmem:[#allocation4 + $0x30] sm:$0xff] %vm1089, %v1895
        %1989 = vst.msk [vmem:[#allocation4 + $0x48] sm:$0xff] %vm1089, %v1897
        %1990 = vst.msk [vmem:[#allocation4 + $0x60] sm:$0xff] %vm1089, %v1899
        %1991 = vst.msk [vmem:[#allocation4 + $0x78] sm:$0xff] %vm1089, %v1901
        %1992 = vst.msk [vmem:[#allocation4 + $0x90] sm:$0xff] %vm1089, %v1903
        %1993 = vst.msk [vmem:[#allocation4 + $0xa8] sm:$0xff] %vm1089, %v1905
        %1994 = vst.msk [vmem:[#allocation4 + $0xc0] sm:$0xff] %vm1089, %v1907
        %1995 = vst.msk [vmem:[#allocation4 + $0xd8] sm:$0xff] %vm1089, %v1909
        %1996 = vst.msk [vmem:[#allocation4 + $0xf0] sm:$0xff] %vm1089, %v1911
        %1997 = vst.msk [vmem:[#allocation4 + $0x108] sm:$0xff] %vm1089, %v1913
        %1998 = vst.msk [vmem:[#allocation4 + $0x120] sm:$0xff] %vm1089, %v1915
        %1999 = vst.msk [vmem:[#allocation4 + $0x138] sm:$0xff] %vm1089, %v1917
        %2000 = vst.msk [vmem:[#allocation4 + $0x150] sm:$0xff] %vm1089, %v1919
        %2001 = vst.msk [vmem:[#allocation4 + $0x168] sm:$0xff] %vm1089, %v1921
        %2002 = vst.msk [vmem:[#allocation4 + $0x180] sm:$0xff] %vm1089, %v1923
        %2003 = vst.msk [vmem:[#allocation4 + $0x198] sm:$0xff] %vm1089, %v1925
        %2004 = vst.msk [vmem:[#allocation4 + $0x1b0] sm:$0xff] %vm1089, %v1927
        %2005 = vst.msk [vmem:[#allocation4 + $0x1c8] sm:$0xff] %vm1089, %v1929
        %2006 = vst.msk [vmem:[#allocation4 + $0x1e0] sm:$0xff] %vm1089, %v1931
        %2007 = vst.msk [vmem:[#allocation4 + $0x1f8] sm:$0xff] %vm1089, %v1933
        %2008 = vst.msk [vmem:[#allocation4 + $0x210] sm:$0xff] %vm1089, %v1935
        %2009 = vst.msk [vmem:[#allocation4 + $0x228] sm:$0xff] %vm1089, %v1937
        %2010 = vst.msk [vmem:[#allocation4 + $0x240] sm:$0xff] %vm1089, %v1939
        %2011 = vst.msk [vmem:[#allocation4 + $0x258] sm:$0xff] %vm1089, %v1941
        %2012 = vst.msk [vmem:[#allocation4 + $0x270] sm:$0xff] %vm1089, %v1943
        %2013 = vst.msk [vmem:[#allocation4 + $0x288] sm:$0xff] %vm1089, %v1945
        %2014 = vst.msk [vmem:[#allocation4 + $0x2a0] sm:$0xff] %vm1089, %v1947
        %2015 = vst.msk [vmem:[#allocation4 + $0x2b8] sm:$0xff] %vm1089, %v1949
        %2016 = vst.msk [vmem:[#allocation4 + $0x2d0] sm:$0xff] %vm1089, %v1951
        %2017 = vst.msk [vmem:[#allocation4 + $0x2e8] sm:$0xff] %vm1089, %v1953
        %v2018 = vld [vmem:[#allocation2 + $0x8] sm:$0xff]
        %v2019 = vld [vmem:[#allocation2 + $0x10] sm:$0xff]
        %v2020 = vld [vmem:[#allocation2 + $0x18] sm:$0xff]
        %v2021 = vld [vmem:[#allocation2 + $0x20] sm:$0xff]
        %v2022 = vld [vmem:[#allocation2 + $0x28] sm:$0xff]
        %v2023 = vld [vmem:[#allocation2 + $0x30] sm:$0xff]
        %v2024 = vld [vmem:[#allocation2 + $0x38] sm:$0xff]
        %v2025 = vld [vmem:[#allocation2 + $0x40] sm:$0xff]
        %v2026 = vld [vmem:[#allocation2 + $0x48] sm:$0xff]
        %v2027 = vld [vmem:[#allocation2 + $0x50] sm:$0xff]
        %v2028 = vld [vmem:[#allocation2 + $0x58] sm:$0xff]
        %v2029 = vld [vmem:[#allocation2 + $0x60] sm:$0xff]
        %v2030 = vld [vmem:[#allocation2 + $0x68] sm:$0xff]
        %v2031 = vld [vmem:[#allocation2 + $0x70] sm:$0xff]
        %v2032 = vld [vmem:[#allocation2 + $0x78] sm:$0xff]
        %v2033 = vld [vmem:[#allocation2 + $0x80] sm:$0xff]
        %v2034 = vld [vmem:[#allocation2 + $0x88] sm:$0xff]
        %v2035 = vld [vmem:[#allocation2 + $0x90] sm:$0xff]
        %v2036 = vld [vmem:[#allocation2 + $0x98] sm:$0xff]
        %v2037 = vld [vmem:[#allocation2 + $0xa0] sm:$0xff]
        %v2038 = vld [vmem:[#allocation2 + $0xa8] sm:$0xff]
        %v2039 = vld [vmem:[#allocation2 + $0xb0] sm:$0xff]
        %v2040 = vld [vmem:[#allocation2 + $0xb8] sm:$0xff]
        %v2041 = vld [vmem:[#allocation2 + $0xc0] sm:$0xff]
        %v2042 = vld [vmem:[#allocation2 + $0xc8] sm:$0xff]
        %v2043 = vld [vmem:[#allocation2 + $0xd0] sm:$0xff]
        %v2044 = vld [vmem:[#allocation2 + $0xd8] sm:$0xff]
        %v2045 = vld [vmem:[#allocation2 + $0xe0] sm:$0xff]
        %v2046 = vld [vmem:[#allocation2 + $0xe8] sm:$0xff]
        %v2047 = vld [vmem:[#allocation2 + $0xf0] sm:$0xff]
        %v2048 = vld [vmem:[#allocation2 + $0xf8] sm:$0xff]
        %v2049 = vld [vmem:[#allocation2 + $0x100] sm:$0xff]
        %2050 = vst.msk [vmem:[#allocation4 + $0x8] sm:$0xff] %vm412, %v2018
        %2051 = vst.msk [vmem:[#allocation4 + $0x20] sm:$0xff] %vm412, %v2019
        %2052 = vst.msk [vmem:[#allocation4 + $0x38] sm:$0xff] %vm412, %v2020
        %2053 = vst.msk [vmem:[#allocation4 + $0x50] sm:$0xff] %vm412, %v2021
        %2054 = vst.msk [vmem:[#allocation4 + $0x68] sm:$0xff] %vm412, %v2022
        %2055 = vst.msk [vmem:[#allocation4 + $0x80] sm:$0xff] %vm412, %v2023
        %2056 = vst.msk [vmem:[#allocation4 + $0x98] sm:$0xff] %vm412, %v2024
        %2057 = vst.msk [vmem:[#allocation4 + $0xb0] sm:$0xff] %vm412, %v2025
        %2058 = vst.msk [vmem:[#allocation4 + $0xc8] sm:$0xff] %vm412, %v2026
        %2059 = vst.msk [vmem:[#allocation4 + $0xe0] sm:$0xff] %vm412, %v2027
        %2060 = vst.msk [vmem:[#allocation4 + $0xf8] sm:$0xff] %vm412, %v2028
        %2061 = vst.msk [vmem:[#allocation4 + $0x110] sm:$0xff] %vm412, %v2029
        %2062 = vst.msk [vmem:[#allocation4 + $0x128] sm:$0xff] %vm412, %v2030
        %2063 = vst.msk [vmem:[#allocation4 + $0x140] sm:$0xff] %vm412, %v2031
        %2064 = vst.msk [vmem:[#allocation4 + $0x158] sm:$0xff] %vm412, %v2032
        %2065 = vst.msk [vmem:[#allocation4 + $0x170] sm:$0xff] %vm412, %v2033
        %2066 = vst.msk [vmem:[#allocation4 + $0x188] sm:$0xff] %vm412, %v2034
        %2067 = vst.msk [vmem:[#allocation4 + $0x1a0] sm:$0xff] %vm412, %v2035
        %2068 = vst.msk [vmem:[#allocation4 + $0x1b8] sm:$0xff] %vm412, %v2036
        %2069 = vst.msk [vmem:[#allocation4 + $0x1d0] sm:$0xff] %vm412, %v2037
        %2070 = vst.msk [vmem:[#allocation4 + $0x1e8] sm:$0xff] %vm412, %v2038
        %2071 = vst.msk [vmem:[#allocation4 + $0x200] sm:$0xff] %vm412, %v2039
        %2072 = vst.msk [vmem:[#allocation4 + $0x218] sm:$0xff] %vm412, %v2040
        %2073 = vst.msk [vmem:[#allocation4 + $0x230] sm:$0xff] %vm412, %v2041
        %2074 = vst.msk [vmem:[#allocation4 + $0x248] sm:$0xff] %vm412, %v2042
        %2075 = vst.msk [vmem:[#allocation4 + $0x260] sm:$0xff] %vm412, %v2043
        %2076 = vst.msk [vmem:[#allocation4 + $0x278] sm:$0xff] %vm412, %v2044
        %2077 = vst.msk [vmem:[#allocation4 + $0x290] sm:$0xff] %vm412, %v2045
        %2078 = vst.msk [vmem:[#allocation4 + $0x2a8] sm:$0xff] %vm412, %v2046
        %2079 = vst.msk [vmem:[#allocation4 + $0x2c0] sm:$0xff] %vm412, %v2047
        %2080 = vst.msk [vmem:[#allocation4 + $0x2d8] sm:$0xff] %vm412, %v2048
        %2081 = vst.msk [vmem:[#allocation4 + $0x2f0] sm:$0xff] %vm412, %v2049
        %v2082 = vld [vmem:[#allocation2 + $0x9] sm:$0xff]
        %v2083 = vld [vmem:[#allocation2 + $0x11] sm:$0xff]
        %v2084 = vld [vmem:[#allocation2 + $0x19] sm:$0xff]
        %v2085 = vld [vmem:[#allocation2 + $0x21] sm:$0xff]
        %v2086 = vld [vmem:[#allocation2 + $0x29] sm:$0xff]
        %v2087 = vld [vmem:[#allocation2 + $0x31] sm:$0xff]
        %v2088 = vld [vmem:[#allocation2 + $0x39] sm:$0xff]
        %v2089 = vld [vmem:[#allocation2 + $0x41] sm:$0xff]
        %v2090 = vld [vmem:[#allocation2 + $0x49] sm:$0xff]
        %v2091 = vld [vmem:[#allocation2 + $0x51] sm:$0xff]
        %v2092 = vld [vmem:[#allocation2 + $0x59] sm:$0xff]
        %v2093 = vld [vmem:[#allocation2 + $0x61] sm:$0xff]
        %v2094 = vld [vmem:[#allocation2 + $0x69] sm:$0xff]
        %v2095 = vld [vmem:[#allocation2 + $0x71] sm:$0xff]
        %v2096 = vld [vmem:[#allocation2 + $0x79] sm:$0xff]
        %v2097 = vld [vmem:[#allocation2 + $0x81] sm:$0xff]
        %v2098 = vld [vmem:[#allocation2 + $0x89] sm:$0xff]
        %v2099 = vld [vmem:[#allocation2 + $0x91] sm:$0xff]
        %v2100 = vld [vmem:[#allocation2 + $0x99] sm:$0xff]
        %v2101 = vld [vmem:[#allocation2 + $0xa1] sm:$0xff]
        %v2102 = vld [vmem:[#allocation2 + $0xa9] sm:$0xff]
        %v2103 = vld [vmem:[#allocation2 + $0xb1] sm:$0xff]
        %v2104 = vld [vmem:[#allocation2 + $0xb9] sm:$0xff]
        %v2105 = vld [vmem:[#allocation2 + $0xc1] sm:$0xff]
        %v2106 = vld [vmem:[#allocation2 + $0xc9] sm:$0xff]
        %v2107 = vld [vmem:[#allocation2 + $0xd1] sm:$0xff]
        %v2108 = vld [vmem:[#allocation2 + $0xd9] sm:$0xff]
        %v2109 = vld [vmem:[#allocation2 + $0xe1] sm:$0xff]
        %v2110 = vld [vmem:[#allocation2 + $0xe9] sm:$0xff]
        %v2111 = vld [vmem:[#allocation2 + $0xf1] sm:$0xff]
        %v2112 = vld [vmem:[#allocation2 + $0xf9] sm:$0xff]
        %v2113 = vld [vmem:[#allocation2 + $0x101] sm:$0xff]
        %2146 = vrot.lane.b32.xlu0 %v2082, 32
        %v2147 = vpop.permute.xlu0 %2146
        %2148 = vrot.lane.b32.xlu0 %v2083, 32
        %v2149 = vpop.permute.xlu0 %2148
        %2150 = vrot.lane.b32.xlu0 %v2084, 32
        %v2151 = vpop.permute.xlu0 %2150
        %2152 = vrot.lane.b32.xlu0 %v2085, 32
        %v2153 = vpop.permute.xlu0 %2152
        %2154 = vrot.lane.b32.xlu0 %v2086, 32
        %v2155 = vpop.permute.xlu0 %2154
        %2156 = vrot.lane.b32.xlu0 %v2087, 32
        %v2157 = vpop.permute.xlu0 %2156
        %2158 = vrot.lane.b32.xlu0 %v2088, 32
        %v2159 = vpop.permute.xlu0 %2158
        %2160 = vrot.lane.b32.xlu0 %v2089, 32
        %v2161 = vpop.permute.xlu0 %2160
        %2162 = vrot.lane.b32.xlu0 %v2090, 32
        %v2163 = vpop.permute.xlu0 %2162
        %2164 = vrot.lane.b32.xlu0 %v2091, 32
        %v2165 = vpop.permute.xlu0 %2164
        %2166 = vrot.lane.b32.xlu0 %v2092, 32
        %v2167 = vpop.permute.xlu0 %2166
        %2168 = vrot.lane.b32.xlu0 %v2093, 32
        %v2169 = vpop.permute.xlu0 %2168
        %2170 = vrot.lane.b32.xlu0 %v2094, 32
        %v2171 = vpop.permute.xlu0 %2170
        %2172 = vrot.lane.b32.xlu0 %v2095, 32
        %v2173 = vpop.permute.xlu0 %2172
        %2174 = vrot.lane.b32.xlu0 %v2096, 32
        %v2175 = vpop.permute.xlu0 %2174
        %2176 = vrot.lane.b32.xlu0 %v2097, 32
        %v2177 = vpop.permute.xlu0 %2176
        %2178 = vrot.lane.b32.xlu0 %v2098, 32
        %v2179 = vpop.permute.xlu0 %2178
        %2180 = vrot.lane.b32.xlu0 %v2099, 32
        %v2181 = vpop.permute.xlu0 %2180
        %2182 = vrot.lane.b32.xlu0 %v2100, 32
        %v2183 = vpop.permute.xlu0 %2182
        %2184 = vrot.lane.b32.xlu0 %v2101, 32
        %v2185 = vpop.permute.xlu0 %2184
        %2186 = vrot.lane.b32.xlu0 %v2102, 32
        %v2187 = vpop.permute.xlu0 %2186
        %2188 = vrot.lane.b32.xlu0 %v2103, 32
        %v2189 = vpop.permute.xlu0 %2188
        %2190 = vrot.lane.b32.xlu0 %v2104, 32
        %v2191 = vpop.permute.xlu0 %2190
        %2192 = vrot.lane.b32.xlu0 %v2105, 32
        %v2193 = vpop.permute.xlu0 %2192
        %2194 = vrot.lane.b32.xlu0 %v2106, 32
        %v2195 = vpop.permute.xlu0 %2194
        %2196 = vrot.lane.b32.xlu0 %v2107, 32
        %v2197 = vpop.permute.xlu0 %2196
        %2198 = vrot.lane.b32.xlu0 %v2108, 32
        %v2199 = vpop.permute.xlu0 %2198
        %2200 = vrot.lane.b32.xlu0 %v2109, 32
        %v2201 = vpop.permute.xlu0 %2200
        %2202 = vrot.lane.b32.xlu0 %v2110, 32
        %v2203 = vpop.permute.xlu0 %2202
        %2204 = vrot.lane.b32.xlu0 %v2111, 32
        %v2205 = vpop.permute.xlu0 %2204
        %2206 = vrot.lane.b32.xlu0 %v2112, 32
        %v2207 = vpop.permute.xlu0 %2206
        %2208 = vrot.lane.b32.xlu0 %v2113, 32
        %v2209 = vpop.permute.xlu0 %2208
        %2242 = vst.msk [vmem:[#allocation4 + $0x8] sm:$0xff] %vm703, %v2147
        %2243 = vst.msk [vmem:[#allocation4 + $0x20] sm:$0xff] %vm703, %v2149
        %2244 = vst.msk [vmem:[#allocation4 + $0x38] sm:$0xff] %vm703, %v2151
        %2245 = vst.msk [vmem:[#allocation4 + $0x50] sm:$0xff] %vm703, %v2153
        %2246 = vst.msk [vmem:[#allocation4 + $0x68] sm:$0xff] %vm703, %v2155
        %2247 = vst.msk [vmem:[#allocation4 + $0x80] sm:$0xff] %vm703, %v2157
        %2248 = vst.msk [vmem:[#allocation4 + $0x98] sm:$0xff] %vm703, %v2159
        %2249 = vst.msk [vmem:[#allocation4 + $0xb0] sm:$0xff] %vm703, %v2161
        %2250 = vst.msk [vmem:[#allocation4 + $0xc8] sm:$0xff] %vm703, %v2163
        %2251 = vst.msk [vmem:[#allocation4 + $0xe0] sm:$0xff] %vm703, %v2165
        %2252 = vst.msk [vmem:[#allocation4 + $0xf8] sm:$0xff] %vm703, %v2167
        %2253 = vst.msk [vmem:[#allocation4 + $0x110] sm:$0xff] %vm703, %v2169
        %2254 = vst.msk [vmem:[#allocation4 + $0x128] sm:$0xff] %vm703, %v2171
        %2255 = vst.msk [vmem:[#allocation4 + $0x140] sm:$0xff] %vm703, %v2173
        %2256 = vst.msk [vmem:[#allocation4 + $0x158] sm:$0xff] %vm703, %v2175
        %2257 = vst.msk [vmem:[#allocation4 + $0x170] sm:$0xff] %vm703, %v2177
        %2258 = vst.msk [vmem:[#allocation4 + $0x188] sm:$0xff] %vm703, %v2179
        %2259 = vst.msk [vmem:[#allocation4 + $0x1a0] sm:$0xff] %vm703, %v2181
        %2260 = vst.msk [vmem:[#allocation4 + $0x1b8] sm:$0xff] %vm703, %v2183
        %2261 = vst.msk [vmem:[#allocation4 + $0x1d0] sm:$0xff] %vm703, %v2185
        %2262 = vst.msk [vmem:[#allocation4 + $0x1e8] sm:$0xff] %vm703, %v2187
        %2263 = vst.msk [vmem:[#allocation4 + $0x200] sm:$0xff] %vm703, %v2189
        %2264 = vst.msk [vmem:[#allocation4 + $0x218] sm:$0xff] %vm703, %v2191
        %2265 = vst.msk [vmem:[#allocation4 + $0x230] sm:$0xff] %vm703, %v2193
        %2266 = vst.msk [vmem:[#allocation4 + $0x248] sm:$0xff] %vm703, %v2195
        %2267 = vst.msk [vmem:[#allocation4 + $0x260] sm:$0xff] %vm703, %v2197
        %2268 = vst.msk [vmem:[#allocation4 + $0x278] sm:$0xff] %vm703, %v2199
        %2269 = vst.msk [vmem:[#allocation4 + $0x290] sm:$0xff] %vm703, %v2201
        %2270 = vst.msk [vmem:[#allocation4 + $0x2a8] sm:$0xff] %vm703, %v2203
        %2271 = vst.msk [vmem:[#allocation4 + $0x2c0] sm:$0xff] %vm703, %v2205
        %2272 = vst.msk [vmem:[#allocation4 + $0x2d8] sm:$0xff] %vm703, %v2207
        %2273 = vst.msk [vmem:[#allocation4 + $0x2f0] sm:$0xff] %vm703, %v2209
        %v2274 = vld [vmem:[#allocation2 + $0xa] sm:$0xff]
        %v2275 = vld [vmem:[#allocation2 + $0x12] sm:$0xff]
        %v2276 = vld [vmem:[#allocation2 + $0x1a] sm:$0xff]
        %v2277 = vld [vmem:[#allocation2 + $0x22] sm:$0xff]
        %v2278 = vld [vmem:[#allocation2 + $0x2a] sm:$0xff]
        %v2279 = vld [vmem:[#allocation2 + $0x32] sm:$0xff]
        %v2280 = vld [vmem:[#allocation2 + $0x3a] sm:$0xff]
        %v2281 = vld [vmem:[#allocation2 + $0x42] sm:$0xff]
        %v2282 = vld [vmem:[#allocation2 + $0x4a] sm:$0xff]
        %v2283 = vld [vmem:[#allocation2 + $0x52] sm:$0xff]
        %v2284 = vld [vmem:[#allocation2 + $0x5a] sm:$0xff]
        %v2285 = vld [vmem:[#allocation2 + $0x62] sm:$0xff]
        %v2286 = vld [vmem:[#allocation2 + $0x6a] sm:$0xff]
        %v2287 = vld [vmem:[#allocation2 + $0x72] sm:$0xff]
        %v2288 = vld [vmem:[#allocation2 + $0x7a] sm:$0xff]
        %v2289 = vld [vmem:[#allocation2 + $0x82] sm:$0xff]
        %v2290 = vld [vmem:[#allocation2 + $0x8a] sm:$0xff]
        %v2291 = vld [vmem:[#allocation2 + $0x92] sm:$0xff]
        %v2292 = vld [vmem:[#allocation2 + $0x9a] sm:$0xff]
        %v2293 = vld [vmem:[#allocation2 + $0xa2] sm:$0xff]
        %v2294 = vld [vmem:[#allocation2 + $0xaa] sm:$0xff]
        %v2295 = vld [vmem:[#allocation2 + $0xb2] sm:$0xff]
        %v2296 = vld [vmem:[#allocation2 + $0xba] sm:$0xff]
        %v2297 = vld [vmem:[#allocation2 + $0xc2] sm:$0xff]
        %v2298 = vld [vmem:[#allocation2 + $0xca] sm:$0xff]
        %v2299 = vld [vmem:[#allocation2 + $0xd2] sm:$0xff]
        %v2300 = vld [vmem:[#allocation2 + $0xda] sm:$0xff]
        %v2301 = vld [vmem:[#allocation2 + $0xe2] sm:$0xff]
        %v2302 = vld [vmem:[#allocation2 + $0xea] sm:$0xff]
        %v2303 = vld [vmem:[#allocation2 + $0xf2] sm:$0xff]
        %v2304 = vld [vmem:[#allocation2 + $0xfa] sm:$0xff]
        %v2305 = vld [vmem:[#allocation2 + $0x102] sm:$0xff]
        %2338 = vrot.lane.b32.xlu0 %v2274, 64
        %v2339 = vpop.permute.xlu0 %2338
        %2340 = vrot.lane.b32.xlu0 %v2275, 64
        %v2341 = vpop.permute.xlu0 %2340
        %2342 = vrot.lane.b32.xlu0 %v2276, 64
        %v2343 = vpop.permute.xlu0 %2342
        %2344 = vrot.lane.b32.xlu0 %v2277, 64
        %v2345 = vpop.permute.xlu0 %2344
        %2346 = vrot.lane.b32.xlu0 %v2278, 64
        %v2347 = vpop.permute.xlu0 %2346
        %2348 = vrot.lane.b32.xlu0 %v2279, 64
        %v2349 = vpop.permute.xlu0 %2348
        %2350 = vrot.lane.b32.xlu0 %v2280, 64
        %v2351 = vpop.permute.xlu0 %2350
        %2352 = vrot.lane.b32.xlu0 %v2281, 64
        %v2353 = vpop.permute.xlu0 %2352
        %2354 = vrot.lane.b32.xlu0 %v2282, 64
        %v2355 = vpop.permute.xlu0 %2354
        %2356 = vrot.lane.b32.xlu0 %v2283, 64
        %v2357 = vpop.permute.xlu0 %2356
        %2358 = vrot.lane.b32.xlu0 %v2284, 64
        %v2359 = vpop.permute.xlu0 %2358
        %2360 = vrot.lane.b32.xlu0 %v2285, 64
        %v2361 = vpop.permute.xlu0 %2360
        %2362 = vrot.lane.b32.xlu0 %v2286, 64
        %v2363 = vpop.permute.xlu0 %2362
        %2364 = vrot.lane.b32.xlu0 %v2287, 64
        %v2365 = vpop.permute.xlu0 %2364
        %2366 = vrot.lane.b32.xlu0 %v2288, 64
        %v2367 = vpop.permute.xlu0 %2366
        %2368 = vrot.lane.b32.xlu0 %v2289, 64
        %v2369 = vpop.permute.xlu0 %2368
        %2370 = vrot.lane.b32.xlu0 %v2290, 64
        %v2371 = vpop.permute.xlu0 %2370
        %2372 = vrot.lane.b32.xlu0 %v2291, 64
        %v2373 = vpop.permute.xlu0 %2372
        %2374 = vrot.lane.b32.xlu0 %v2292, 64
        %v2375 = vpop.permute.xlu0 %2374
        %2376 = vrot.lane.b32.xlu0 %v2293, 64
        %v2377 = vpop.permute.xlu0 %2376
        %2378 = vrot.lane.b32.xlu0 %v2294, 64
        %v2379 = vpop.permute.xlu0 %2378
        %2380 = vrot.lane.b32.xlu0 %v2295, 64
        %v2381 = vpop.permute.xlu0 %2380
        %2382 = vrot.lane.b32.xlu0 %v2296, 64
        %v2383 = vpop.permute.xlu0 %2382
        %2384 = vrot.lane.b32.xlu0 %v2297, 64
        %v2385 = vpop.permute.xlu0 %2384
        %2386 = vrot.lane.b32.xlu0 %v2298, 64
        %v2387 = vpop.permute.xlu0 %2386
        %2388 = vrot.lane.b32.xlu0 %v2299, 64
        %v2389 = vpop.permute.xlu0 %2388
        %2390 = vrot.lane.b32.xlu0 %v2300, 64
        %v2391 = vpop.permute.xlu0 %2390
        %2392 = vrot.lane.b32.xlu0 %v2301, 64
        %v2393 = vpop.permute.xlu0 %2392
        %2394 = vrot.lane.b32.xlu0 %v2302, 64
        %v2395 = vpop.permute.xlu0 %2394
        %2396 = vrot.lane.b32.xlu0 %v2303, 64
        %v2397 = vpop.permute.xlu0 %2396
        %2398 = vrot.lane.b32.xlu0 %v2304, 64
        %v2399 = vpop.permute.xlu0 %2398
        %2400 = vrot.lane.b32.xlu0 %v2305, 64
        %v2401 = vpop.permute.xlu0 %2400
        %2434 = vst.msk [vmem:[#allocation4 + $0x8] sm:$0xff] %vm896, %v2339
        %2435 = vst.msk [vmem:[#allocation4 + $0x20] sm:$0xff] %vm896, %v2341
        %2436 = vst.msk [vmem:[#allocation4 + $0x38] sm:$0xff] %vm896, %v2343
        %2437 = vst.msk [vmem:[#allocation4 + $0x50] sm:$0xff] %vm896, %v2345
        %2438 = vst.msk [vmem:[#allocation4 + $0x68] sm:$0xff] %vm896, %v2347
        %2439 = vst.msk [vmem:[#allocation4 + $0x80] sm:$0xff] %vm896, %v2349
        %2440 = vst.msk [vmem:[#allocation4 + $0x98] sm:$0xff] %vm896, %v2351
        %2441 = vst.msk [vmem:[#allocation4 + $0xb0] sm:$0xff] %vm896, %v2353
        %2442 = vst.msk [vmem:[#allocation4 + $0xc8] sm:$0xff] %vm896, %v2355
        %2443 = vst.msk [vmem:[#allocation4 + $0xe0] sm:$0xff] %vm896, %v2357
        %2444 = vst.msk [vmem:[#allocation4 + $0xf8] sm:$0xff] %vm896, %v2359
        %2445 = vst.msk [vmem:[#allocation4 + $0x110] sm:$0xff] %vm896, %v2361
        %2446 = vst.msk [vmem:[#allocation4 + $0x128] sm:$0xff] %vm896, %v2363
        %2447 = vst.msk [vmem:[#allocation4 + $0x140] sm:$0xff] %vm896, %v2365
        %2448 = vst.msk [vmem:[#allocation4 + $0x158] sm:$0xff] %vm896, %v2367
        %2449 = vst.msk [vmem:[#allocation4 + $0x170] sm:$0xff] %vm896, %v2369
        %2450 = vst.msk [vmem:[#allocation4 + $0x188] sm:$0xff] %vm896, %v2371
        %2451 = vst.msk [vmem:[#allocation4 + $0x1a0] sm:$0xff] %vm896, %v2373
        %2452 = vst.msk [vmem:[#allocation4 + $0x1b8] sm:$0xff] %vm896, %v2375
        %2453 = vst.msk [vmem:[#allocation4 + $0x1d0] sm:$0xff] %vm896, %v2377
        %2454 = vst.msk [vmem:[#allocation4 + $0x1e8] sm:$0xff] %vm896, %v2379
        %2455 = vst.msk [vmem:[#allocation4 + $0x200] sm:$0xff] %vm896, %v2381
        %2456 = vst.msk [vmem:[#allocation4 + $0x218] sm:$0xff] %vm896, %v2383
        %2457 = vst.msk [vmem:[#allocation4 + $0x230] sm:$0xff] %vm896, %v2385
        %2458 = vst.msk [vmem:[#allocation4 + $0x248] sm:$0xff] %vm896, %v2387
        %2459 = vst.msk [vmem:[#allocation4 + $0x260] sm:$0xff] %vm896, %v2389
        %2460 = vst.msk [vmem:[#allocation4 + $0x278] sm:$0xff] %vm896, %v2391
        %2461 = vst.msk [vmem:[#allocation4 + $0x290] sm:$0xff] %vm896, %v2393
        %2462 = vst.msk [vmem:[#allocation4 + $0x2a8] sm:$0xff] %vm896, %v2395
        %2463 = vst.msk [vmem:[#allocation4 + $0x2c0] sm:$0xff] %vm896, %v2397
        %2464 = vst.msk [vmem:[#allocation4 + $0x2d8] sm:$0xff] %vm896, %v2399
        %2465 = vst.msk [vmem:[#allocation4 + $0x2f0] sm:$0xff] %vm896, %v2401
        %v2466 = vld [vmem:[#allocation2 + $0xb] sm:$0xff]
        %v2467 = vld [vmem:[#allocation2 + $0x13] sm:$0xff]
        %v2468 = vld [vmem:[#allocation2 + $0x1b] sm:$0xff]
        %v2469 = vld [vmem:[#allocation2 + $0x23] sm:$0xff]
        %v2470 = vld [vmem:[#allocation2 + $0x2b] sm:$0xff]
        %v2471 = vld [vmem:[#allocation2 + $0x33] sm:$0xff]
        %v2472 = vld [vmem:[#allocation2 + $0x3b] sm:$0xff]
        %v2473 = vld [vmem:[#allocation2 + $0x43] sm:$0xff]
        %v2474 = vld [vmem:[#allocation2 + $0x4b] sm:$0xff]
        %v2475 = vld [vmem:[#allocation2 + $0x53] sm:$0xff]
        %v2476 = vld [vmem:[#allocation2 + $0x5b] sm:$0xff]
        %v2477 = vld [vmem:[#allocation2 + $0x63] sm:$0xff]
        %v2478 = vld [vmem:[#allocation2 + $0x6b] sm:$0xff]
        %v2479 = vld [vmem:[#allocation2 + $0x73] sm:$0xff]
        %v2480 = vld [vmem:[#allocation2 + $0x7b] sm:$0xff]
        %v2481 = vld [vmem:[#allocation2 + $0x83] sm:$0xff]
        %v2482 = vld [vmem:[#allocation2 + $0x8b] sm:$0xff]
        %v2483 = vld [vmem:[#allocation2 + $0x93] sm:$0xff]
        %v2484 = vld [vmem:[#allocation2 + $0x9b] sm:$0xff]
        %v2485 = vld [vmem:[#allocation2 + $0xa3] sm:$0xff]
        %v2486 = vld [vmem:[#allocation2 + $0xab] sm:$0xff]
        %v2487 = vld [vmem:[#allocation2 + $0xb3] sm:$0xff]
        %v2488 = vld [vmem:[#allocation2 + $0xbb] sm:$0xff]
        %v2489 = vld [vmem:[#allocation2 + $0xc3] sm:$0xff]
        %v2490 = vld [vmem:[#allocation2 + $0xcb] sm:$0xff]
        %v2491 = vld [vmem:[#allocation2 + $0xd3] sm:$0xff]
        %v2492 = vld [vmem:[#allocation2 + $0xdb] sm:$0xff]
        %v2493 = vld [vmem:[#allocation2 + $0xe3] sm:$0xff]
        %v2494 = vld [vmem:[#allocation2 + $0xeb] sm:$0xff]
        %v2495 = vld [vmem:[#allocation2 + $0xf3] sm:$0xff]
        %v2496 = vld [vmem:[#allocation2 + $0xfb] sm:$0xff]
        %v2497 = vld [vmem:[#allocation2 + $0x103] sm:$0xff]
        %2530 = vrot.lane.b32.xlu0 %v2466, 96
        %v2531 = vpop.permute.xlu0 %2530
        %2532 = vrot.lane.b32.xlu0 %v2467, 96
        %v2533 = vpop.permute.xlu0 %2532
        %2534 = vrot.lane.b32.xlu0 %v2468, 96
        %v2535 = vpop.permute.xlu0 %2534
        %2536 = vrot.lane.b32.xlu0 %v2469, 96
        %v2537 = vpop.permute.xlu0 %2536
        %2538 = vrot.lane.b32.xlu0 %v2470, 96
        %v2539 = vpop.permute.xlu0 %2538
        %2540 = vrot.lane.b32.xlu0 %v2471, 96
        %v2541 = vpop.permute.xlu0 %2540
        %2542 = vrot.lane.b32.xlu0 %v2472, 96
        %v2543 = vpop.permute.xlu0 %2542
        %2544 = vrot.lane.b32.xlu0 %v2473, 96
        %v2545 = vpop.permute.xlu0 %2544
        %2546 = vrot.lane.b32.xlu0 %v2474, 96
        %v2547 = vpop.permute.xlu0 %2546
        %2548 = vrot.lane.b32.xlu0 %v2475, 96
        %v2549 = vpop.permute.xlu0 %2548
        %2550 = vrot.lane.b32.xlu0 %v2476, 96
        %v2551 = vpop.permute.xlu0 %2550
        %2552 = vrot.lane.b32.xlu0 %v2477, 96
        %v2553 = vpop.permute.xlu0 %2552
        %2554 = vrot.lane.b32.xlu0 %v2478, 96
        %v2555 = vpop.permute.xlu0 %2554
        %2556 = vrot.lane.b32.xlu0 %v2479, 96
        %v2557 = vpop.permute.xlu0 %2556
        %2558 = vrot.lane.b32.xlu0 %v2480, 96
        %v2559 = vpop.permute.xlu0 %2558
        %2560 = vrot.lane.b32.xlu0 %v2481, 96
        %v2561 = vpop.permute.xlu0 %2560
        %2562 = vrot.lane.b32.xlu0 %v2482, 96
        %v2563 = vpop.permute.xlu0 %2562
        %2564 = vrot.lane.b32.xlu0 %v2483, 96
        %v2565 = vpop.permute.xlu0 %2564
        %2566 = vrot.lane.b32.xlu0 %v2484, 96
        %v2567 = vpop.permute.xlu0 %2566
        %2568 = vrot.lane.b32.xlu0 %v2485, 96
        %v2569 = vpop.permute.xlu0 %2568
        %2570 = vrot.lane.b32.xlu0 %v2486, 96
        %v2571 = vpop.permute.xlu0 %2570
        %2572 = vrot.lane.b32.xlu0 %v2487, 96
        %v2573 = vpop.permute.xlu0 %2572
        %2574 = vrot.lane.b32.xlu0 %v2488, 96
        %v2575 = vpop.permute.xlu0 %2574
        %2576 = vrot.lane.b32.xlu0 %v2489, 96
        %v2577 = vpop.permute.xlu0 %2576
        %2578 = vrot.lane.b32.xlu0 %v2490, 96
        %v2579 = vpop.permute.xlu0 %2578
        %2580 = vrot.lane.b32.xlu0 %v2491, 96
        %v2581 = vpop.permute.xlu0 %2580
        %2582 = vrot.lane.b32.xlu0 %v2492, 96
        %v2583 = vpop.permute.xlu0 %2582
        %2584 = vrot.lane.b32.xlu0 %v2493, 96
        %v2585 = vpop.permute.xlu0 %2584
        %2586 = vrot.lane.b32.xlu0 %v2494, 96
        %v2587 = vpop.permute.xlu0 %2586
        %2588 = vrot.lane.b32.xlu0 %v2495, 96
        %v2589 = vpop.permute.xlu0 %2588
        %2590 = vrot.lane.b32.xlu0 %v2496, 96
        %v2591 = vpop.permute.xlu0 %2590
        %2592 = vrot.lane.b32.xlu0 %v2497, 96
        %v2593 = vpop.permute.xlu0 %2592
        %2626 = vst.msk [vmem:[#allocation4 + $0x8] sm:$0xff] %vm1089, %v2531
        %2627 = vst.msk [vmem:[#allocation4 + $0x20] sm:$0xff] %vm1089, %v2533
        %2628 = vst.msk [vmem:[#allocation4 + $0x38] sm:$0xff] %vm1089, %v2535
        %2629 = vst.msk [vmem:[#allocation4 + $0x50] sm:$0xff] %vm1089, %v2537
        %2630 = vst.msk [vmem:[#allocation4 + $0x68] sm:$0xff] %vm1089, %v2539
        %2631 = vst.msk [vmem:[#allocation4 + $0x80] sm:$0xff] %vm1089, %v2541
        %2632 = vst.msk [vmem:[#allocation4 + $0x98] sm:$0xff] %vm1089, %v2543
        %2633 = vst.msk [vmem:[#allocation4 + $0xb0] sm:$0xff] %vm1089, %v2545
        %2634 = vst.msk [vmem:[#allocation4 + $0xc8] sm:$0xff] %vm1089, %v2547
        %2635 = vst.msk [vmem:[#allocation4 + $0xe0] sm:$0xff] %vm1089, %v2549
        %2636 = vst.msk [vmem:[#allocation4 + $0xf8] sm:$0xff] %vm1089, %v2551
        %2637 = vst.msk [vmem:[#allocation4 + $0x110] sm:$0xff] %vm1089, %v2553
        %2638 = vst.msk [vmem:[#allocation4 + $0x128] sm:$0xff] %vm1089, %v2555
        %2639 = vst.msk [vmem:[#allocation4 + $0x140] sm:$0xff] %vm1089, %v2557
        %2640 = vst.msk [vmem:[#allocation4 + $0x158] sm:$0xff] %vm1089, %v2559
        %2641 = vst.msk [vmem:[#allocation4 + $0x170] sm:$0xff] %vm1089, %v2561
        %2642 = vst.msk [vmem:[#allocation4 + $0x188] sm:$0xff] %vm1089, %v2563
        %2643 = vst.msk [vmem:[#allocation4 + $0x1a0] sm:$0xff] %vm1089, %v2565
        %2644 = vst.msk [vmem:[#allocation4 + $0x1b8] sm:$0xff] %vm1089, %v2567
        %2645 = vst.msk [vmem:[#allocation4 + $0x1d0] sm:$0xff] %vm1089, %v2569
        %2646 = vst.msk [vmem:[#allocation4 + $0x1e8] sm:$0xff] %vm1089, %v2571
        %2647 = vst.msk [vmem:[#allocation4 + $0x200] sm:$0xff] %vm1089, %v2573
        %2648 = vst.msk [vmem:[#allocation4 + $0x218] sm:$0xff] %vm1089, %v2575
        %2649 = vst.msk [vmem:[#allocation4 + $0x230] sm:$0xff] %vm1089, %v2577
        %2650 = vst.msk [vmem:[#allocation4 + $0x248] sm:$0xff] %vm1089, %v2579
        %2651 = vst.msk [vmem:[#allocation4 + $0x260] sm:$0xff] %vm1089, %v2581
        %2652 = vst.msk [vmem:[#allocation4 + $0x278] sm:$0xff] %vm1089, %v2583
        %2653 = vst.msk [vmem:[#allocation4 + $0x290] sm:$0xff] %vm1089, %v2585
        %2654 = vst.msk [vmem:[#allocation4 + $0x2a8] sm:$0xff] %vm1089, %v2587
        %2655 = vst.msk [vmem:[#allocation4 + $0x2c0] sm:$0xff] %vm1089, %v2589
        %2656 = vst.msk [vmem:[#allocation4 + $0x2d8] sm:$0xff] %vm1089, %v2591
        %2657 = vst.msk [vmem:[#allocation4 + $0x2f0] sm:$0xff] %vm1089, %v2593
        %v2658 = vld [vmem:[#allocation2 + $0xc] sm:$0xff]
        %v2659 = vld [vmem:[#allocation2 + $0x14] sm:$0xff]
        %v2660 = vld [vmem:[#allocation2 + $0x1c] sm:$0xff]
        %v2661 = vld [vmem:[#allocation2 + $0x24] sm:$0xff]
        %v2662 = vld [vmem:[#allocation2 + $0x2c] sm:$0xff]
        %v2663 = vld [vmem:[#allocation2 + $0x34] sm:$0xff]
        %v2664 = vld [vmem:[#allocation2 + $0x3c] sm:$0xff]
        %v2665 = vld [vmem:[#allocation2 + $0x44] sm:$0xff]
        %v2666 = vld [vmem:[#allocation2 + $0x4c] sm:$0xff]
        %v2667 = vld [vmem:[#allocation2 + $0x54] sm:$0xff]
        %v2668 = vld [vmem:[#allocation2 + $0x5c] sm:$0xff]
        %v2669 = vld [vmem:[#allocation2 + $0x64] sm:$0xff]
        %v2670 = vld [vmem:[#allocation2 + $0x6c] sm:$0xff]
        %v2671 = vld [vmem:[#allocation2 + $0x74] sm:$0xff]
        %v2672 = vld [vmem:[#allocation2 + $0x7c] sm:$0xff]
        %v2673 = vld [vmem:[#allocation2 + $0x84] sm:$0xff]
        %v2674 = vld [vmem:[#allocation2 + $0x8c] sm:$0xff]
        %v2675 = vld [vmem:[#allocation2 + $0x94] sm:$0xff]
        %v2676 = vld [vmem:[#allocation2 + $0x9c] sm:$0xff]
        %v2677 = vld [vmem:[#allocation2 + $0xa4] sm:$0xff]
        %v2678 = vld [vmem:[#allocation2 + $0xac] sm:$0xff]
        %v2679 = vld [vmem:[#allocation2 + $0xb4] sm:$0xff]
        %v2680 = vld [vmem:[#allocation2 + $0xbc] sm:$0xff]
        %v2681 = vld [vmem:[#allocation2 + $0xc4] sm:$0xff]
        %v2682 = vld [vmem:[#allocation2 + $0xcc] sm:$0xff]
        %v2683 = vld [vmem:[#allocation2 + $0xd4] sm:$0xff]
        %v2684 = vld [vmem:[#allocation2 + $0xdc] sm:$0xff]
        %v2685 = vld [vmem:[#allocation2 + $0xe4] sm:$0xff]
        %v2686 = vld [vmem:[#allocation2 + $0xec] sm:$0xff]
        %v2687 = vld [vmem:[#allocation2 + $0xf4] sm:$0xff]
        %v2688 = vld [vmem:[#allocation2 + $0xfc] sm:$0xff]
        %v2689 = vld [vmem:[#allocation2 + $0x104] sm:$0xff]
        %2690 = vst.msk [vmem:[#allocation4 + $0x10] sm:$0xff] %vm412, %v2658
        %2691 = vst.msk [vmem:[#allocation4 + $0x28] sm:$0xff] %vm412, %v2659
        %2692 = vst.msk [vmem:[#allocation4 + $0x40] sm:$0xff] %vm412, %v2660
        %2693 = vst.msk [vmem:[#allocation4 + $0x58] sm:$0xff] %vm412, %v2661
        %2694 = vst.msk [vmem:[#allocation4 + $0x70] sm:$0xff] %vm412, %v2662
        %2695 = vst.msk [vmem:[#allocation4 + $0x88] sm:$0xff] %vm412, %v2663
        %2696 = vst.msk [vmem:[#allocation4 + $0xa0] sm:$0xff] %vm412, %v2664
        %2697 = vst.msk [vmem:[#allocation4 + $0xb8] sm:$0xff] %vm412, %v2665
        %2698 = vst.msk [vmem:[#allocation4 + $0xd0] sm:$0xff] %vm412, %v2666
        %2699 = vst.msk [vmem:[#allocation4 + $0xe8] sm:$0xff] %vm412, %v2667
        %2700 = vst.msk [vmem:[#allocation4 + $0x100] sm:$0xff] %vm412, %v2668
        %2701 = vst.msk [vmem:[#allocation4 + $0x118] sm:$0xff] %vm412, %v2669
        %2702 = vst.msk [vmem:[#allocation4 + $0x130] sm:$0xff] %vm412, %v2670
        %2703 = vst.msk [vmem:[#allocation4 + $0x148] sm:$0xff] %vm412, %v2671
        %2704 = vst.msk [vmem:[#allocation4 + $0x160] sm:$0xff] %vm412, %v2672
        %2705 = vst.msk [vmem:[#allocation4 + $0x178] sm:$0xff] %vm412, %v2673
        %2706 = vst.msk [vmem:[#allocation4 + $0x190] sm:$0xff] %vm412, %v2674
        %2707 = vst.msk [vmem:[#allocation4 + $0x1a8] sm:$0xff] %vm412, %v2675
        %2708 = vst.msk [vmem:[#allocation4 + $0x1c0] sm:$0xff] %vm412, %v2676
        %2709 = vst.msk [vmem:[#allocation4 + $0x1d8] sm:$0xff] %vm412, %v2677
        %2710 = vst.msk [vmem:[#allocation4 + $0x1f0] sm:$0xff] %vm412, %v2678
        %2711 = vst.msk [vmem:[#allocation4 + $0x208] sm:$0xff] %vm412, %v2679
        %2712 = vst.msk [vmem:[#allocation4 + $0x220] sm:$0xff] %vm412, %v2680
        %2713 = vst.msk [vmem:[#allocation4 + $0x238] sm:$0xff] %vm412, %v2681
        %2714 = vst.msk [vmem:[#allocation4 + $0x250] sm:$0xff] %vm412, %v2682
        %2715 = vst.msk [vmem:[#allocation4 + $0x268] sm:$0xff] %vm412, %v2683
        %2716 = vst.msk [vmem:[#allocation4 + $0x280] sm:$0xff] %vm412, %v2684
        %2717 = vst.msk [vmem:[#allocation4 + $0x298] sm:$0xff] %vm412, %v2685
        %2718 = vst.msk [vmem:[#allocation4 + $0x2b0] sm:$0xff] %vm412, %v2686
        %2719 = vst.msk [vmem:[#allocation4 + $0x2c8] sm:$0xff] %vm412, %v2687
        %2720 = vst.msk [vmem:[#allocation4 + $0x2e0] sm:$0xff] %vm412, %v2688
        %2721 = vst.msk [vmem:[#allocation4 + $0x2f8] sm:$0xff] %vm412, %v2689
        %v2722 = vld [vmem:[#allocation3] sm:$0xff]
        %v2723 = vld [vmem:[#allocation3 + $0x8] sm:$0xff]
        %v2724 = vld [vmem:[#allocation3 + $0x10] sm:$0xff]
        %v2725 = vld [vmem:[#allocation3 + $0x18] sm:$0xff]
        %v2726 = vld [vmem:[#allocation3 + $0x20] sm:$0xff]
        %v2727 = vld [vmem:[#allocation3 + $0x28] sm:$0xff]
        %v2728 = vld [vmem:[#allocation3 + $0x30] sm:$0xff]
        %v2729 = vld [vmem:[#allocation3 + $0x38] sm:$0xff]
        %v2730 = vld [vmem:[#allocation3 + $0x40] sm:$0xff]
        %v2731 = vld [vmem:[#allocation3 + $0x48] sm:$0xff]
        %v2732 = vld [vmem:[#allocation3 + $0x50] sm:$0xff]
        %v2733 = vld [vmem:[#allocation3 + $0x58] sm:$0xff]
        %v2734 = vld [vmem:[#allocation3 + $0x60] sm:$0xff]
        %v2735 = vld [vmem:[#allocation3 + $0x68] sm:$0xff]
        %v2736 = vld [vmem:[#allocation3 + $0x70] sm:$0xff]
        %v2737 = vld [vmem:[#allocation3 + $0x78] sm:$0xff]
        %v2738 = vld [vmem:[#allocation3 + $0x80] sm:$0xff]
        %v2739 = vld [vmem:[#allocation3 + $0x88] sm:$0xff]
        %v2740 = vld [vmem:[#allocation3 + $0x90] sm:$0xff]
        %v2741 = vld [vmem:[#allocation3 + $0x98] sm:$0xff]
        %v2742 = vld [vmem:[#allocation3 + $0xa0] sm:$0xff]
        %v2743 = vld [vmem:[#allocation3 + $0xa8] sm:$0xff]
        %v2744 = vld [vmem:[#allocation3 + $0xb0] sm:$0xff]
        %v2745 = vld [vmem:[#allocation3 + $0xb8] sm:$0xff]
        %v2746 = vld [vmem:[#allocation3 + $0xc0] sm:$0xff]
        %v2747 = vld [vmem:[#allocation3 + $0xc8] sm:$0xff]
        %v2748 = vld [vmem:[#allocation3 + $0xd0] sm:$0xff]
        %v2749 = vld [vmem:[#allocation3 + $0xd8] sm:$0xff]
        %v2750 = vld [vmem:[#allocation3 + $0xe0] sm:$0xff]
        %v2751 = vld [vmem:[#allocation3 + $0xe8] sm:$0xff]
        %v2752 = vld [vmem:[#allocation3 + $0xf0] sm:$0xff]
        %v2753 = vld [vmem:[#allocation3 + $0xf8] sm:$0xff]
        %v2754 = vld [vmem:[#allocation3 + $0x100] sm:$0xff]
        %v2755 = vld [vmem:[#allocation3 + $0x108] sm:$0xff]
        %v2756 = vld [vmem:[#allocation3 + $0x110] sm:$0xff]
        %v2757 = vld [vmem:[#allocation3 + $0x118] sm:$0xff]
        %v2758 = vld [vmem:[#allocation3 + $0x120] sm:$0xff]
        %v2759 = vld [vmem:[#allocation3 + $0x128] sm:$0xff]
        %v2760 = vld [vmem:[#allocation3 + $0x130] sm:$0xff]
        %v2761 = vld [vmem:[#allocation3 + $0x138] sm:$0xff]
        %v2762 = vld [vmem:[#allocation3 + $0x140] sm:$0xff]
        %v2763 = vld [vmem:[#allocation3 + $0x148] sm:$0xff]
        %v2764 = vld [vmem:[#allocation3 + $0x150] sm:$0xff]
        %v2765 = vld [vmem:[#allocation3 + $0x158] sm:$0xff]
        %v2766 = vld [vmem:[#allocation3 + $0x160] sm:$0xff]
        %v2767 = vld [vmem:[#allocation3 + $0x168] sm:$0xff]
        %v2768 = vld [vmem:[#allocation3 + $0x170] sm:$0xff]
        %v2769 = vld [vmem:[#allocation3 + $0x178] sm:$0xff]
        %v2770 = vld [vmem:[#allocation3 + $0x180] sm:$0xff]
        %v2771 = vld [vmem:[#allocation3 + $0x188] sm:$0xff]
        %v2772 = vld [vmem:[#allocation3 + $0x190] sm:$0xff]
        %v2773 = vld [vmem:[#allocation3 + $0x198] sm:$0xff]
        %v2774 = vld [vmem:[#allocation3 + $0x1a0] sm:$0xff]
        %v2775 = vld [vmem:[#allocation3 + $0x1a8] sm:$0xff]
        %v2776 = vld [vmem:[#allocation3 + $0x1b0] sm:$0xff]
        %v2777 = vld [vmem:[#allocation3 + $0x1b8] sm:$0xff]
        %v2778 = vld [vmem:[#allocation3 + $0x1c0] sm:$0xff]
        %v2779 = vld [vmem:[#allocation3 + $0x1c8] sm:$0xff]
        %v2780 = vld [vmem:[#allocation3 + $0x1d0] sm:$0xff]
        %v2781 = vld [vmem:[#allocation3 + $0x1d8] sm:$0xff]
        %v2782 = vld [vmem:[#allocation3 + $0x1e0] sm:$0xff]
        %v2783 = vld [vmem:[#allocation3 + $0x1e8] sm:$0xff]
        %v2784 = vld [vmem:[#allocation3 + $0x1f0] sm:$0xff]
        %v2785 = vld [vmem:[#allocation3 + $0x1f8] sm:$0xff]
        %v2786 = vld [vmem:[%s1] sm:$0xff]
        %v2787 = vld [vmem:[%s1 + $0x8] sm:$0xff]
        %v2788 = vld [vmem:[%s1 + $0x10] sm:$0xff]
        %v2789 = vld [vmem:[%s1 + $0x18] sm:$0xff]
        %v2790 = vld [vmem:[%s1 + $0x20] sm:$0xff]
        %v2791 = vld [vmem:[%s1 + $0x28] sm:$0xff]
        %v2792 = vld [vmem:[%s1 + $0x30] sm:$0xff]
        %v2793 = vld [vmem:[%s1 + $0x38] sm:$0xff]
        %v2794 = vld [vmem:[%s1 + $0x40] sm:$0xff]
        %v2795 = vld [vmem:[%s1 + $0x48] sm:$0xff]
        %v2796 = vld [vmem:[%s1 + $0x50] sm:$0xff]
        %v2797 = vld [vmem:[%s1 + $0x58] sm:$0xff]
        %v2798 = vld [vmem:[%s1 + $0x60] sm:$0xff]
        %v2799 = vld [vmem:[%s1 + $0x68] sm:$0xff]
        %v2800 = vld [vmem:[%s1 + $0x70] sm:$0xff]
        %v2801 = vld [vmem:[%s1 + $0x78] sm:$0xff]
        %v2802 = vld [vmem:[%s1 + $0x80] sm:$0xff]
        %v2803 = vld [vmem:[%s1 + $0x88] sm:$0xff]
        %v2804 = vld [vmem:[%s1 + $0x90] sm:$0xff]
        %v2805 = vld [vmem:[%s1 + $0x98] sm:$0xff]
        %v2806 = vld [vmem:[%s1 + $0xa0] sm:$0xff]
        %v2807 = vld [vmem:[%s1 + $0xa8] sm:$0xff]
        %v2808 = vld [vmem:[%s1 + $0xb0] sm:$0xff]
        %v2809 = vld [vmem:[%s1 + $0xb8] sm:$0xff]
        %v2810 = vld [vmem:[%s2] sm:$0x1]
        %v2812 = vperm.slane %v2810, 0
        %vm2814 = vcmask 523264
        %v2816 = vsel %vm2814, %v2723, 0
        %v2819 = vsel %vm2814, %v2725, 0
        %v2822 = vsel %vm2814, %v2727, 0
        %v2825 = vsel %vm2814, %v2729, 0
        %v2828 = vsel %vm2814, %v2731, 0
        %v2831 = vsel %vm2814, %v2733, 0
        %v2834 = vsel %vm2814, %v2735, 0
        %v2837 = vsel %vm2814, %v2737, 0
        %v2840 = vsel %vm2814, %v2739, 0
        %v2843 = vsel %vm2814, %v2741, 0
        %v2846 = vsel %vm2814, %v2743, 0
        %v2849 = vsel %vm2814, %v2745, 0
        %v2852 = vsel %vm2814, %v2747, 0
        %v2855 = vsel %vm2814, %v2749, 0
        %v2858 = vsel %vm2814, %v2751, 0
        %v2861 = vsel %vm2814, %v2753, 0
        %v2864 = vsel %vm2814, %v2755, 0
        %v2867 = vsel %vm2814, %v2757, 0
        %v2870 = vsel %vm2814, %v2759, 0
        %v2873 = vsel %vm2814, %v2761, 0
        %v2876 = vsel %vm2814, %v2763, 0
        %v2879 = vsel %vm2814, %v2765, 0
        %v2882 = vsel %vm2814, %v2767, 0
        %v2885 = vsel %vm2814, %v2769, 0
        %v2888 = vsel %vm2814, %v2771, 0
        %v2891 = vsel %vm2814, %v2773, 0
        %v2894 = vsel %vm2814, %v2775, 0
        %v2897 = vsel %vm2814, %v2777, 0
        %v2900 = vsel %vm2814, %v2779, 0
        %v2903 = vsel %vm2814, %v2781, 0
        %v2906 = vsel %vm2814, %v2783, 0
        %v2909 = vsel %vm2814, %v2785, 0
        %2911 = vmatpush.msra.mxu0 %v2801
        %2912 = vmatpush.msra.mxu0 %v2800
        %2913 = vmatpush.msra.mxu0 %v2799
        %2914 = vmatpush.msra.mxu0 %v2798
        %2915 = vmatpush.msra.mxu0 %v2797
        %2916 = vmatpush.msra.mxu0 %v2796
        %2917 = vmatpush.msra.mxu0 %v2795
        %2918 = vmatpush.msra.mxu0 %v2794
        %2919 = vmatpush.msra.mxu0 %v2793
        %2920 = vmatpush.msra.mxu0 %v2792
        %2921 = vmatpush.msra.mxu0 %v2791
        %2922 = vmatpush.msra.mxu0 %v2790
        %2923 = vmatpush.msra.mxu0 %v2789
        %2924 = vmatpush.msra.mxu0 %v2788
        %2925 = vmatpush.msra.mxu0 %v2787
        %2926 = vmatpush.msra.mxu0 %v2786
        %2927 = vmatmul.f32.gmra.mxu0 %v2722
        %v2928 = vpop.f32.mrf.mxu0
        %v2929 = vadd.f32 %v2812, %v2928
        %2930 = vmatmul.f32.gmra.mxu0 %v2724
        %v2931 = vpop.f32.mrf.mxu0
        %v2932 = vadd.f32 %v2812, %v2931
        %2933 = vmatmul.f32.gmra.mxu0 %v2726
        %v2934 = vpop.f32.mrf.mxu0
        %v2935 = vadd.f32 %v2812, %v2934
        %2936 = vmatmul.f32.gmra.mxu0 %v2728
        %v2937 = vpop.f32.mrf.mxu0
        %v2938 = vadd.f32 %v2812, %v2937
        %2939 = vmatmul.f32.gmra.mxu0 %v2730
        %v2940 = vpop.f32.mrf.mxu0
        %v2941 = vadd.f32 %v2812, %v2940
        %2942 = vmatmul.f32.gmra.mxu0 %v2732
        %v2943 = vpop.f32.mrf.mxu0
        %v2944 = vadd.f32 %v2812, %v2943
        %2945 = vmatmul.f32.gmra.mxu0 %v2734
        %v2946 = vpop.f32.mrf.mxu0
        %v2947 = vadd.f32 %v2812, %v2946
        %2948 = vmatmul.f32.gmra.mxu0 %v2736
        %v2949 = vpop.f32.mrf.mxu0
        %v2950 = vadd.f32 %v2812, %v2949
        %2951 = vmatmul.f32.gmra.mxu0 %v2738
        %v2952 = vpop.f32.mrf.mxu0
        %v2953 = vadd.f32 %v2812, %v2952
        %2954 = vmatmul.f32.gmra.mxu0 %v2740
        %v2955 = vpop.f32.mrf.mxu0
        %v2956 = vadd.f32 %v2812, %v2955
        %2957 = vmatmul.f32.gmra.mxu0 %v2742
        %v2958 = vpop.f32.mrf.mxu0
        %v2959 = vadd.f32 %v2812, %v2958
        %2960 = vmatmul.f32.gmra.mxu0 %v2744
        %v2961 = vpop.f32.mrf.mxu0
        %v2962 = vadd.f32 %v2812, %v2961
        %2963 = vmatmul.f32.gmra.mxu0 %v2746
        %v2964 = vpop.f32.mrf.mxu0
        %v2965 = vadd.f32 %v2812, %v2964
        %2966 = vmatmul.f32.gmra.mxu0 %v2748
        %v2967 = vpop.f32.mrf.mxu0
        %v2968 = vadd.f32 %v2812, %v2967
        %2969 = vmatmul.f32.gmra.mxu0 %v2750
        %v2970 = vpop.f32.mrf.mxu0
        %v2971 = vadd.f32 %v2812, %v2970
        %2972 = vmatmul.f32.gmra.mxu0 %v2752
        %v2973 = vpop.f32.mrf.mxu0
        %v2974 = vadd.f32 %v2812, %v2973
        %2975 = vmatmul.f32.gmra.mxu0 %v2754
        %v2976 = vpop.f32.mrf.mxu0
        %v2977 = vadd.f32 %v2812, %v2976
        %2978 = vmatmul.f32.gmra.mxu0 %v2756
        %v2979 = vpop.f32.mrf.mxu0
        %v2980 = vadd.f32 %v2812, %v2979
        %2981 = vmatmul.f32.gmra.mxu0 %v2758
        %v2982 = vpop.f32.mrf.mxu0
        %v2983 = vadd.f32 %v2812, %v2982
        %2984 = vmatmul.f32.gmra.mxu0 %v2760
        %v2985 = vpop.f32.mrf.mxu0
        %v2986 = vadd.f32 %v2812, %v2985
        %2987 = vmatmul.f32.gmra.mxu0 %v2762
        %v2988 = vpop.f32.mrf.mxu0
        %v2989 = vadd.f32 %v2812, %v2988
        %2990 = vmatmul.f32.gmra.mxu0 %v2764
        %v2991 = vpop.f32.mrf.mxu0
        %v2992 = vadd.f32 %v2812, %v2991
        %2993 = vmatmul.f32.gmra.mxu0 %v2766
        %v2994 = vpop.f32.mrf.mxu0
        %v2995 = vadd.f32 %v2812, %v2994
        %2996 = vmatmul.f32.gmra.mxu0 %v2768
        %v2997 = vpop.f32.mrf.mxu0
        %v2998 = vadd.f32 %v2812, %v2997
        %2999 = vmatmul.f32.gmra.mxu0 %v2770
        %v3000 = vpop.f32.mrf.mxu0
        %v3001 = vadd.f32 %v2812, %v3000
        %3002 = vmatmul.f32.gmra.mxu0 %v2772
        %v3003 = vpop.f32.mrf.mxu0
        %v3004 = vadd.f32 %v2812, %v3003
        %3005 = vmatmul.f32.gmra.mxu0 %v2774
        %v3006 = vpop.f32.mrf.mxu0
        %v3007 = vadd.f32 %v2812, %v3006
        %3008 = vmatmul.f32.gmra.mxu0 %v2776
        %v3009 = vpop.f32.mrf.mxu0
        %v3010 = vadd.f32 %v2812, %v3009
        %3011 = vmatmul.f32.gmra.mxu0 %v2778
        %v3012 = vpop.f32.mrf.mxu0
        %v3013 = vadd.f32 %v2812, %v3012
        %3014 = vmatmul.f32.gmra.mxu0 %v2780
        %v3015 = vpop.f32.mrf.mxu0
        %v3016 = vadd.f32 %v2812, %v3015
        %3017 = vmatmul.f32.gmra.mxu0 %v2782
        %v3018 = vpop.f32.mrf.mxu0
        %v3019 = vadd.f32 %v2812, %v3018
        %3020 = vmatmul.f32.gmra.mxu0 %v2784
        %v3021 = vpop.f32.mrf.mxu0
        %v3022 = vadd.f32 %v2812, %v3021
        %3023 = vdwg.mxu0
        %3024 = vmatpush.msra.mxu0 0.0
        %3025 = vmatpush.msra.mxu0 0.0
        %3026 = vmatpush.msra.mxu0 0.0
        %3027 = vmatpush.msra.mxu0 0.0
        %3028 = vmatpush.msra.mxu0 0.0
        %3029 = vmatpush.msra.mxu0 0.0
        %3030 = vmatpush.msra.mxu0 0.0
        %3031 = vmatpush.msra.mxu0 0.0
        %3032 = vmatpush.msra.mxu0 %v2809
        %3033 = vmatpush.msra.mxu0 %v2808
        %3034 = vmatpush.msra.mxu0 %v2807
        %3035 = vmatpush.msra.mxu0 %v2806
        %3036 = vmatpush.msra.mxu0 %v2805
        %3037 = vmatpush.msra.mxu0 %v2804
        %3038 = vmatpush.msra.mxu0 %v2803
        %3039 = vmatpush.msra.mxu0 %v2802
        %3040 = vmatmul.f32.gmra.mxu0 %v2816
        %v3041 = vpop.f32.mrf.mxu0
        %v3042 = vadd.f32 %v2929, %v3041
        %3043 = vmatmul.f32.gmra.mxu0 %v2819
        %v3044 = vpop.f32.mrf.mxu0
        %v3045 = vadd.f32 %v2932, %v3044
        %3046 = vmatmul.f32.gmra.mxu0 %v2822
        %v3047 = vpop.f32.mrf.mxu0
        %v3048 = vadd.f32 %v2935, %v3047
        %3049 = vmatmul.f32.gmra.mxu0 %v2825
        %v3050 = vpop.f32.mrf.mxu0
        %v3051 = vadd.f32 %v2938, %v3050
        %3052 = vmatmul.f32.gmra.mxu0 %v2828
        %v3053 = vpop.f32.mrf.mxu0
        %v3054 = vadd.f32 %v2941, %v3053
        %3055 = vmatmul.f32.gmra.mxu0 %v2831
        %v3056 = vpop.f32.mrf.mxu0
        %v3057 = vadd.f32 %v2944, %v3056
        %3058 = vmatmul.f32.gmra.mxu0 %v2834
        %v3059 = vpop.f32.mrf.mxu0
        %v3060 = vadd.f32 %v2947, %v3059
        %3061 = vmatmul.f32.gmra.mxu0 %v2837
        %v3062 = vpop.f32.mrf.mxu0
        %v3063 = vadd.f32 %v2950, %v3062
        %3064 = vmatmul.f32.gmra.mxu0 %v2840
        %v3065 = vpop.f32.mrf.mxu0
        %v3066 = vadd.f32 %v2953, %v3065
        %3067 = vmatmul.f32.gmra.mxu0 %v2843
        %v3068 = vpop.f32.mrf.mxu0
        %v3069 = vadd.f32 %v2956, %v3068
        %3070 = vmatmul.f32.gmra.mxu0 %v2846
        %v3071 = vpop.f32.mrf.mxu0
        %v3072 = vadd.f32 %v2959, %v3071
        %3073 = vmatmul.f32.gmra.mxu0 %v2849
        %v3074 = vpop.f32.mrf.mxu0
        %v3075 = vadd.f32 %v2962, %v3074
        %3076 = vmatmul.f32.gmra.mxu0 %v2852
        %v3077 = vpop.f32.mrf.mxu0
        %v3078 = vadd.f32 %v2965, %v3077
        %3079 = vmatmul.f32.gmra.mxu0 %v2855
        %v3080 = vpop.f32.mrf.mxu0
        %v3081 = vadd.f32 %v2968, %v3080
        %3082 = vmatmul.f32.gmra.mxu0 %v2858
        %v3083 = vpop.f32.mrf.mxu0
        %v3084 = vadd.f32 %v2971, %v3083
        %3085 = vmatmul.f32.gmra.mxu0 %v2861
        %v3086 = vpop.f32.mrf.mxu0
        %v3087 = vadd.f32 %v2974, %v3086
        %3088 = vmatmul.f32.gmra.mxu0 %v2864
        %v3089 = vpop.f32.mrf.mxu0
        %v3090 = vadd.f32 %v2977, %v3089
        %3091 = vmatmul.f32.gmra.mxu0 %v2867
        %v3092 = vpop.f32.mrf.mxu0
        %v3093 = vadd.f32 %v2980, %v3092
        %3094 = vmatmul.f32.gmra.mxu0 %v2870
        %v3095 = vpop.f32.mrf.mxu0
        %v3096 = vadd.f32 %v2983, %v3095
        %3097 = vmatmul.f32.gmra.mxu0 %v2873
        %v3098 = vpop.f32.mrf.mxu0
        %v3099 = vadd.f32 %v2986, %v3098
        %3100 = vmatmul.f32.gmra.mxu0 %v2876
        %v3101 = vpop.f32.mrf.mxu0
        %v3102 = vadd.f32 %v2989, %v3101
        %3103 = vmatmul.f32.gmra.mxu0 %v2879
        %v3104 = vpop.f32.mrf.mxu0
        %v3105 = vadd.f32 %v2992, %v3104
        %3106 = vmatmul.f32.gmra.mxu0 %v2882
        %v3107 = vpop.f32.mrf.mxu0
        %v3108 = vadd.f32 %v2995, %v3107
        %3109 = vmatmul.f32.gmra.mxu0 %v2885
        %v3110 = vpop.f32.mrf.mxu0
        %v3111 = vadd.f32 %v2998, %v3110
        %3112 = vmatmul.f32.gmra.mxu0 %v2888
        %v3113 = vpop.f32.mrf.mxu0
        %v3114 = vadd.f32 %v3001, %v3113
        %3115 = vmatmul.f32.gmra.mxu0 %v2891
        %v3116 = vpop.f32.mrf.mxu0
        %v3117 = vadd.f32 %v3004, %v3116
        %3118 = vmatmul.f32.gmra.mxu0 %v2894
        %v3119 = vpop.f32.mrf.mxu0
        %v3120 = vadd.f32 %v3007, %v3119
        %3121 = vmatmul.f32.gmra.mxu0 %v2897
        %v3122 = vpop.f32.mrf.mxu0
        %v3123 = vadd.f32 %v3010, %v3122
        %3124 = vmatmul.f32.gmra.mxu0 %v2900
        %v3125 = vpop.f32.mrf.mxu0
        %v3126 = vadd.f32 %v3013, %v3125
        %3127 = vmatmul.f32.gmra.mxu0 %v2903
        %v3128 = vpop.f32.mrf.mxu0
        %v3129 = vadd.f32 %v3016, %v3128
        %3130 = vmatmul.f32.gmra.mxu0 %v2906
        %v3131 = vpop.f32.mrf.mxu0
        %v3132 = vadd.f32 %v3019, %v3131
        %3133 = vmatmul.f32.gmra.mxu0 %v2909
        %v3134 = vpop.f32.mrf.mxu0
        %v3135 = vadd.f32 %v3022, %v3134
        %3136 = vdwg.mxu0
        %v3137 = vmax.f32 %v3042, 0.0
        %v3138 = vmax.f32 %v3045, 0.0
        %v3139 = vmax.f32 %v3048, 0.0
        %v3140 = vmax.f32 %v3051, 0.0
        %v3141 = vmax.f32 %v3054, 0.0
        %v3142 = vmax.f32 %v3057, 0.0
        %v3143 = vmax.f32 %v3060, 0.0
        %v3144 = vmax.f32 %v3063, 0.0
        %v3145 = vmax.f32 %v3066, 0.0
        %v3146 = vmax.f32 %v3069, 0.0
        %v3147 = vmax.f32 %v3072, 0.0
        %v3148 = vmax.f32 %v3075, 0.0
        %v3149 = vmax.f32 %v3078, 0.0
        %v3150 = vmax.f32 %v3081, 0.0
        %v3151 = vmax.f32 %v3084, 0.0
        %v3152 = vmax.f32 %v3087, 0.0
        %v3153 = vmax.f32 %v3090, 0.0
        %v3154 = vmax.f32 %v3093, 0.0
        %v3155 = vmax.f32 %v3096, 0.0
        %v3156 = vmax.f32 %v3099, 0.0
        %v3157 = vmax.f32 %v3102, 0.0
        %v3158 = vmax.f32 %v3105, 0.0
        %v3159 = vmax.f32 %v3108, 0.0
        %v3160 = vmax.f32 %v3111, 0.0
        %v3161 = vmax.f32 %v3114, 0.0
        %v3162 = vmax.f32 %v3117, 0.0
        %v3163 = vmax.f32 %v3120, 0.0
        %v3164 = vmax.f32 %v3123, 0.0
        %v3165 = vmax.f32 %v3126, 0.0
        %v3166 = vmax.f32 %v3129, 0.0
        %v3167 = vmax.f32 %v3132, 0.0
        %v3168 = vmax.f32 %v3135, 0.0
        %v3169 = vld [vmem:[%s3] sm:$0xff]
        %v3170 = vld [vmem:[%s3 + $0x8] sm:$0xff]
        %v3171 = vld [vmem:[%s3 + $0x10] sm:$0xff]
        %v3172 = vld [vmem:[%s3 + $0x18] sm:$0xff]
        %v3173 = vld [vmem:[%s4] sm:$0x1]
        %v3175 = vperm.slane %v3173, 0
        %v3178 = vsel %vm412, %v3137, 0
        %v3181 = vsel %vm412, %v3138, 0
        %v3184 = vsel %vm412, %v3139, 0
        %v3187 = vsel %vm412, %v3140, 0
        %v3190 = vsel %vm412, %v3141, 0
        %v3193 = vsel %vm412, %v3142, 0
        %v3196 = vsel %vm412, %v3143, 0
        %v3199 = vsel %vm412, %v3144, 0
        %v3202 = vsel %vm412, %v3145, 0
        %v3205 = vsel %vm412, %v3146, 0
        %v3208 = vsel %vm412, %v3147, 0
        %v3211 = vsel %vm412, %v3148, 0
        %v3214 = vsel %vm412, %v3149, 0
        %v3217 = vsel %vm412, %v3150, 0
        %v3220 = vsel %vm412, %v3151, 0
        %v3223 = vsel %vm412, %v3152, 0
        %v3226 = vsel %vm412, %v3153, 0
        %v3229 = vsel %vm412, %v3154, 0
        %v3232 = vsel %vm412, %v3155, 0
        %v3235 = vsel %vm412, %v3156, 0
        %v3238 = vsel %vm412, %v3157, 0
        %v3241 = vsel %vm412, %v3158, 0
        %v3244 = vsel %vm412, %v3159, 0
        %v3247 = vsel %vm412, %v3160, 0
        %v3250 = vsel %vm412, %v3161, 0
        %v3253 = vsel %vm412, %v3162, 0
        %v3256 = vsel %vm412, %v3163, 0
        %v3259 = vsel %vm412, %v3164, 0
        %v3262 = vsel %vm412, %v3165, 0
        %v3265 = vsel %vm412, %v3166, 0
        %v3268 = vsel %vm412, %v3167, 0
        %v3271 = vsel %vm412, %v3168, 0
        %3273 = vmatpush.msra.mxu0 0.0
        %3274 = vmatpush.msra.mxu0 0.0
        %3275 = vmatpush.msra.mxu0 0.0
        %3276 = vmatpush.msra.mxu0 0.0
        %3277 = vmatpush.msra.mxu0 0.0
        %3278 = vmatpush.msra.mxu0 0.0
        %3279 = vmatpush.msra.mxu0 0.0
        %3280 = vmatpush.msra.mxu0 0.0
        %3281 = vmatpush.msra.mxu0 0.0
        %3282 = vmatpush.msra.mxu0 0.0
        %3283 = vmatpush.msra.mxu0 0.0
        %3284 = vmatpush.msra.mxu0 0.0
        %3285 = vmatpush.msra.mxu0 %v3172
        %3286 = vmatpush.msra.mxu0 %v3171
        %3287 = vmatpush.msra.mxu0 %v3170
        %3288 = vmatpush.msra.mxu0 %v3169
        %3289 = vmatmul.f32.gmra.mxu0 %v3178
        %v3290 = vpop.f32.mrf.mxu0
        %v3291 = vadd.f32 %v3175, %v3290
        %3292 = vmatmul.f32.gmra.mxu0 %v3181
        %v3293 = vpop.f32.mrf.mxu0
        %v3294 = vadd.f32 %v3175, %v3293
        %3295 = vmatmul.f32.gmra.mxu0 %v3184
        %v3296 = vpop.f32.mrf.mxu0
        %v3297 = vadd.f32 %v3175, %v3296
        %3298 = vmatmul.f32.gmra.mxu0 %v3187
        %v3299 = vpop.f32.mrf.mxu0
        %v3300 = vadd.f32 %v3175, %v3299
        %3301 = vmatmul.f32.gmra.mxu0 %v3190
        %v3302 = vpop.f32.mrf.mxu0
        %v3303 = vadd.f32 %v3175, %v3302
        %3304 = vmatmul.f32.gmra.mxu0 %v3193
        %v3305 = vpop.f32.mrf.mxu0
        %v3306 = vadd.f32 %v3175, %v3305
        %3307 = vmatmul.f32.gmra.mxu0 %v3196
        %v3308 = vpop.f32.mrf.mxu0
        %v3309 = vadd.f32 %v3175, %v3308
        %3310 = vmatmul.f32.gmra.mxu0 %v3199
        %v3311 = vpop.f32.mrf.mxu0
        %v3312 = vadd.f32 %v3175, %v3311
        %3313 = vmatmul.f32.gmra.mxu0 %v3202
        %v3314 = vpop.f32.mrf.mxu0
        %v3315 = vadd.f32 %v3175, %v3314
        %3316 = vmatmul.f32.gmra.mxu0 %v3205
        %v3317 = vpop.f32.mrf.mxu0
        %v3318 = vadd.f32 %v3175, %v3317
        %3319 = vmatmul.f32.gmra.mxu0 %v3208
        %v3320 = vpop.f32.mrf.mxu0
        %v3321 = vadd.f32 %v3175, %v3320
        %3322 = vmatmul.f32.gmra.mxu0 %v3211
        %v3323 = vpop.f32.mrf.mxu0
        %v3324 = vadd.f32 %v3175, %v3323
        %3325 = vmatmul.f32.gmra.mxu0 %v3214
        %v3326 = vpop.f32.mrf.mxu0
        %v3327 = vadd.f32 %v3175, %v3326
        %3328 = vmatmul.f32.gmra.mxu0 %v3217
        %v3329 = vpop.f32.mrf.mxu0
        %v3330 = vadd.f32 %v3175, %v3329
        %3331 = vmatmul.f32.gmra.mxu0 %v3220
        %v3332 = vpop.f32.mrf.mxu0
        %v3333 = vadd.f32 %v3175, %v3332
        %3334 = vmatmul.f32.gmra.mxu0 %v3223
        %v3335 = vpop.f32.mrf.mxu0
        %v3336 = vadd.f32 %v3175, %v3335
        %3337 = vmatmul.f32.gmra.mxu0 %v3226
        %v3338 = vpop.f32.mrf.mxu0
        %v3339 = vadd.f32 %v3175, %v3338
        %3340 = vmatmul.f32.gmra.mxu0 %v3229
        %v3341 = vpop.f32.mrf.mxu0
        %v3342 = vadd.f32 %v3175, %v3341
        %3343 = vmatmul.f32.gmra.mxu0 %v3232
        %v3344 = vpop.f32.mrf.mxu0
        %v3345 = vadd.f32 %v3175, %v3344
        %3346 = vmatmul.f32.gmra.mxu0 %v3235
        %v3347 = vpop.f32.mrf.mxu0
        %v3348 = vadd.f32 %v3175, %v3347
        %3349 = vmatmul.f32.gmra.mxu0 %v3238
        %v3350 = vpop.f32.mrf.mxu0
        %v3351 = vadd.f32 %v3175, %v3350
        %3352 = vmatmul.f32.gmra.mxu0 %v3241
        %v3353 = vpop.f32.mrf.mxu0
        %v3354 = vadd.f32 %v3175, %v3353
        %3355 = vmatmul.f32.gmra.mxu0 %v3244
        %v3356 = vpop.f32.mrf.mxu0
        %v3357 = vadd.f32 %v3175, %v3356
        %3358 = vmatmul.f32.gmra.mxu0 %v3247
        %v3359 = vpop.f32.mrf.mxu0
        %v3360 = vadd.f32 %v3175, %v3359
        %3361 = vmatmul.f32.gmra.mxu0 %v3250
        %v3362 = vpop.f32.mrf.mxu0
        %v3363 = vadd.f32 %v3175, %v3362
        %3364 = vmatmul.f32.gmra.mxu0 %v3253
        %v3365 = vpop.f32.mrf.mxu0
        %v3366 = vadd.f32 %v3175, %v3365
        %3367 = vmatmul.f32.gmra.mxu0 %v3256
        %v3368 = vpop.f32.mrf.mxu0
        %v3369 = vadd.f32 %v3175, %v3368
        %3370 = vmatmul.f32.gmra.mxu0 %v3259
        %v3371 = vpop.f32.mrf.mxu0
        %v3372 = vadd.f32 %v3175, %v3371
        %3373 = vmatmul.f32.gmra.mxu0 %v3262
        %v3374 = vpop.f32.mrf.mxu0
        %v3375 = vadd.f32 %v3175, %v3374
        %3376 = vmatmul.f32.gmra.mxu0 %v3265
        %v3377 = vpop.f32.mrf.mxu0
        %v3378 = vadd.f32 %v3175, %v3377
        %3379 = vmatmul.f32.gmra.mxu0 %v3268
        %v3380 = vpop.f32.mrf.mxu0
        %v3381 = vadd.f32 %v3175, %v3380
        %3382 = vmatmul.f32.gmra.mxu0 %v3271
        %v3383 = vpop.f32.mrf.mxu0
        %v3384 = vadd.f32 %v3175, %v3383
        %3385 = vdwg.mxu0
        %v3386 = vmax.f32 %v3291, 0.0
        %v3387 = vmax.f32 %v3294, 0.0
        %v3388 = vmax.f32 %v3297, 0.0
        %v3389 = vmax.f32 %v3300, 0.0
        %v3390 = vmax.f32 %v3303, 0.0
        %v3391 = vmax.f32 %v3306, 0.0
        %v3392 = vmax.f32 %v3309, 0.0
        %v3393 = vmax.f32 %v3312, 0.0
        %v3394 = vmax.f32 %v3315, 0.0
        %v3395 = vmax.f32 %v3318, 0.0
        %v3396 = vmax.f32 %v3321, 0.0
        %v3397 = vmax.f32 %v3324, 0.0
        %v3398 = vmax.f32 %v3327, 0.0
        %v3399 = vmax.f32 %v3330, 0.0
        %v3400 = vmax.f32 %v3333, 0.0
        %v3401 = vmax.f32 %v3336, 0.0
        %v3402 = vmax.f32 %v3339, 0.0
        %v3403 = vmax.f32 %v3342, 0.0
        %v3404 = vmax.f32 %v3345, 0.0
        %v3405 = vmax.f32 %v3348, 0.0
        %v3406 = vmax.f32 %v3351, 0.0
        %v3407 = vmax.f32 %v3354, 0.0
        %v3408 = vmax.f32 %v3357, 0.0
        %v3409 = vmax.f32 %v3360, 0.0
        %v3410 = vmax.f32 %v3363, 0.0
        %v3411 = vmax.f32 %v3366, 0.0
        %v3412 = vmax.f32 %v3369, 0.0
        %v3413 = vmax.f32 %v3372, 0.0
        %v3414 = vmax.f32 %v3375, 0.0
        %v3415 = vmax.f32 %v3378, 0.0
        %v3416 = vmax.f32 %v3381, 0.0
        %v3417 = vmax.f32 %v3384, 0.0
        %v3418 = vld [vmem:[#allocation4] sm:$0xff]
        %v3419 = vld [vmem:[#allocation4 + $0x8] sm:$0xff]
        %v3420 = vld [vmem:[#allocation4 + $0x10] sm:$0xff]
        %v3421 = vld [vmem:[#allocation4 + $0x18] sm:$0xff]
        %v3422 = vld [vmem:[#allocation4 + $0x20] sm:$0xff]
        %v3423 = vld [vmem:[#allocation4 + $0x28] sm:$0xff]
        %v3424 = vld [vmem:[#allocation4 + $0x30] sm:$0xff]
        %v3425 = vld [vmem:[#allocation4 + $0x38] sm:$0xff]
        %v3426 = vld [vmem:[#allocation4 + $0x40] sm:$0xff]
        %v3427 = vld [vmem:[#allocation4 + $0x48] sm:$0xff]
        %v3428 = vld [vmem:[#allocation4 + $0x50] sm:$0xff]
        %v3429 = vld [vmem:[#allocation4 + $0x58] sm:$0xff]
        %v3430 = vld [vmem:[#allocation4 + $0x60] sm:$0xff]
        %v3431 = vld [vmem:[#allocation4 + $0x68] sm:$0xff]
        %v3432 = vld [vmem:[#allocation4 + $0x70] sm:$0xff]
        %v3433 = vld [vmem:[#allocation4 + $0x78] sm:$0xff]
        %v3434 = vld [vmem:[#allocation4 + $0x80] sm:$0xff]
        %v3435 = vld [vmem:[#allocation4 + $0x88] sm:$0xff]
        %v3436 = vld [vmem:[#allocation4 + $0x90] sm:$0xff]
        %v3437 = vld [vmem:[#allocation4 + $0x98] sm:$0xff]
        %v3438 = vld [vmem:[#allocation4 + $0xa0] sm:$0xff]
        %v3439 = vld [vmem:[#allocation4 + $0xa8] sm:$0xff]
        %v3440 = vld [vmem:[#allocation4 + $0xb0] sm:$0xff]
        %v3441 = vld [vmem:[#allocation4 + $0xb8] sm:$0xff]
        %v3442 = vld [vmem:[#allocation4 + $0xc0] sm:$0xff]
        %v3443 = vld [vmem:[#allocation4 + $0xc8] sm:$0xff]
        %v3444 = vld [vmem:[#allocation4 + $0xd0] sm:$0xff]
        %v3445 = vld [vmem:[#allocation4 + $0xd8] sm:$0xff]
        %v3446 = vld [vmem:[#allocation4 + $0xe0] sm:$0xff]
        %v3447 = vld [vmem:[#allocation4 + $0xe8] sm:$0xff]
        %v3448 = vld [vmem:[#allocation4 + $0xf0] sm:$0xff]
        %v3449 = vld [vmem:[#allocation4 + $0xf8] sm:$0xff]
        %v3450 = vld [vmem:[#allocation4 + $0x100] sm:$0xff]
        %v3451 = vld [vmem:[#allocation4 + $0x108] sm:$0xff]
        %v3452 = vld [vmem:[#allocation4 + $0x110] sm:$0xff]
        %v3453 = vld [vmem:[#allocation4 + $0x118] sm:$0xff]
        %v3454 = vld [vmem:[#allocation4 + $0x120] sm:$0xff]
        %v3455 = vld [vmem:[#allocation4 + $0x128] sm:$0xff]
        %v3456 = vld [vmem:[#allocation4 + $0x130] sm:$0xff]
        %v3457 = vld [vmem:[#allocation4 + $0x138] sm:$0xff]
        %v3458 = vld [vmem:[#allocation4 + $0x140] sm:$0xff]
        %v3459 = vld [vmem:[#allocation4 + $0x148] sm:$0xff]
        %v3460 = vld [vmem:[#allocation4 + $0x150] sm:$0xff]
        %v3461 = vld [vmem:[#allocation4 + $0x158] sm:$0xff]
        %v3462 = vld [vmem:[#allocation4 + $0x160] sm:$0xff]
        %v3463 = vld [vmem:[#allocation4 + $0x168] sm:$0xff]
        %v3464 = vld [vmem:[#allocation4 + $0x170] sm:$0xff]
        %v3465 = vld [vmem:[#allocation4 + $0x178] sm:$0xff]
        %v3466 = vld [vmem:[#allocation4 + $0x180] sm:$0xff]
        %v3467 = vld [vmem:[#allocation4 + $0x188] sm:$0xff]
        %v3468 = vld [vmem:[#allocation4 + $0x190] sm:$0xff]
        %v3469 = vld [vmem:[#allocation4 + $0x198] sm:$0xff]
        %v3470 = vld [vmem:[#allocation4 + $0x1a0] sm:$0xff]
        %v3471 = vld [vmem:[#allocation4 + $0x1a8] sm:$0xff]
        %v3472 = vld [vmem:[#allocation4 + $0x1b0] sm:$0xff]
        %v3473 = vld [vmem:[#allocation4 + $0x1b8] sm:$0xff]
        %v3474 = vld [vmem:[#allocation4 + $0x1c0] sm:$0xff]
        %v3475 = vld [vmem:[#allocation4 + $0x1c8] sm:$0xff]
        %v3476 = vld [vmem:[#allocation4 + $0x1d0] sm:$0xff]
        %v3477 = vld [vmem:[#allocation4 + $0x1d8] sm:$0xff]
        %v3478 = vld [vmem:[#allocation4 + $0x1e0] sm:$0xff]
        %v3479 = vld [vmem:[#allocation4 + $0x1e8] sm:$0xff]
        %v3480 = vld [vmem:[#allocation4 + $0x1f0] sm:$0xff]
        %v3481 = vld [vmem:[#allocation4 + $0x1f8] sm:$0xff]
        %v3482 = vld [vmem:[#allocation4 + $0x200] sm:$0xff]
        %v3483 = vld [vmem:[#allocation4 + $0x208] sm:$0xff]
        %v3484 = vld [vmem:[#allocation4 + $0x210] sm:$0xff]
        %v3485 = vld [vmem:[#allocation4 + $0x218] sm:$0xff]
        %v3486 = vld [vmem:[#allocation4 + $0x220] sm:$0xff]
        %v3487 = vld [vmem:[#allocation4 + $0x228] sm:$0xff]
        %v3488 = vld [vmem:[#allocation4 + $0x230] sm:$0xff]
        %v3489 = vld [vmem:[#allocation4 + $0x238] sm:$0xff]
        %v3490 = vld [vmem:[#allocation4 + $0x240] sm:$0xff]
        %v3491 = vld [vmem:[#allocation4 + $0x248] sm:$0xff]
        %v3492 = vld [vmem:[#allocation4 + $0x250] sm:$0xff]
        %v3493 = vld [vmem:[#allocation4 + $0x258] sm:$0xff]
        %v3494 = vld [vmem:[#allocation4 + $0x260] sm:$0xff]
        %v3495 = vld [vmem:[#allocation4 + $0x268] sm:$0xff]
        %v3496 = vld [vmem:[#allocation4 + $0x270] sm:$0xff]
        %v3497 = vld [vmem:[#allocation4 + $0x278] sm:$0xff]
        %v3498 = vld [vmem:[#allocation4 + $0x280] sm:$0xff]
        %v3499 = vld [vmem:[#allocation4 + $0x288] sm:$0xff]
        %v3500 = vld [vmem:[#allocation4 + $0x290] sm:$0xff]
        %v3501 = vld [vmem:[#allocation4 + $0x298] sm:$0xff]
        %v3502 = vld [vmem:[#allocation4 + $0x2a0] sm:$0xff]
        %v3503 = vld [vmem:[#allocation4 + $0x2a8] sm:$0xff]
        %v3504 = vld [vmem:[#allocation4 + $0x2b0] sm:$0xff]
        %v3505 = vld [vmem:[#allocation4 + $0x2b8] sm:$0xff]
        %v3506 = vld [vmem:[#allocation4 + $0x2c0] sm:$0xff]
        %v3507 = vld [vmem:[#allocation4 + $0x2c8] sm:$0xff]
        %v3508 = vld [vmem:[#allocation4 + $0x2d0] sm:$0xff]
        %v3509 = vld [vmem:[#allocation4 + $0x2d8] sm:$0xff]
        %v3510 = vld [vmem:[#allocation4 + $0x2e0] sm:$0xff]
        %v3511 = vld [vmem:[#allocation4 + $0x2e8] sm:$0xff]
        %v3512 = vld [vmem:[#allocation4 + $0x2f0] sm:$0xff]
        %v3513 = vld [vmem:[#allocation4 + $0x2f8] sm:$0xff]
        %v3514 = vld [vmem:[%s5] sm:$0xff]
        %v3515 = vld [vmem:[%s5 + $0x8] sm:$0xff]
        %v3516 = vld [vmem:[%s5 + $0x10] sm:$0xff]
        %v3517 = vld [vmem:[%s5 + $0x18] sm:$0xff]
        %v3518 = vld [vmem:[%s5 + $0x20] sm:$0xff]
        %v3519 = vld [vmem:[%s5 + $0x28] sm:$0xff]
        %v3520 = vld [vmem:[%s5 + $0x30] sm:$0xff]
        %v3521 = vld [vmem:[%s5 + $0x38] sm:$0xff]
        %v3522 = vld [vmem:[%s5 + $0x40] sm:$0xff]
        %v3523 = vld [vmem:[%s5 + $0x48] sm:$0xff]
        %v3524 = vld [vmem:[%s5 + $0x50] sm:$0xff]
        %v3525 = vld [vmem:[%s5 + $0x58] sm:$0xff]
        %v3526 = vld [vmem:[%s5 + $0x60] sm:$0xff]
        %v3527 = vld [vmem:[%s5 + $0x68] sm:$0xff]
        %v3528 = vld [vmem:[%s5 + $0x70] sm:$0xff]
        %v3529 = vld [vmem:[%s5 + $0x78] sm:$0xff]
        %v3530 = vld [vmem:[%s5 + $0x80] sm:$0xff]
        %v3531 = vld [vmem:[%s5 + $0x88] sm:$0xff]
        %v3532 = vld [vmem:[%s5 + $0x90] sm:$0xff]
        %v3533 = vld [vmem:[%s5 + $0x98] sm:$0xff]
        %v3534 = vld [vmem:[%s5 + $0xa0] sm:$0xff]
        %v3535 = vld [vmem:[%s5 + $0xa8] sm:$0xff]
        %v3536 = vld [vmem:[%s5 + $0xb0] sm:$0xff]
        %v3537 = vld [vmem:[%s5 + $0xb8] sm:$0xff]
        %v3538 = vld [vmem:[%s5 + $0xc0] sm:$0xff]
        %v3539 = vld [vmem:[%s5 + $0xc8] sm:$0xff]
        %v3540 = vld [vmem:[%s5 + $0xd0] sm:$0xff]
        %v3541 = vld [vmem:[%s5 + $0xd8] sm:$0xff]
        %v3542 = vld [vmem:[%s5 + $0xe0] sm:$0xff]
        %v3543 = vld [vmem:[%s5 + $0xe8] sm:$0xff]
        %v3544 = vld [vmem:[%s5 + $0xf0] sm:$0xff]
        %v3545 = vld [vmem:[%s5 + $0xf8] sm:$0xff]
        %v3546 = vld [vmem:[%s5 + $0x100] sm:$0xff]
        %v3547 = vld [vmem:[%s5 + $0x108] sm:$0xff]
        %v3548 = vld [vmem:[%s5 + $0x110] sm:$0xff]
        %v3549 = vld [vmem:[%s5 + $0x118] sm:$0xff]
        %v3550 = vld [vmem:[%s6] sm:$0x1]
        %v3552 = vperm.slane %v3550, 0
        %v3555 = vsel %vm412, %v3420, 0
        %v3558 = vsel %vm412, %v3423, 0
        %v3561 = vsel %vm412, %v3426, 0
        %v3564 = vsel %vm412, %v3429, 0
        %v3567 = vsel %vm412, %v3432, 0
        %v3570 = vsel %vm412, %v3435, 0
        %v3573 = vsel %vm412, %v3438, 0
        %v3576 = vsel %vm412, %v3441, 0
        %v3579 = vsel %vm412, %v3444, 0
        %v3582 = vsel %vm412, %v3447, 0
        %v3585 = vsel %vm412, %v3450, 0
        %v3588 = vsel %vm412, %v3453, 0
        %v3591 = vsel %vm412, %v3456, 0
        %v3594 = vsel %vm412, %v3459, 0
        %v3597 = vsel %vm412, %v3462, 0
        %v3600 = vsel %vm412, %v3465, 0
        %v3603 = vsel %vm412, %v3468, 0
        %v3606 = vsel %vm412, %v3471, 0
        %v3609 = vsel %vm412, %v3474, 0
        %v3612 = vsel %vm412, %v3477, 0
        %v3615 = vsel %vm412, %v3480, 0
        %v3618 = vsel %vm412, %v3483, 0
        %v3621 = vsel %vm412, %v3486, 0
        %v3624 = vsel %vm412, %v3489, 0
        %v3627 = vsel %vm412, %v3492, 0
        %v3630 = vsel %vm412, %v3495, 0
        %v3633 = vsel %vm412, %v3498, 0
        %v3636 = vsel %vm412, %v3501, 0
        %v3639 = vsel %vm412, %v3504, 0
        %v3642 = vsel %vm412, %v3507, 0
        %v3645 = vsel %vm412, %v3510, 0
        %v3648 = vsel %vm412, %v3513, 0
        %3650 = vmatpush.msra.mxu0 %v3529
        %3651 = vmatpush.msra.mxu0 %v3528
        %3652 = vmatpush.msra.mxu0 %v3527
        %3653 = vmatpush.msra.mxu0 %v3526
        %3654 = vmatpush.msra.mxu0 %v3525
        %3655 = vmatpush.msra.mxu0 %v3524
        %3656 = vmatpush.msra.mxu0 %v3523
        %3657 = vmatpush.msra.mxu0 %v3522
        %3658 = vmatpush.msra.mxu0 %v3521
        %3659 = vmatpush.msra.mxu0 %v3520
        %3660 = vmatpush.msra.mxu0 %v3519
        %3661 = vmatpush.msra.mxu0 %v3518
        %3662 = vmatpush.msra.mxu0 %v3517
        %3663 = vmatpush.msra.mxu0 %v3516
        %3664 = vmatpush.msra.mxu0 %v3515
        %3665 = vmatpush.msra.mxu0 %v3514
        %3666 = vmatmul.f32.gmra.mxu0 %v3418
        %v3667 = vpop.f32.mrf.mxu0
        %v3668 = vadd.f32 %v3552, %v3667
        %3669 = vmatmul.f32.gmra.mxu0 %v3421
        %v3670 = vpop.f32.mrf.mxu0
        %v3671 = vadd.f32 %v3552, %v3670
        %3672 = vmatmul.f32.gmra.mxu0 %v3424
        %v3673 = vpop.f32.mrf.mxu0
        %v3674 = vadd.f32 %v3552, %v3673
        %3675 = vmatmul.f32.gmra.mxu0 %v3427
        %v3676 = vpop.f32.mrf.mxu0
        %v3677 = vadd.f32 %v3552, %v3676
        %3678 = vmatmul.f32.gmra.mxu0 %v3430
        %v3679 = vpop.f32.mrf.mxu0
        %v3680 = vadd.f32 %v3552, %v3679
        %3681 = vmatmul.f32.gmra.mxu0 %v3433
        %v3682 = vpop.f32.mrf.mxu0
        %v3683 = vadd.f32 %v3552, %v3682
        %3684 = vmatmul.f32.gmra.mxu0 %v3436
        %v3685 = vpop.f32.mrf.mxu0
        %v3686 = vadd.f32 %v3552, %v3685
        %3687 = vmatmul.f32.gmra.mxu0 %v3439
        %v3688 = vpop.f32.mrf.mxu0
        %v3689 = vadd.f32 %v3552, %v3688
        %3690 = vmatmul.f32.gmra.mxu0 %v3442
        %v3691 = vpop.f32.mrf.mxu0
        %v3692 = vadd.f32 %v3552, %v3691
        %3693 = vmatmul.f32.gmra.mxu0 %v3445
        %v3694 = vpop.f32.mrf.mxu0
        %v3695 = vadd.f32 %v3552, %v3694
        %3696 = vmatmul.f32.gmra.mxu0 %v3448
        %v3697 = vpop.f32.mrf.mxu0
        %v3698 = vadd.f32 %v3552, %v3697
        %3699 = vmatmul.f32.gmra.mxu0 %v3451
        %v3700 = vpop.f32.mrf.mxu0
        %v3701 = vadd.f32 %v3552, %v3700
        %3702 = vmatmul.f32.gmra.mxu0 %v3454
        %v3703 = vpop.f32.mrf.mxu0
        %v3704 = vadd.f32 %v3552, %v3703
        %3705 = vmatmul.f32.gmra.mxu0 %v3457
        %v3706 = vpop.f32.mrf.mxu0
        %v3707 = vadd.f32 %v3552, %v3706
        %3708 = vmatmul.f32.gmra.mxu0 %v3460
        %v3709 = vpop.f32.mrf.mxu0
        %v3710 = vadd.f32 %v3552, %v3709
        %3711 = vmatmul.f32.gmra.mxu0 %v3463
        %v3712 = vpop.f32.mrf.mxu0
        %v3713 = vadd.f32 %v3552, %v3712
        %3714 = vmatmul.f32.gmra.mxu0 %v3466
        %v3715 = vpop.f32.mrf.mxu0
        %v3716 = vadd.f32 %v3552, %v3715
        %3717 = vmatmul.f32.gmra.mxu0 %v3469
        %v3718 = vpop.f32.mrf.mxu0
        %v3719 = vadd.f32 %v3552, %v3718
        %3720 = vmatmul.f32.gmra.mxu0 %v3472
        %v3721 = vpop.f32.mrf.mxu0
        %v3722 = vadd.f32 %v3552, %v3721
        %3723 = vmatmul.f32.gmra.mxu0 %v3475
        %v3724 = vpop.f32.mrf.mxu0
        %v3725 = vadd.f32 %v3552, %v3724
        %3726 = vmatmul.f32.gmra.mxu0 %v3478
        %v3727 = vpop.f32.mrf.mxu0
        %v3728 = vadd.f32 %v3552, %v3727
        %3729 = vmatmul.f32.gmra.mxu0 %v3481
        %v3730 = vpop.f32.mrf.mxu0
        %v3731 = vadd.f32 %v3552, %v3730
        %3732 = vmatmul.f32.gmra.mxu0 %v3484
        %v3733 = vpop.f32.mrf.mxu0
        %v3734 = vadd.f32 %v3552, %v3733
        %3735 = vmatmul.f32.gmra.mxu0 %v3487
        %v3736 = vpop.f32.mrf.mxu0
        %v3737 = vadd.f32 %v3552, %v3736
        %3738 = vmatmul.f32.gmra.mxu0 %v3490
        %v3739 = vpop.f32.mrf.mxu0
        %v3740 = vadd.f32 %v3552, %v3739
        %3741 = vmatmul.f32.gmra.mxu0 %v3493
        %v3742 = vpop.f32.mrf.mxu0
        %v3743 = vadd.f32 %v3552, %v3742
        %3744 = vmatmul.f32.gmra.mxu0 %v3496
        %v3745 = vpop.f32.mrf.mxu0
        %v3746 = vadd.f32 %v3552, %v3745
        %3747 = vmatmul.f32.gmra.mxu0 %v3499
        %v3748 = vpop.f32.mrf.mxu0
        %v3749 = vadd.f32 %v3552, %v3748
        %3750 = vmatmul.f32.gmra.mxu0 %v3502
        %v3751 = vpop.f32.mrf.mxu0
        %v3752 = vadd.f32 %v3552, %v3751
        %3753 = vmatmul.f32.gmra.mxu0 %v3505
        %v3754 = vpop.f32.mrf.mxu0
        %v3755 = vadd.f32 %v3552, %v3754
        %3756 = vmatmul.f32.gmra.mxu0 %v3508
        %v3757 = vpop.f32.mrf.mxu0
        %v3758 = vadd.f32 %v3552, %v3757
        %3759 = vmatmul.f32.gmra.mxu0 %v3511
        %v3760 = vpop.f32.mrf.mxu0
        %v3761 = vadd.f32 %v3552, %v3760
        %3762 = vdwg.mxu0
        %3763 = vmatpush.msra.mxu0 %v3545
        %3764 = vmatpush.msra.mxu0 %v3544
        %3765 = vmatpush.msra.mxu0 %v3543
        %3766 = vmatpush.msra.mxu0 %v3542
        %3767 = vmatpush.msra.mxu0 %v3541
        %3768 = vmatpush.msra.mxu0 %v3540
        %3769 = vmatpush.msra.mxu0 %v3539
        %3770 = vmatpush.msra.mxu0 %v3538
        %3771 = vmatpush.msra.mxu0 %v3537
        %3772 = vmatpush.msra.mxu0 %v3536
        %3773 = vmatpush.msra.mxu0 %v3535
        %3774 = vmatpush.msra.mxu0 %v3534
        %3775 = vmatpush.msra.mxu0 %v3533
        %3776 = vmatpush.msra.mxu0 %v3532
        %3777 = vmatpush.msra.mxu0 %v3531
        %3778 = vmatpush.msra.mxu0 %v3530
        %3779 = vmatmul.f32.gmra.mxu0 %v3419
        %v3780 = vpop.f32.mrf.mxu0
        %v3781 = vadd.f32 %v3668, %v3780
        %3782 = vmatmul.f32.gmra.mxu0 %v3422
        %v3783 = vpop.f32.mrf.mxu0
        %v3784 = vadd.f32 %v3671, %v3783
        %3785 = vmatmul.f32.gmra.mxu0 %v3425
        %v3786 = vpop.f32.mrf.mxu0
        %v3787 = vadd.f32 %v3674, %v3786
        %3788 = vmatmul.f32.gmra.mxu0 %v3428
        %v3789 = vpop.f32.mrf.mxu0
        %v3790 = vadd.f32 %v3677, %v3789
        %3791 = vmatmul.f32.gmra.mxu0 %v3431
        %v3792 = vpop.f32.mrf.mxu0
        %v3793 = vadd.f32 %v3680, %v3792
        %3794 = vmatmul.f32.gmra.mxu0 %v3434
        %v3795 = vpop.f32.mrf.mxu0
        %v3796 = vadd.f32 %v3683, %v3795
        %3797 = vmatmul.f32.gmra.mxu0 %v3437
        %v3798 = vpop.f32.mrf.mxu0
        %v3799 = vadd.f32 %v3686, %v3798
        %3800 = vmatmul.f32.gmra.mxu0 %v3440
        %v3801 = vpop.f32.mrf.mxu0
        %v3802 = vadd.f32 %v3689, %v3801
        %3803 = vmatmul.f32.gmra.mxu0 %v3443
        %v3804 = vpop.f32.mrf.mxu0
        %v3805 = vadd.f32 %v3692, %v3804
        %3806 = vmatmul.f32.gmra.mxu0 %v3446
        %v3807 = vpop.f32.mrf.mxu0
        %v3808 = vadd.f32 %v3695, %v3807
        %3809 = vmatmul.f32.gmra.mxu0 %v3449
        %v3810 = vpop.f32.mrf.mxu0
        %v3811 = vadd.f32 %v3698, %v3810
        %3812 = vmatmul.f32.gmra.mxu0 %v3452
        %v3813 = vpop.f32.mrf.mxu0
        %v3814 = vadd.f32 %v3701, %v3813
        %3815 = vmatmul.f32.gmra.mxu0 %v3455
        %v3816 = vpop.f32.mrf.mxu0
        %v3817 = vadd.f32 %v3704, %v3816
        %3818 = vmatmul.f32.gmra.mxu0 %v3458
        %v3819 = vpop.f32.mrf.mxu0
        %v3820 = vadd.f32 %v3707, %v3819
        %3821 = vmatmul.f32.gmra.mxu0 %v3461
        %v3822 = vpop.f32.mrf.mxu0
        %v3823 = vadd.f32 %v3710, %v3822
        %3824 = vmatmul.f32.gmra.mxu0 %v3464
        %v3825 = vpop.f32.mrf.mxu0
        %v3826 = vadd.f32 %v3713, %v3825
        %3827 = vmatmul.f32.gmra.mxu0 %v3467
        %v3828 = vpop.f32.mrf.mxu0
        %v3829 = vadd.f32 %v3716, %v3828
        %3830 = vmatmul.f32.gmra.mxu0 %v3470
        %v3831 = vpop.f32.mrf.mxu0
        %v3832 = vadd.f32 %v3719, %v3831
        %3833 = vmatmul.f32.gmra.mxu0 %v3473
        %v3834 = vpop.f32.mrf.mxu0
        %v3835 = vadd.f32 %v3722, %v3834
        %3836 = vmatmul.f32.gmra.mxu0 %v3476
        %v3837 = vpop.f32.mrf.mxu0
        %v3838 = vadd.f32 %v3725, %v3837
        %3839 = vmatmul.f32.gmra.mxu0 %v3479
        %v3840 = vpop.f32.mrf.mxu0
        %v3841 = vadd.f32 %v3728, %v3840
        %3842 = vmatmul.f32.gmra.mxu0 %v3482
        %v3843 = vpop.f32.mrf.mxu0
        %v3844 = vadd.f32 %v3731, %v3843
        %3845 = vmatmul.f32.gmra.mxu0 %v3485
        %v3846 = vpop.f32.mrf.mxu0
        %v3847 = vadd.f32 %v3734, %v3846
        %3848 = vmatmul.f32.gmra.mxu0 %v3488
        %v3849 = vpop.f32.mrf.mxu0
        %v3850 = vadd.f32 %v3737, %v3849
        %3851 = vmatmul.f32.gmra.mxu0 %v3491
        %v3852 = vpop.f32.mrf.mxu0
        %v3853 = vadd.f32 %v3740, %v3852
        %3854 = vmatmul.f32.gmra.mxu0 %v3494
        %v3855 = vpop.f32.mrf.mxu0
        %v3856 = vadd.f32 %v3743, %v3855
        %3857 = vmatmul.f32.gmra.mxu0 %v3497
        %v3858 = vpop.f32.mrf.mxu0
        %v3859 = vadd.f32 %v3746, %v3858
        %3860 = vmatmul.f32.gmra.mxu0 %v3500
        %v3861 = vpop.f32.mrf.mxu0
        %v3862 = vadd.f32 %v3749, %v3861
        %3863 = vmatmul.f32.gmra.mxu0 %v3503
        %v3864 = vpop.f32.mrf.mxu0
        %v3865 = vadd.f32 %v3752, %v3864
        %3866 = vmatmul.f32.gmra.mxu0 %v3506
        %v3867 = vpop.f32.mrf.mxu0
        %v3868 = vadd.f32 %v3755, %v3867
        %3869 = vmatmul.f32.gmra.mxu0 %v3509
        %v3870 = vpop.f32.mrf.mxu0
        %v3871 = vadd.f32 %v3758, %v3870
        %3872 = vmatmul.f32.gmra.mxu0 %v3512
        %v3873 = vpop.f32.mrf.mxu0
        %v3874 = vadd.f32 %v3761, %v3873
        %3875 = vdwg.mxu0
        %3876 = vmatpush.msra.mxu0 0.0
        %3877 = vmatpush.msra.mxu0 0.0
        %3878 = vmatpush.msra.mxu0 0.0
        %3879 = vmatpush.msra.mxu0 0.0
        %3880 = vmatpush.msra.mxu0 0.0
        %3881 = vmatpush.msra.mxu0 0.0
        %3882 = vmatpush.msra.mxu0 0.0
        %3883 = vmatpush.msra.mxu0 0.0
        %3884 = vmatpush.msra.mxu0 0.0
        %3885 = vmatpush.msra.mxu0 0.0
        %3886 = vmatpush.msra.mxu0 0.0
        %3887 = vmatpush.msra.mxu0 0.0
        %3888 = vmatpush.msra.mxu0 %v3549
        %3889 = vmatpush.msra.mxu0 %v3548
        %3890 = vmatpush.msra.mxu0 %v3547
        %3891 = vmatpush.msra.mxu0 %v3546
        %3892 = vmatmul.f32.gmra.mxu0 %v3555
        %v3893 = vpop.f32.mrf.mxu0
        %v3894 = vadd.f32 %v3781, %v3893
        %3895 = vmatmul.f32.gmra.mxu0 %v3558
        %v3896 = vpop.f32.mrf.mxu0
        %v3897 = vadd.f32 %v3784, %v3896
        %3898 = vmatmul.f32.gmra.mxu0 %v3561
        %v3899 = vpop.f32.mrf.mxu0
        %v3900 = vadd.f32 %v3787, %v3899
        %3901 = vmatmul.f32.gmra.mxu0 %v3564
        %v3902 = vpop.f32.mrf.mxu0
        %v3903 = vadd.f32 %v3790, %v3902
        %3904 = vmatmul.f32.gmra.mxu0 %v3567
        %v3905 = vpop.f32.mrf.mxu0
        %v3906 = vadd.f32 %v3793, %v3905
        %3907 = vmatmul.f32.gmra.mxu0 %v3570
        %v3908 = vpop.f32.mrf.mxu0
        %v3909 = vadd.f32 %v3796, %v3908
        %3910 = vmatmul.f32.gmra.mxu0 %v3573
        %v3911 = vpop.f32.mrf.mxu0
        %v3912 = vadd.f32 %v3799, %v3911
        %3913 = vmatmul.f32.gmra.mxu0 %v3576
        %v3914 = vpop.f32.mrf.mxu0
        %v3915 = vadd.f32 %v3802, %v3914
        %3916 = vmatmul.f32.gmra.mxu0 %v3579
        %v3917 = vpop.f32.mrf.mxu0
        %v3918 = vadd.f32 %v3805, %v3917
        %3919 = vmatmul.f32.gmra.mxu0 %v3582
        %v3920 = vpop.f32.mrf.mxu0
        %v3921 = vadd.f32 %v3808, %v3920
        %3922 = vmatmul.f32.gmra.mxu0 %v3585
        %v3923 = vpop.f32.mrf.mxu0
        %v3924 = vadd.f32 %v3811, %v3923
        %3925 = vmatmul.f32.gmra.mxu0 %v3588
        %v3926 = vpop.f32.mrf.mxu0
        %v3927 = vadd.f32 %v3814, %v3926
        %3928 = vmatmul.f32.gmra.mxu0 %v3591
        %v3929 = vpop.f32.mrf.mxu0
        %v3930 = vadd.f32 %v3817, %v3929
        %3931 = vmatmul.f32.gmra.mxu0 %v3594
        %v3932 = vpop.f32.mrf.mxu0
        %v3933 = vadd.f32 %v3820, %v3932
        %3934 = vmatmul.f32.gmra.mxu0 %v3597
        %v3935 = vpop.f32.mrf.mxu0
        %v3936 = vadd.f32 %v3823, %v3935
        %3937 = vmatmul.f32.gmra.mxu0 %v3600
        %v3938 = vpop.f32.mrf.mxu0
        %v3939 = vadd.f32 %v3826, %v3938
        %3940 = vmatmul.f32.gmra.mxu0 %v3603
        %v3941 = vpop.f32.mrf.mxu0
        %v3942 = vadd.f32 %v3829, %v3941
        %3943 = vmatmul.f32.gmra.mxu0 %v3606
        %v3944 = vpop.f32.mrf.mxu0
        %v3945 = vadd.f32 %v3832, %v3944
        %3946 = vmatmul.f32.gmra.mxu0 %v3609
        %v3947 = vpop.f32.mrf.mxu0
        %v3948 = vadd.f32 %v3835, %v3947
        %3949 = vmatmul.f32.gmra.mxu0 %v3612
        %v3950 = vpop.f32.mrf.mxu0
        %v3951 = vadd.f32 %v3838, %v3950
        %3952 = vmatmul.f32.gmra.mxu0 %v3615
        %v3953 = vpop.f32.mrf.mxu0
        %v3954 = vadd.f32 %v3841, %v3953
        %3955 = vmatmul.f32.gmra.mxu0 %v3618
        %v3956 = vpop.f32.mrf.mxu0
        %v3957 = vadd.f32 %v3844, %v3956
        %3958 = vmatmul.f32.gmra.mxu0 %v3621
        %v3959 = vpop.f32.mrf.mxu0
        %v3960 = vadd.f32 %v3847, %v3959
        %3961 = vmatmul.f32.gmra.mxu0 %v3624
        %v3962 = vpop.f32.mrf.mxu0
        %v3963 = vadd.f32 %v3850, %v3962
        %3964 = vmatmul.f32.gmra.mxu0 %v3627
        %v3965 = vpop.f32.mrf.mxu0
        %v3966 = vadd.f32 %v3853, %v3965
        %3967 = vmatmul.f32.gmra.mxu0 %v3630
        %v3968 = vpop.f32.mrf.mxu0
        %v3969 = vadd.f32 %v3856, %v3968
        %3970 = vmatmul.f32.gmra.mxu0 %v3633
        %v3971 = vpop.f32.mrf.mxu0
        %v3972 = vadd.f32 %v3859, %v3971
        %3973 = vmatmul.f32.gmra.mxu0 %v3636
        %v3974 = vpop.f32.mrf.mxu0
        %v3975 = vadd.f32 %v3862, %v3974
        %3976 = vmatmul.f32.gmra.mxu0 %v3639
        %v3977 = vpop.f32.mrf.mxu0
        %v3978 = vadd.f32 %v3865, %v3977
        %3979 = vmatmul.f32.gmra.mxu0 %v3642
        %v3980 = vpop.f32.mrf.mxu0
        %v3981 = vadd.f32 %v3868, %v3980
        %3982 = vmatmul.f32.gmra.mxu0 %v3645
        %v3983 = vpop.f32.mrf.mxu0
        %v3984 = vadd.f32 %v3871, %v3983
        %3985 = vmatmul.f32.gmra.mxu0 %v3648
        %v3986 = vpop.f32.mrf.mxu0
        %v3987 = vadd.f32 %v3874, %v3986
        %3988 = vdwg.mxu0
        %v3989 = vmax.f32 %v3894, 0.0
        %v3990 = vmax.f32 %v3897, 0.0
        %v3991 = vmax.f32 %v3900, 0.0
        %v3992 = vmax.f32 %v3903, 0.0
        %v3993 = vmax.f32 %v3906, 0.0
        %v3994 = vmax.f32 %v3909, 0.0
        %v3995 = vmax.f32 %v3912, 0.0
        %v3996 = vmax.f32 %v3915, 0.0
        %v3997 = vmax.f32 %v3918, 0.0
        %v3998 = vmax.f32 %v3921, 0.0
        %v3999 = vmax.f32 %v3924, 0.0
        %v4000 = vmax.f32 %v3927, 0.0
        %v4001 = vmax.f32 %v3930, 0.0
        %v4002 = vmax.f32 %v3933, 0.0
        %v4003 = vmax.f32 %v3936, 0.0
        %v4004 = vmax.f32 %v3939, 0.0
        %v4005 = vmax.f32 %v3942, 0.0
        %v4006 = vmax.f32 %v3945, 0.0
        %v4007 = vmax.f32 %v3948, 0.0
        %v4008 = vmax.f32 %v3951, 0.0
        %v4009 = vmax.f32 %v3954, 0.0
        %v4010 = vmax.f32 %v3957, 0.0
        %v4011 = vmax.f32 %v3960, 0.0
        %v4012 = vmax.f32 %v3963, 0.0
        %v4013 = vmax.f32 %v3966, 0.0
        %v4014 = vmax.f32 %v3969, 0.0
        %v4015 = vmax.f32 %v3972, 0.0
        %v4016 = vmax.f32 %v3975, 0.0
        %v4017 = vmax.f32 %v3978, 0.0
        %v4018 = vmax.f32 %v3981, 0.0
        %v4019 = vmax.f32 %v3984, 0.0
        %v4020 = vmax.f32 %v3987, 0.0
        %v4021 = vld [vmem:[%s7] sm:$0xff]
        %v4022 = vld [vmem:[%s7 + $0x8] sm:$0xff]
        %v4023 = vld [vmem:[%s7 + $0x10] sm:$0xff]
        %v4024 = vld [vmem:[%s7 + $0x18] sm:$0xff]
        %v4025 = vld [vmem:[%s8] sm:$0x1]
        %v4027 = vperm.slane %v4025, 0
        %v4030 = vsel %vm412, %v3989, 0
        %v4033 = vsel %vm412, %v3990, 0
        %v4036 = vsel %vm412, %v3991, 0
        %v4039 = vsel %vm412, %v3992, 0
        %v4042 = vsel %vm412, %v3993, 0
        %v4045 = vsel %vm412, %v3994, 0
        %v4048 = vsel %vm412, %v3995, 0
        %v4051 = vsel %vm412, %v3996, 0
        %v4054 = vsel %vm412, %v3997, 0
        %v4057 = vsel %vm412, %v3998, 0
        %v4060 = vsel %vm412, %v3999, 0
        %v4063 = vsel %vm412, %v4000, 0
        %v4066 = vsel %vm412, %v4001, 0
        %v4069 = vsel %vm412, %v4002, 0
        %v4072 = vsel %vm412, %v4003, 0
        %v4075 = vsel %vm412, %v4004, 0
        %v4078 = vsel %vm412, %v4005, 0
        %v4081 = vsel %vm412, %v4006, 0
        %v4084 = vsel %vm412, %v4007, 0
        %v4087 = vsel %vm412, %v4008, 0
        %v4090 = vsel %vm412, %v4009, 0
        %v4093 = vsel %vm412, %v4010, 0
        %v4096 = vsel %vm412, %v4011, 0
        %v4099 = vsel %vm412, %v4012, 0
        %v4102 = vsel %vm412, %v4013, 0
        %v4105 = vsel %vm412, %v4014, 0
        %v4108 = vsel %vm412, %v4015, 0
        %v4111 = vsel %vm412, %v4016, 0
        %v4114 = vsel %vm412, %v4017, 0
        %v4117 = vsel %vm412, %v4018, 0
        %v4120 = vsel %vm412, %v4019, 0
        %v4123 = vsel %vm412, %v4020, 0
        %4125 = vmatpush.msra.mxu0 0.0
        %4126 = vmatpush.msra.mxu0 0.0
        %4127 = vmatpush.msra.mxu0 0.0
        %4128 = vmatpush.msra.mxu0 0.0
        %4129 = vmatpush.msra.mxu0 0.0
        %4130 = vmatpush.msra.mxu0 0.0
        %4131 = vmatpush.msra.mxu0 0.0
        %4132 = vmatpush.msra.mxu0 0.0
        %4133 = vmatpush.msra.mxu0 0.0
        %4134 = vmatpush.msra.mxu0 0.0
        %4135 = vmatpush.msra.mxu0 0.0
        %4136 = vmatpush.msra.mxu0 0.0
        %4137 = vmatpush.msra.mxu0 %v4024
        %4138 = vmatpush.msra.mxu0 %v4023
        %4139 = vmatpush.msra.mxu0 %v4022
        %4140 = vmatpush.msra.mxu0 %v4021
        %4141 = vmatmul.f32.gmra.mxu0 %v4030
        %v4142 = vpop.f32.mrf.mxu0
        %v4143 = vadd.f32 %v4027, %v4142
        %4144 = vmatmul.f32.gmra.mxu0 %v4033
        %v4145 = vpop.f32.mrf.mxu0
        %v4146 = vadd.f32 %v4027, %v4145
        %4147 = vmatmul.f32.gmra.mxu0 %v4036
        %v4148 = vpop.f32.mrf.mxu0
        %v4149 = vadd.f32 %v4027, %v4148
        %4150 = vmatmul.f32.gmra.mxu0 %v4039
        %v4151 = vpop.f32.mrf.mxu0
        %v4152 = vadd.f32 %v4027, %v4151
        %4153 = vmatmul.f32.gmra.mxu0 %v4042
        %v4154 = vpop.f32.mrf.mxu0
        %v4155 = vadd.f32 %v4027, %v4154
        %4156 = vmatmul.f32.gmra.mxu0 %v4045
        %v4157 = vpop.f32.mrf.mxu0
        %v4158 = vadd.f32 %v4027, %v4157
        %4159 = vmatmul.f32.gmra.mxu0 %v4048
        %v4160 = vpop.f32.mrf.mxu0
        %v4161 = vadd.f32 %v4027, %v4160
        %4162 = vmatmul.f32.gmra.mxu0 %v4051
        %v4163 = vpop.f32.mrf.mxu0
        %v4164 = vadd.f32 %v4027, %v4163
        %4165 = vmatmul.f32.gmra.mxu0 %v4054
        %v4166 = vpop.f32.mrf.mxu0
        %v4167 = vadd.f32 %v4027, %v4166
        %4168 = vmatmul.f32.gmra.mxu0 %v4057
        %v4169 = vpop.f32.mrf.mxu0
        %v4170 = vadd.f32 %v4027, %v4169
        %4171 = vmatmul.f32.gmra.mxu0 %v4060
        %v4172 = vpop.f32.mrf.mxu0
        %v4173 = vadd.f32 %v4027, %v4172
        %4174 = vmatmul.f32.gmra.mxu0 %v4063
        %v4175 = vpop.f32.mrf.mxu0
        %v4176 = vadd.f32 %v4027, %v4175
        %4177 = vmatmul.f32.gmra.mxu0 %v4066
        %v4178 = vpop.f32.mrf.mxu0
        %v4179 = vadd.f32 %v4027, %v4178
        %4180 = vmatmul.f32.gmra.mxu0 %v4069
        %v4181 = vpop.f32.mrf.mxu0
        %v4182 = vadd.f32 %v4027, %v4181
        %4183 = vmatmul.f32.gmra.mxu0 %v4072
        %v4184 = vpop.f32.mrf.mxu0
        %v4185 = vadd.f32 %v4027, %v4184
        %4186 = vmatmul.f32.gmra.mxu0 %v4075
        %v4187 = vpop.f32.mrf.mxu0
        %v4188 = vadd.f32 %v4027, %v4187
        %4189 = vmatmul.f32.gmra.mxu0 %v4078
        %v4190 = vpop.f32.mrf.mxu0
        %v4191 = vadd.f32 %v4027, %v4190
        %4192 = vmatmul.f32.gmra.mxu0 %v4081
        %v4193 = vpop.f32.mrf.mxu0
        %v4194 = vadd.f32 %v4027, %v4193
        %4195 = vmatmul.f32.gmra.mxu0 %v4084
        %v4196 = vpop.f32.mrf.mxu0
        %v4197 = vadd.f32 %v4027, %v4196
        %4198 = vmatmul.f32.gmra.mxu0 %v4087
        %v4199 = vpop.f32.mrf.mxu0
        %v4200 = vadd.f32 %v4027, %v4199
        %4201 = vmatmul.f32.gmra.mxu0 %v4090
        %v4202 = vpop.f32.mrf.mxu0
        %v4203 = vadd.f32 %v4027, %v4202
        %4204 = vmatmul.f32.gmra.mxu0 %v4093
        %v4205 = vpop.f32.mrf.mxu0
        %v4206 = vadd.f32 %v4027, %v4205
        %4207 = vmatmul.f32.gmra.mxu0 %v4096
        %v4208 = vpop.f32.mrf.mxu0
        %v4209 = vadd.f32 %v4027, %v4208
        %4210 = vmatmul.f32.gmra.mxu0 %v4099
        %v4211 = vpop.f32.mrf.mxu0
        %v4212 = vadd.f32 %v4027, %v4211
        %4213 = vmatmul.f32.gmra.mxu0 %v4102
        %v4214 = vpop.f32.mrf.mxu0
        %v4215 = vadd.f32 %v4027, %v4214
        %4216 = vmatmul.f32.gmra.mxu0 %v4105
        %v4217 = vpop.f32.mrf.mxu0
        %v4218 = vadd.f32 %v4027, %v4217
        %4219 = vmatmul.f32.gmra.mxu0 %v4108
        %v4220 = vpop.f32.mrf.mxu0
        %v4221 = vadd.f32 %v4027, %v4220
        %4222 = vmatmul.f32.gmra.mxu0 %v4111
        %v4223 = vpop.f32.mrf.mxu0
        %v4224 = vadd.f32 %v4027, %v4223
        %4225 = vmatmul.f32.gmra.mxu0 %v4114
        %v4226 = vpop.f32.mrf.mxu0
        %v4227 = vadd.f32 %v4027, %v4226
        %4228 = vmatmul.f32.gmra.mxu0 %v4117
        %v4229 = vpop.f32.mrf.mxu0
        %v4230 = vadd.f32 %v4027, %v4229
        %4231 = vmatmul.f32.gmra.mxu0 %v4120
        %v4232 = vpop.f32.mrf.mxu0
        %v4233 = vadd.f32 %v4027, %v4232
        %4234 = vmatmul.f32.gmra.mxu0 %v4123
        %v4235 = vpop.f32.mrf.mxu0
        %v4236 = vadd.f32 %v4027, %v4235
        %4237 = vdwg.mxu0
        %v4238 = vmax.f32 %v4143, 0.0
        %v4239 = vmax.f32 %v4146, 0.0
        %v4240 = vmax.f32 %v4149, 0.0
        %v4241 = vmax.f32 %v4152, 0.0
        %v4242 = vmax.f32 %v4155, 0.0
        %v4243 = vmax.f32 %v4158, 0.0
        %v4244 = vmax.f32 %v4161, 0.0
        %v4245 = vmax.f32 %v4164, 0.0
        %v4246 = vmax.f32 %v4167, 0.0
        %v4247 = vmax.f32 %v4170, 0.0
        %v4248 = vmax.f32 %v4173, 0.0
        %v4249 = vmax.f32 %v4176, 0.0
        %v4250 = vmax.f32 %v4179, 0.0
        %v4251 = vmax.f32 %v4182, 0.0
        %v4252 = vmax.f32 %v4185, 0.0
        %v4253 = vmax.f32 %v4188, 0.0
        %v4254 = vmax.f32 %v4191, 0.0
        %v4255 = vmax.f32 %v4194, 0.0
        %v4256 = vmax.f32 %v4197, 0.0
        %v4257 = vmax.f32 %v4200, 0.0
        %v4258 = vmax.f32 %v4203, 0.0
        %v4259 = vmax.f32 %v4206, 0.0
        %v4260 = vmax.f32 %v4209, 0.0
        %v4261 = vmax.f32 %v4212, 0.0
        %v4262 = vmax.f32 %v4215, 0.0
        %v4263 = vmax.f32 %v4218, 0.0
        %v4264 = vmax.f32 %v4221, 0.0
        %v4265 = vmax.f32 %v4224, 0.0
        %v4266 = vmax.f32 %v4227, 0.0
        %v4267 = vmax.f32 %v4230, 0.0
        %v4268 = vmax.f32 %v4233, 0.0
        %v4269 = vmax.f32 %v4236, 0.0
        %v4270 = vadd.f32 %v3386, %v4238
        %v4271 = vadd.f32 %v3387, %v4239
        %v4272 = vadd.f32 %v3388, %v4240
        %v4273 = vadd.f32 %v3389, %v4241
        %v4274 = vadd.f32 %v3390, %v4242
        %v4275 = vadd.f32 %v3391, %v4243
        %v4276 = vadd.f32 %v3392, %v4244
        %v4277 = vadd.f32 %v3393, %v4245
        %v4278 = vadd.f32 %v3394, %v4246
        %v4279 = vadd.f32 %v3395, %v4247
        %v4280 = vadd.f32 %v3396, %v4248
        %v4281 = vadd.f32 %v3397, %v4249
        %v4282 = vadd.f32 %v3398, %v4250
        %v4283 = vadd.f32 %v3399, %v4251
        %v4284 = vadd.f32 %v3400, %v4252
        %v4285 = vadd.f32 %v3401, %v4253
        %v4286 = vadd.f32 %v3402, %v4254
        %v4287 = vadd.f32 %v3403, %v4255
        %v4288 = vadd.f32 %v3404, %v4256
        %v4289 = vadd.f32 %v3405, %v4257
        %v4290 = vadd.f32 %v3406, %v4258
        %v4291 = vadd.f32 %v3407, %v4259
        %v4292 = vadd.f32 %v3408, %v4260
        %v4293 = vadd.f32 %v3409, %v4261
        %v4294 = vadd.f32 %v3410, %v4262
        %v4295 = vadd.f32 %v3411, %v4263
        %v4296 = vadd.f32 %v3412, %v4264
        %v4297 = vadd.f32 %v3413, %v4265
        %v4298 = vadd.f32 %v3414, %v4266
        %v4299 = vadd.f32 %v3415, %v4267
        %v4300 = vadd.f32 %v3416, %v4268
        %v4301 = vadd.f32 %v3417, %v4269
        %v4302 = vld [vmem:[%s9] sm:$0x1]
        %v4303 = vld [vmem:[%s10] sm:$0x1]
        %v4304 = vld [vmem:[%s11] sm:$0x3]
        %v4305 = vadd.f32 %v4270, %v415
        %v4306 = vadd.f32 %v4271, %v416
        %v4307 = vadd.f32 %v4272, %v417
        %v4308 = vadd.f32 %v4273, %v418
        %v4309 = vadd.f32 %v4274, %v419
        %v4310 = vadd.f32 %v4275, %v420
        %v4311 = vadd.f32 %v4276, %v421
        %v4312 = vadd.f32 %v4277, %v422
        %v4313 = vadd.f32 %v4278, %v423
        %v4314 = vadd.f32 %v4279, %v424
        %v4315 = vadd.f32 %v4280, %v425
        %v4316 = vadd.f32 %v4281, %v426
        %v4317 = vadd.f32 %v4282, %v427
        %v4318 = vadd.f32 %v4283, %v428
        %v4319 = vadd.f32 %v4284, %v429
        %v4320 = vadd.f32 %v4285, %v430
        %v4321 = vsel %vm412, %v4305, 0.0
        %v4322 = vsel %vm412, %v4306, 0.0
        %v4323 = vadd.f32 %v4321, %v4322
        %v4324 = vsel %vm412, %v4307, 0.0
        %v4325 = vadd.f32 %v4323, %v4324
        %v4326 = vsel %vm412, %v4308, 0.0
        %v4327 = vadd.f32 %v4325, %v4326
        %v4328 = vsel %vm412, %v4309, 0.0
        %v4329 = vadd.f32 %v4327, %v4328
        %v4330 = vsel %vm412, %v4310, 0.0
        %v4331 = vadd.f32 %v4329, %v4330
        %v4332 = vsel %vm412, %v4311, 0.0
        %v4333 = vadd.f32 %v4331, %v4332
        %v4334 = vsel %vm412, %v4312, 0.0
        %v4335 = vadd.f32 %v4333, %v4334
        %v4336 = vsel %vm412, %v4313, 0.0
        %v4337 = vadd.f32 %v4335, %v4336
        %v4338 = vsel %vm412, %v4314, 0.0
        %v4339 = vadd.f32 %v4337, %v4338
        %v4340 = vsel %vm412, %v4315, 0.0
        %v4341 = vadd.f32 %v4339, %v4340
        %v4342 = vsel %vm412, %v4316, 0.0
        %v4343 = vadd.f32 %v4341, %v4342
        %v4344 = vsel %vm412, %v4317, 0.0
        %v4345 = vadd.f32 %v4343, %v4344
        %v4346 = vsel %vm412, %v4318, 0.0
        %v4347 = vadd.f32 %v4345, %v4346
        %v4348 = vsel %vm412, %v4319, 0.0
        %v4349 = vadd.f32 %v4347, %v4348
        %v4350 = vsel %vm412, %v4320, 0.0
        %v4351 = vadd.f32 %v4349, %v4350
        %v4352 = vrot.slane %v4351, 4
        %v4353 = vadd.f32 %v4351, %v4352
        %v4354 = vrot.slane %v4353, 2
        %v4355 = vadd.f32 %v4353, %v4354
        %v4356 = vrot.slane %v4355, 1
        %v4357 = vadd.f32 %v4355, %v4356
        %v4358 = vrcp.pop 128.0
        %v4359 = vmul.f32 128.0, %v4358
        %v4360 = vsub.f32 1.0, %v4359
        %v4361 = vmul.f32 %v4358, %v4360
        %v4362 = vadd.f32 %v4358, %v4361
        %vm4363 = vweird.f32 %v4358
        %v4364 = vsel %vm4363, %v4358, %v4362
        %v4365 = vmul.f32 %v4357, %v4364
        %v4366 = vmul.f32 %v4365, %v4302
        %v4367 = vadd.f32 %v4366, %v4303
        %v4368 = vadd.f32 %v4367, %v4304
        %vm4369 = vcmask 253952
        %4370 = vst.msk [vmem:[%s406] sm:$0x1] %vm4369, %v4368
        %v4371 = vadd.f32 %v4286, %v431
        %v4372 = vadd.f32 %v4287, %v432
        %v4373 = vadd.f32 %v4288, %v433
        %v4374 = vadd.f32 %v4289, %v434
        %v4375 = vadd.f32 %v4290, %v435
        %v4376 = vadd.f32 %v4291, %v436
        %v4377 = vadd.f32 %v4292, %v437
        %v4378 = vadd.f32 %v4293, %v438
        %v4379 = vadd.f32 %v4294, %v439
        %v4380 = vadd.f32 %v4295, %v440
        %v4381 = vadd.f32 %v4296, %v441
        %v4382 = vadd.f32 %v4297, %v442
        %v4383 = vadd.f32 %v4298, %v443
        %v4384 = vadd.f32 %v4299, %v444
        %v4385 = vadd.f32 %v4300, %v445
        %v4386 = vadd.f32 %v4301, %v446
        %v4387 = vsel %vm412, %v4371, 0.0
        %v4388 = vsel %vm412, %v4372, 0.0
        %v4389 = vadd.f32 %v4387, %v4388
        %v4390 = vsel %vm412, %v4373, 0.0
        %v4391 = vadd.f32 %v4389, %v4390
        %v4392 = vsel %vm412, %v4374, 0.0
        %v4393 = vadd.f32 %v4391, %v4392
        %v4394 = vsel %vm412, %v4375, 0.0
        %v4395 = vadd.f32 %v4393, %v4394
        %v4396 = vsel %vm412, %v4376, 0.0
        %v4397 = vadd.f32 %v4395, %v4396
        %v4398 = vsel %vm412, %v4377, 0.0
        %v4399 = vadd.f32 %v4397, %v4398
        %v4400 = vsel %vm412, %v4378, 0.0
        %v4401 = vadd.f32 %v4399, %v4400
        %v4402 = vsel %vm412, %v4379, 0.0
        %v4403 = vadd.f32 %v4401, %v4402
        %v4404 = vsel %vm412, %v4380, 0.0
        %v4405 = vadd.f32 %v4403, %v4404
        %v4406 = vsel %vm412, %v4381, 0.0
        %v4407 = vadd.f32 %v4405, %v4406
        %v4408 = vsel %vm412, %v4382, 0.0
        %v4409 = vadd.f32 %v4407, %v4408
        %v4410 = vsel %vm412, %v4383, 0.0
        %v4411 = vadd.f32 %v4409, %v4410
        %v4412 = vsel %vm412, %v4384, 0.0
        %v4413 = vadd.f32 %v4411, %v4412
        %v4414 = vsel %vm412, %v4385, 0.0
        %v4415 = vadd.f32 %v4413, %v4414
        %v4416 = vsel %vm412, %v4386, 0.0
        %v4417 = vadd.f32 %v4415, %v4416
        %v4418 = vrot.slane %v4417, 4
        %v4419 = vadd.f32 %v4417, %v4418
        %v4420 = vrot.slane %v4419, 2
        %v4421 = vadd.f32 %v4419, %v4420
        %v4422 = vrot.slane %v4421, 1
        %v4423 = vadd.f32 %v4421, %v4422
        %v4424 = vmul.f32 %v4423, %v4364
        %v4425 = vmul.f32 %v4424, %v4302
        %v4426 = vadd.f32 %v4425, %v4303
        %v4428 = vrot.slane %v4304, 1
        %v4430 = vadd.f32 %v4426, %v4428
        %4431 = vst.msk [vmem:[%s406 + $0x1] sm:$0x1] %vm4369, %v4430
        %s4432 = sand.u32 %s291, 1
        %s4433 = scalar_lea.sflag [#allocation6], %s4432
        %s4434 = sand.u32 %s291, 1
        %s4435 = smul.addr %s4434, 2
        %s4436 = scalar_lea.vmem [#allocation5], %s4435
        // Predicated region
        $region69: #{tpu_custom_call.1} parent=67 // pred_check
          %p4437 = pneg %p301
        $region70: #{tpu_custom_call.1} parent=67 // pred_check_branch
          %4439 = sbr.rel (%p4437) target = $region72
        $region71: #{tpu_custom_call.1} parent=67 // pred_region
          %4441 = vsyncadd %s4433, 0
          %s4442 = smul.addr %s26, 2
          %s4443 = scalar_lea.hbm %s12, %s4442
          %s4445 = sshll.u32 %s4436, 4
          %s4446 = int_to_ptr.vmem [resolvable:$true] %s4445
          %s4447 = sshll.u32 %s4443, 4
          %s4448 = int_to_ptr.hbm [resolvable:$true] %s4447
          %4450 = dma.vmem_to_hbm [thread:$0]  %s4446, 32, %s4448, %s4433
        $region72: #{tpu_custom_call.1} parent=67 // pred_fallthru
          _
      $region68: #{tpu_custom_call.1} parent=5 // pred_fallthru
        _
      %p4451 = scmp.le.s32.totalorder 2, %s21
      // Predicated region
      $region73: #{tpu_custom_call.1} parent=5 // pred_check
        %p4452 = pneg %p4451
      $region74: #{tpu_custom_call.1} parent=5 // pred_check_branch
        %4454 = sbr.rel (%p4452) target = $region76
      $region75: #{tpu_custom_call.1} parent=5 // pred_region
        %s4455 = ssub.s32 %s21, 2
        // Predicated region
        $region77: #{tpu_custom_call.1} parent=75 // pred_check
          %p4456 = pneg %p307
        $region78: #{tpu_custom_call.1} parent=75 // pred_check_branch
          %4458 = sbr.rel (%p4456) target = $region80
        $region79: #{tpu_custom_call.1} parent=75 // pred_region
          %s4459 = sand.u32 %s292, 1
          %s4460 = scalar_lea.sflag [#allocation6], %s4459
          %s4461 = sand.u32 %s292, 1
          %s4462 = smul.addr %s4461, 2
          %s4463 = scalar_lea.vmem [#allocation5], %s4462
          %4465 = dma.done %s4460, 32
        $region80: #{tpu_custom_call.1} parent=75 // pred_fallthru
          _
      $region76: #{tpu_custom_call.1} parent=5 // pred_fallthru
        _
    $region6: #{tpu_custom_call.1} parent=1 // loop_footer
      %s25 = sadd.s32 1, %s21
    $region7: #{tpu_custom_call.1} parent=1 // loop_footer_branch
      %20 = sbr.rel target = $region3
    $region8: #{tpu_custom_call.1} parent=1 // loop_exit
      _
    %4466 = vsyncpa [#allocation6], 1
    %s4467 = scalar_lea.sflag [#allocation6], 1
    %4468 = vsyncpa %s4467, 1

</llo_original>
